<compile_context>
chip_gen: v7x
topology: tpu7x:2x2x1
jax: 0.10.0
libtpu: 0.0.40
codegen_flags: <defaults>
</compile_context>

<pallas_src>
import numpy as np
import jax
import jax.numpy as jnp
from jax.experimental import pallas as pl
from jax.experimental.pallas import tpu as pltpu


# ---------------------------------------------------------------------------
# Scalar-loss "sections": each returns (list_of_input_arrays, fn) where fn
# consumes the loaded f32 values inside the kernel and returns ONE scalar
# that is already multiplied by its loss weight.
# ---------------------------------------------------------------------------
def _kp2d_section(pred_j2d, gt_kp2d, openpose_weight, gt_weight, weight):
    """Confidence-weighted 2D keypoint MSE.  Inputs component-major:
    pred (2, M, J), gt (3, M, J); J on the lane axis -> joint iota is a lane
    iota compare."""
    m, j, _ = gt_kp2d.shape
    inv_den = float(weight) / float(m * j * 2)
    opw, gtw = float(openpose_weight), float(gt_weight)
    arrays = [jnp.transpose(pred_j2d, (2, 0, 1)),      # (2, M, J)
              jnp.transpose(gt_kp2d, (2, 0, 1))]       # (3, M, J)

    def fn(p, g):
        px, py = p[0], p[1]
        gx, gy, conf = g[0], g[1], g[2]
        jidx = jax.lax.broadcasted_iota(jnp.int32, conf.shape, 1)
        w = conf * jnp.where(jidx < 25, jnp.float32(opw), jnp.float32(gtw))
        dx = px - gx
        dy = py - gy
        return jnp.sum(w * (dx * dx + dy * dy)) * inv_den

    return arrays, fn


def _kp3d_section(pred_j3d, gt_j3d, weight):
    """Pelvis-centred 3D keypoint MSE on joints [25:39].  Layout (14, M*3):
    joints on sublanes, (sample, coord) on lanes -> pelvis = sublane slice."""
    pred = pred_j3d[:, 25:39, :]
    gt = gt_j3d[:, 25:39, :]
    m3 = pred.shape[0]
    inv_den = float(weight) / float(m3 * 14 * 3)
    p = jnp.transpose(pred, (1, 0, 2)).reshape(14, m3 * 3)
    g = jnp.transpose(gt, (1, 0, 2)).reshape(14, m3 * 3)

    def fn(p_, g_):
        pp = (p_[2:3, :] + p_[3:4, :]) * 0.5
        gp = (g_[2:3, :] + g_[3:4, :]) * 0.5
        d = (p_ - pp) - (g_ - gp)
        return jnp.sum(d * d) * inv_den

    return [p, g], fn


def _pose_section(pred_pose, gt_pose, weight):
    """batch_rodrigues (axis-angle -> rotmat) + MSE.
    Sublane-dense layout (3, Kp/128, 128); K padded to a multiple of 128 with
    zero axis-angles (identical pred/gt rotmats -> zero contribution).
    Streams the 9 rot-mat component diffs (no full 9-tuples kept live)."""
    k = pred_pose.shape[0] * 24
    kp = ((k + 127) // 128) * 128
    inv_den = float(weight) / float(k * 9)

    def to_blocks(pose):
        aa = pose.reshape(-1, 3)                       # (K, 3)
        if kp != k:
            aa = jnp.pad(aa, ((0, kp - k), (0, 0)))
        return aa.T.reshape(3, kp // 128, 128)         # (3, B, 128)

    arrays = [to_blocks(pred_pose), to_blocks(gt_pose)]

    def quat_terms(a):                                 # a: (3, B, 128)
        ax, ay, az = a[0], a[1], a[2]
        exe, eye, eze = ax + 1e-8, ay + 1e-8, az + 1e-8
        sq = exe * exe + eye * eye + eze * eze
        inv_l1 = jax.lax.rsqrt(sq)                     # 1 / ||aa + eps||
        nx, ny, nz = ax * inv_l1, ay * inv_l1, az * inv_l1
        half = 0.5 * (sq * inv_l1)                     # 0.5 * ||aa + eps||
        vc, vs = jnp.cos(half), jnp.sin(half)
        qw, qx, qy, qz = vc, vs * nx, vs * ny, vs * nz
        inv_qn = jax.lax.rsqrt(qw * qw + qx * qx + qy * qy + qz * qz)
        w, x, y, z = qw * inv_qn, qx * inv_qn, qy * inv_qn, qz * inv_qn
        return (w * w, x * x, y * y, z * z,
                w * x, w * y, w * z, x * y, x * z, y * z)

    _COMPS = [
        lambda w2, x2, y2, z2, wx, wy, wz, xy, xz, yz: w2 + x2 - y2 - z2,
        lambda w2, x2, y2, z2, wx, wy, wz, xy, xz, yz: 2 * xy - 2 * wz,
        lambda w2, x2, y2, z2, wx, wy, wz, xy, xz, yz: 2 * wy + 2 * xz,
        lambda w2, x2, y2, z2, wx, wy, wz, xy, xz, yz: 2 * wz + 2 * xy,
        lambda w2, x2, y2, z2, wx, wy, wz, xy, xz, yz: w2 - x2 + y2 - z2,
        lambda w2, x2, y2, z2, wx, wy, wz, xy, xz, yz: 2 * yz - 2 * wx,
        lambda w2, x2, y2, z2, wx, wy, wz, xy, xz, yz: 2 * xz - 2 * wy,
        lambda w2, x2, y2, z2, wx, wy, wz, xy, xz, yz: 2 * wx + 2 * yz,
        lambda w2, x2, y2, z2, wx, wy, wz, xy, xz, yz: w2 - x2 - y2 + z2,
    ]

    def fn(paa, gaa):
        P = quat_terms(paa)
        G = quat_terms(gaa)
        acc = None
        for f in _COMPS:                               # streamed diffs
            d = f(*P) - f(*G)
            acc = d * d if acc is None else acc + d * d
        return jnp.sum(acc) * inv_den

    return arrays, fn


def _betas_section(pred_betas, gt_betas, weight):
    inv_den = float(weight) / float(pred_betas.size)

    def fn(pb, gb):
        d = pb - gb
        return jnp.sum(d * d) * inv_den

    return [pred_betas, gt_betas], fn


# ---------------------------------------------------------------------------
# The single fused pallas_call:
#   inputs : all section arrays, verts (3, T, V) coord-major, cam (T, 3)
#   outputs: (1,128) pre-weighted loss row (sum in lane nsec), and 11 (T, V)
#            lane-dense planes: xs, ys, zs, scatter x/y/val, in-image-clamped
#            gather indices x/y/x1/y1, in-image mask.
# ---------------------------------------------------------------------------
def _fused_forward_call(sections, verts_cvx, cam):
    arrays = [a for arrs, _ in sections for a in arrs]
    counts = [len(arrs) for arrs, _ in sections]
    nsec = len(sections)
    assert 1 <= nsec <= 127
    nin = len(arrays)
    _, t, v = verts_cvx.shape

    def kernel(*refs):
        in_refs = refs[:nin]
        verts_ref = refs[nin]
        cam_ref = refs[nin + 1]
        (loss_ref, xs_ref, ys_ref, zs_ref, sx_ref, sy_ref, sv_ref,
         xg_ref, yg_ref, x1g_ref, y1g_ref, im_ref) = refs[nin + 2:]

        # ---- fused pre-weighted scalar losses into one lane-dense row ----
        lane = jax.lax.broadcasted_iota(jnp.int32, loss_ref.shape, 1)
        out = jnp.zeros(loss_ref.shape, jnp.float32)
        total = jnp.float32(0.0)
        pos = 0
        for idx, ((_, fn), c) in enumerate(zip(sections, counts)):
            vals = [in_refs[pos + k][...].astype(jnp.float32) for k in range(c)]
            pos += c
            s = fn(*vals)                      # scalar, already weighted
            total = total + s
            out = out + jnp.where(lane == idx, s, jnp.float32(0.0))
        out = out + jnp.where(lane == nsec, total, jnp.float32(0.0))
        loss_ref[...] = out

        # ---- weak-perspective projection + rasterization prep (T, V) ----
        cam_v = cam_ref[...].astype(jnp.float32)           # (T, 3)
        s = cam_v[:, 0:1]
        tx = cam_v[:, 1:2]
        ty = cam_v[:, 2:3]
        scale = 112.0 * s                                   # (T, 1)
        offx = 112.0 * (s * tx + 1.0)
        offy = 112.0 * (s * ty + 1.0)
        xs = verts_ref[0].astype(jnp.float32) * scale + offx
        ys = verts_ref[1].astype(jnp.float32) * scale + offy
        zs = verts_ref[2].astype(jnp.float32)
        xs_ref[...] = xs
        ys_ref[...] = ys
        zs_ref[...] = zs
        xi = xs.astype(jnp.int32)                           # trunc-toward-zero,
        yi = ys.astype(jnp.int32)                           # matches torch .to(int)
        vm = (xi >= 0) & (xi < 224) & (yi >= 0) & (yi < 224)
        sx_ref[...] = jnp.where(vm, xi, 0)
        sy_ref[...] = jnp.where(vm, yi, 0)
        sv_ref[...] = jnp.where(vm, jnp.minimum(1.0, zs), jnp.inf)
        in_img = (xi >= 0) & (xi < 223) & (yi >= 0) & (yi < 223)
        xg_ref[...] = jnp.where(in_img, xi, 0)
        yg_ref[...] = jnp.where(in_img, yi, 0)
        x1g_ref[...] = jnp.where(in_img, xi + 1, 0)
        y1g_ref[...] = jnp.where(in_img, yi + 1, 0)
        im_ref[...] = jnp.where(in_img, jnp.float32(1.0), jnp.float32(0.0))

    f32 = jnp.float32
    i32 = jnp.int32
    out_shapes = (
        jax.ShapeDtypeStruct((1, 128), f32),     # losses
        jax.ShapeDtypeStruct((t, v), f32),       # xs
        jax.ShapeDtypeStruct((t, v), f32),       # ys
        jax.ShapeDtypeStruct((t, v), f32),       # zs
        jax.ShapeDtypeStruct((t, v), i32),       # scatter x
        jax.ShapeDtypeStruct((t, v), i32),       # scatter y
        jax.ShapeDtypeStruct((t, v), f32),       # scatter value
        jax.ShapeDtypeStruct((t, v), i32),       # gather x
        jax.ShapeDtypeStruct((t, v), i32),       # gather y
        jax.ShapeDtypeStruct((t, v), i32),       # gather x+1
        jax.ShapeDtypeStruct((t, v), i32),       # gather y+1
        jax.ShapeDtypeStruct((t, v), f32),       # in-image mask
    )
    outs = pl.pallas_call(
        kernel,
        out_shape=out_shapes,
        compiler_params=pltpu.CompilerParams(
            vmem_limit_bytes=48 * 1024 * 1024),
    )(*arrays, verts_cvx, cam)
    return outs[0], outs[1:]


# ---------------------------------------------------------------------------
# Jitted tail of the optical-flow loss: depth scatter-min, 4-neighbour depth
# test, flow gathers, pair losses.  One XLA dispatch; all elementwise work
# fuses around the scatter/gathers.
# Faithfully reproduces the reference, including (pred-gt)^4 flow term, the
# swapped flow components, and NaN on an empty valid set.
# ---------------------------------------------------------------------------
@jax.jit
def _flow_tail(xs, ys, zs, sx, sy, sv, xg, yg, x1g, y1g, inimg, flow, weight):
    t, v = xs.shape
    f_idx = jnp.broadcast_to(jnp.arange(t)[:, None], (t, v))
    depth = jnp.ones((t, 224, 224), jnp.float32).at[f_idx, sy, sx].min(sv)

    in_img = inimg > 0.5
    d1 = depth[f_idx, yg, xg]
    d2 = depth[f_idx, yg, x1g]
    d3 = depth[f_idx, y1g, xg]
    d4 = depth[f_idx, y1g, x1g]
    mask = (in_img & (d1 + 0.02 >= zs) & (d2 + 0.02 >= zs)
            & (d3 + 0.02 >= zs) & (d4 + 0.02 >= zs))                    # (T,V)

    combined = mask[1:] & mask[:-1]                                     # (T-1,V)
    px, py = xs[:-1], ys[:-1]
    valid = (px >= 0) & (px < 224) & (py >= 0) & (py < 224) & combined
    dxs = xs[1:] - px
    dys = ys[1:] - py
    p_idx = jnp.broadcast_to(jnp.arange(t - 1)[:, None], (t - 1, v))
    pxi = jnp.where(valid, xg[:-1], 0)       # == int coords where valid
    pyi = jnp.where(valid, yg[:-1], 0)
    f0 = flow[p_idx, 0, pyi, pxi]
    f1 = flow[p_idx, 1, pyi, pxi]
    d0 = (dys - f0) ** 2                     # reference swaps flow components
    db1 = (dxs - f1) ** 2
    contrib = jnp.where(valid, d0 ** 2 + db1 ** 2, 0.0)
    cnt = jnp.sum(valid.astype(jnp.float32), axis=1)
    # NOTE: like the reference, an empty valid set yields 0/0 (NaN).
    pair_losses = jnp.sum(contrib, axis=1) / (2.0 * cnt)
    seq_loss = jnp.mean(pair_losses)
    return jnp.mean(jnp.stack([seq_loss])) * weight


# ---------------------------------------------------------------------------
# Discriminator helper losses (dependencies of the reference; not used in
# forward, provided for completeness).
# ---------------------------------------------------------------------------
def batch_encoder_disc_l2_loss(disc_value):
    return jnp.sum((disc_value - 1.0) ** 2) / disc_value.shape[0]


def batch_adv_disc_l2_loss(real_disc_value, fake_disc_value):
    ka, kb = real_disc_value.shape[0], fake_disc_value.shape[0]
    lb = jnp.sum(fake_disc_value ** 2) / kb
    la = jnp.sum((real_disc_value - 1.0) ** 2) / ka
    return la, lb, la + lb


# ---------------------------------------------------------------------------
# VIBELoss.forward
# ---------------------------------------------------------------------------
def vibe_loss_forward(generator_outputs, data_2d, data_3d,
                      e_loss_weight=60.0, e_3d_loss_weight=30.0,
                      e_pose_loss_weight=1.0, e_shape_loss_weight=0.001,
                      optical_flow_loss_weight=0.001):
    reduce_ = lambda x: x.reshape((x.shape[0] * x.shape[1],) + x.shape[2:])

    if data_2d:
        sample_2d_count = data_2d['kp_2d'].shape[0]
        real_2d = jnp.concatenate((data_2d['kp_2d'], data_3d['kp_2d']), 0)
        data_flow = jnp.concatenate((data_2d['flow'], data_3d['flow']), 0)
    else:
        sample_2d_count = 0
        real_2d = data_3d['kp_2d']
        data_flow = data_3d['flow']

    real_2d = reduce_(real_2d)
    real_3d = reduce_(data_3d['kp_3d'])
    data_3d_theta = reduce_(data_3d['theta'])
    # NOTE: boolean masking needs concrete (host) masks; matches the reference
    # dynamic-shape selection semantics, but keeps this function un-jittable.
    w_3d = np.asarray(data_3d['w_3d']).astype(bool).reshape(-1)
    w_smpl = np.asarray(data_3d['w_smpl']).astype(bool).reshape(-1)

    preds = generator_outputs[-1]
    pred_j3d = reduce_(preds['kp_3d'][sample_2d_count:])
    pred_theta = reduce_(preds['theta'][sample_2d_count:])
    pred_j2d = reduce_(preds['kp_2d'])

    pred_theta = pred_theta[w_smpl]
    pred_j3d = pred_j3d[w_3d]
    data_3d_theta = data_3d_theta[w_smpl]
    real_3d = real_3d[w_3d]

    real_shape, pred_shape = data_3d_theta[:, 75:], pred_theta[:, 75:]
    real_pose, pred_pose = data_3d_theta[:, 3:75], pred_theta[:, 3:75]

    has_3d = real_3d.shape[0] > 0
    has_smpl = pred_theta.shape[0] > 0

    # Build the sections of the single fused call (weights baked in).
    sections = [_kp2d_section(pred_j2d, real_2d, 1.0, 1.0, e_loss_weight)]
    labels = ['loss_kp_2d']
    if has_3d:
        sections.append(_kp3d_section(pred_j3d, real_3d, e_3d_loss_weight))
        labels.append('loss_kp_3d')
    if has_smpl:
        sections.append(_pose_section(pred_pose, real_pose, e_pose_loss_weight))
        labels.append('loss_pose')
        sections.append(_betas_section(pred_shape, real_shape, e_shape_loss_weight))
        labels.append('loss_shape')
    nsec = len(sections)
    lane_of = {lbl: i for i, lbl in enumerate(labels)}

    # Optical-flow inputs: only the LAST batch element contributes (the
    # reference's indentation bug is preserved).
    seq_len = data_flow.shape[1]
    b = data_flow.shape[0] - 1
    verts_cvx = jnp.transpose(preds['verts'][b], (2, 0, 1))   # (3, T, V)
    cam_b = preds['theta'][b, :, :3]                          # (T, 3)

    row, planes = _fused_forward_call(sections, verts_cvx, cam_b)

    optical = _flow_tail(*planes, data_flow[b, :seq_len - 1],
                         jnp.float32(optical_flow_loss_weight))

    loss_dict = {'loss_kp_2d': row[0, lane_of['loss_kp_2d']],
                 'loss_kp_3d': (row[0, lane_of['loss_kp_3d']] if has_3d
                                else jnp.float32(0.0))}
    if has_smpl:
        loss_dict['loss_shape'] = row[0, lane_of['loss_shape']]
        loss_dict['loss_pose'] = row[0, lane_of['loss_pose']]
    loss_dict['optical_flow'] = optical

    # lane `nsec` already holds the sum of the weighted scalar losses.
    gen_loss = row[0, nsec] + optical
    return gen_loss, loss_dict


# ---------------------------------------------------------------------------
# Driver
# ---------------------------------------------------------------------------
if __name__ == "__main__":
    key = jax.random.PRNGKey(0)
    ks = jax.random.split(key, 14)
    N, T, J, V = 2, 3, 49, 6890

    def make_theta(k0, k1, k2, k3):
        cam = jnp.concatenate([0.8 + 0.1 * jax.random.normal(k0, (N, T, 1)),
                               0.05 * jax.random.normal(k1, (N, T, 2))], axis=-1)
        pose = 0.2 * jax.random.normal(k2, (N, T, 72))
        betas = 0.1 * jax.random.normal(k3, (N, T, 10))
        return jnp.concatenate([cam, pose, betas], axis=-1).astype(jnp.float32)

    preds = {
        'kp_2d': (0.1 * jax.random.normal(ks[0], (N, T, J, 2))).astype(jnp.float32),
        'kp_3d': (0.1 * jax.random.normal(ks[1], (N, T, J, 3))).astype(jnp.float32),
        'theta': make_theta(ks[2], ks[3], ks[4], ks[5]),
        'verts': (0.3 * jax.random.normal(ks[6], (N, T, V, 3))).astype(jnp.float32),
    }
    generator_outputs = [preds]

    gt_kp2d = jnp.concatenate(
        [0.1 * jax.random.normal(ks[7], (N, T, J, 2)),
         jax.random.uniform(ks[8], (N, T, J, 1))], axis=-1).astype(jnp.float32)

    data_3d = {
        'kp_2d': gt_kp2d,
        'kp_3d': (0.1 * jax.random.normal(ks[9], (N, T, J, 3))).astype(jnp.float32),
        'theta': make_theta(ks[10], ks[11], ks[12], ks[13]),
        'w_3d': jnp.ones((N, T), jnp.bool_),
        'w_smpl': jnp.ones((N, T), jnp.bool_),
        'flow': (0.5 * jax.random.normal(key, (N, T, 2, 224, 224))).astype(jnp.float32),
    }
    data_2d = None  # exercises the `else` branch of the reference forward

    gen_loss, loss_dict = vibe_loss_forward(generator_outputs, data_2d, data_3d)
    jax.block_until_ready(gen_loss)
    for val in loss_dict.values():
        jax.block_until_ready(val)
    print("KERNEL_OK")
</pallas_src>

<mosaic_0001>
module attributes {stable_mosaic.version = 11 : i64} {
  func.func @kernel(%arg0: memref<2x6x49xf32, #tpu.memory_space<vmem>>, %arg1: memref<3x6x49xf32, #tpu.memory_space<vmem>>, %arg2: memref<14x18xf32, #tpu.memory_space<vmem>>, %arg3: memref<14x18xf32, #tpu.memory_space<vmem>>, %arg4: memref<3x2x128xf32, #tpu.memory_space<vmem>>, %arg5: memref<3x2x128xf32, #tpu.memory_space<vmem>>, %arg6: memref<6x10xf32, #tpu.memory_space<vmem>>, %arg7: memref<6x10xf32, #tpu.memory_space<vmem>>, %arg8: memref<3x3x6890xf32, #tpu.memory_space<vmem>>, %arg9: memref<3x3xf32, #tpu.memory_space<vmem>>, %arg10: memref<1x128xf32, #tpu.memory_space<vmem>>, %arg11: memref<3x6890xf32, #tpu.memory_space<vmem>>, %arg12: memref<3x6890xf32, #tpu.memory_space<vmem>>, %arg13: memref<3x6890xf32, #tpu.memory_space<vmem>>, %arg14: memref<3x6890xi32, #tpu.memory_space<vmem>>, %arg15: memref<3x6890xi32, #tpu.memory_space<vmem>>, %arg16: memref<3x6890xf32, #tpu.memory_space<vmem>>, %arg17: memref<3x6890xi32, #tpu.memory_space<vmem>>, %arg18: memref<3x6890xi32, #tpu.memory_space<vmem>>, %arg19: memref<3x6890xi32, #tpu.memory_space<vmem>>, %arg20: memref<3x6890xi32, #tpu.memory_space<vmem>>, %arg21: memref<3x6890xf32, #tpu.memory_space<vmem>>) attributes {dimension_semantics = [], scalar_prefetch = 0 : i64, scratch_operands = 0 : i64, tpu.core_type = #tpu.core_type<tc>} {
    %0 = tpu.iota {dimensions = array<i32: 1>} : vector<1x128xi32>
    %cst = arith.constant 0.000000e+00 : f32
    %1 = vector.broadcast %cst : f32 to vector<1x128xf32>
    %c0 = arith.constant 0 : index
    %c0_0 = arith.constant 0 : index
    %c0_1 = arith.constant 0 : index
    %2 = vector.load %arg0[%c0, %c0_0, %c0_1] : memref<2x6x49xf32, #tpu.memory_space<vmem>>, vector<2x6x49xf32>
    %c0_2 = arith.constant 0 : index
    %c0_3 = arith.constant 0 : index
    %c0_4 = arith.constant 0 : index
    %3 = vector.load %arg1[%c0_2, %c0_3, %c0_4] : memref<3x6x49xf32, #tpu.memory_space<vmem>>, vector<3x6x49xf32>
    %4 = vector.extract_strided_slice %2 {offsets = [0, 0, 0], sizes = [1, 6, 49], strides = [1, 1, 1]} : vector<2x6x49xf32> to vector<1x6x49xf32>
    %5 = vector.shape_cast %4 : vector<1x6x49xf32> to vector<6x49xf32>
    %6 = vector.extract_strided_slice %2 {offsets = [1, 0, 0], sizes = [1, 6, 49], strides = [1, 1, 1]} : vector<2x6x49xf32> to vector<1x6x49xf32>
    %7 = vector.shape_cast %6 : vector<1x6x49xf32> to vector<6x49xf32>
    %8 = vector.extract_strided_slice %3 {offsets = [0, 0, 0], sizes = [1, 6, 49], strides = [1, 1, 1]} : vector<3x6x49xf32> to vector<1x6x49xf32>
    %9 = vector.shape_cast %8 : vector<1x6x49xf32> to vector<6x49xf32>
    %10 = vector.extract_strided_slice %3 {offsets = [1, 0, 0], sizes = [1, 6, 49], strides = [1, 1, 1]} : vector<3x6x49xf32> to vector<1x6x49xf32>
    %11 = vector.shape_cast %10 : vector<1x6x49xf32> to vector<6x49xf32>
    %12 = vector.extract_strided_slice %3 {offsets = [2, 0, 0], sizes = [1, 6, 49], strides = [1, 1, 1]} : vector<3x6x49xf32> to vector<1x6x49xf32>
    %13 = vector.shape_cast %12 : vector<1x6x49xf32> to vector<6x49xf32>
    %14 = tpu.iota {dimensions = array<i32: 1>} : vector<6x49xi32>
    %c25_i32 = arith.constant 25 : i32
    %15 = vector.broadcast %c25_i32 : i32 to vector<6x49xi32>
    %16 = arith.cmpi slt, %14, %15 : vector<6x49xi32>
    %cst_5 = arith.constant 1.000000e+00 : f32
    %cst_6 = arith.constant 1.000000e+00 : f32
    %17 = vector.broadcast %cst_5 : f32 to vector<6x49xf32>
    %18 = vector.broadcast %cst_6 : f32 to vector<6x49xf32>
    %19 = arith.select %16, %17, %18 : vector<6x49xi1>, vector<6x49xf32>
    %20 = arith.mulf %13, %19 : vector<6x49xf32>
    %21 = arith.subf %5, %9 : vector<6x49xf32>
    %22 = arith.subf %7, %11 : vector<6x49xf32>
    %23 = arith.mulf %21, %21 : vector<6x49xf32>
    %24 = arith.mulf %22, %22 : vector<6x49xf32>
    %25 = arith.addf %23, %24 : vector<6x49xf32>
    %26 = arith.mulf %20, %25 : vector<6x49xf32>
    %27 = vector.shape_cast %26 : vector<6x49xf32> to vector<1x6x49xf32>
    %cst_7 = arith.constant dense<0.000000e+00> : vector<1xf32>
    %28 = vector.multi_reduction <add>, %27, %cst_7 [1, 2] : vector<1x6x49xf32> to vector<1xf32>
    %29 = vector.shape_cast %28 : vector<1xf32> to vector<1x1x1xf32>
    %30 = vector.extract %29[0, 0, 0] : f32 from vector<1x1x1xf32>
    %cst_8 = arith.constant 0.10204082 : f32
    %31 = arith.mulf %30, %cst_8 : f32
    %cst_9 = arith.constant 0.000000e+00 : f32
    %32 = arith.addf %cst_9, %31 : f32
    %c0_i32 = arith.constant 0 : i32
    %33 = vector.broadcast %c0_i32 : i32 to vector<1x128xi32>
    %34 = arith.cmpi eq, %0, %33 : vector<1x128xi32>
    %cst_10 = arith.constant 0.000000e+00 : f32
    %35 = vector.broadcast %31 : f32 to vector<1x128xf32>
    %36 = vector.broadcast %cst_10 : f32 to vector<1x128xf32>
    %37 = arith.select %34, %35, %36 : vector<1x128xi1>, vector<1x128xf32>
    %38 = arith.addf %1, %37 : vector<1x128xf32>
    %c0_11 = arith.constant 0 : index
    %c0_12 = arith.constant 0 : index
    %39 = vector.load %arg2[%c0_11, %c0_12] : memref<14x18xf32, #tpu.memory_space<vmem>>, vector<14x18xf32>
    %c0_13 = arith.constant 0 : index
    %c0_14 = arith.constant 0 : index
    %40 = vector.load %arg3[%c0_13, %c0_14] : memref<14x18xf32, #tpu.memory_space<vmem>>, vector<14x18xf32>
    %41 = vector.extract_strided_slice %39 {offsets = [2, 0], sizes = [1, 18], strides = [1, 1]} : vector<14x18xf32> to vector<1x18xf32>
    %42 = vector.extract_strided_slice %39 {offsets = [3, 0], sizes = [1, 18], strides = [1, 1]} : vector<14x18xf32> to vector<1x18xf32>
    %43 = arith.addf %41, %42 : vector<1x18xf32>
    %cst_15 = arith.constant 5.000000e-01 : f32
    %44 = vector.broadcast %cst_15 : f32 to vector<1x18xf32>
    %45 = arith.mulf %43, %44 : vector<1x18xf32>
    %46 = vector.extract_strided_slice %40 {offsets = [2, 0], sizes = [1, 18], strides = [1, 1]} : vector<14x18xf32> to vector<1x18xf32>
    %47 = vector.extract_strided_slice %40 {offsets = [3, 0], sizes = [1, 18], strides = [1, 1]} : vector<14x18xf32> to vector<1x18xf32>
    %48 = arith.addf %46, %47 : vector<1x18xf32>
    %cst_16 = arith.constant 5.000000e-01 : f32
    %49 = vector.broadcast %cst_16 : f32 to vector<1x18xf32>
    %50 = arith.mulf %48, %49 : vector<1x18xf32>
    %51 = vector.broadcast %45 : vector<1x18xf32> to vector<14x18xf32>
    %52 = arith.subf %39, %51 : vector<14x18xf32>
    %53 = vector.broadcast %50 : vector<1x18xf32> to vector<14x18xf32>
    %54 = arith.subf %40, %53 : vector<14x18xf32>
    %55 = arith.subf %52, %54 : vector<14x18xf32>
    %56 = arith.mulf %55, %55 : vector<14x18xf32>
    %57 = vector.shape_cast %56 : vector<14x18xf32> to vector<1x14x18xf32>
    %cst_17 = arith.constant dense<0.000000e+00> : vector<1xf32>
    %58 = vector.multi_reduction <add>, %57, %cst_17 [1, 2] : vector<1x14x18xf32> to vector<1xf32>
    %59 = vector.shape_cast %58 : vector<1xf32> to vector<1x1x1xf32>
    %60 = vector.extract %59[0, 0, 0] : f32 from vector<1x1x1xf32>
    %cst_18 = arith.constant 0.119047619 : f32
    %61 = arith.mulf %60, %cst_18 : f32
    %62 = arith.addf %32, %61 : f32
    %c1_i32 = arith.constant 1 : i32
    %63 = vector.broadcast %c1_i32 : i32 to vector<1x128xi32>
    %64 = arith.cmpi eq, %0, %63 : vector<1x128xi32>
    %cst_19 = arith.constant 0.000000e+00 : f32
    %65 = vector.broadcast %61 : f32 to vector<1x128xf32>
    %66 = vector.broadcast %cst_19 : f32 to vector<1x128xf32>
    %67 = arith.select %64, %65, %66 : vector<1x128xi1>, vector<1x128xf32>
    %68 = arith.addf %38, %67 : vector<1x128xf32>
    %c0_20 = arith.constant 0 : index
    %c0_21 = arith.constant 0 : index
    %c0_22 = arith.constant 0 : index
    %69 = vector.load %arg4[%c0_20, %c0_21, %c0_22] : memref<3x2x128xf32, #tpu.memory_space<vmem>>, vector<3x2x128xf32>
    %c0_23 = arith.constant 0 : index
    %c0_24 = arith.constant 0 : index
    %c0_25 = arith.constant 0 : index
    %70 = vector.load %arg5[%c0_23, %c0_24, %c0_25] : memref<3x2x128xf32, #tpu.memory_space<vmem>>, vector<3x2x128xf32>
    %71 = vector.extract_strided_slice %69 {offsets = [0, 0, 0], sizes = [1, 2, 128], strides = [1, 1, 1]} : vector<3x2x128xf32> to vector<1x2x128xf32>
    %72 = vector.shape_cast %71 : vector<1x2x128xf32> to vector<2x128xf32>
    %73 = vector.extract_strided_slice %69 {offsets = [1, 0, 0], sizes = [1, 2, 128], strides = [1, 1, 1]} : vector<3x2x128xf32> to vector<1x2x128xf32>
    %74 = vector.shape_cast %73 : vector<1x2x128xf32> to vector<2x128xf32>
    %75 = vector.extract_strided_slice %69 {offsets = [2, 0, 0], sizes = [1, 2, 128], strides = [1, 1, 1]} : vector<3x2x128xf32> to vector<1x2x128xf32>
    %76 = vector.shape_cast %75 : vector<1x2x128xf32> to vector<2x128xf32>
    %cst_26 = arith.constant 9.99999993E-9 : f32
    %77 = vector.broadcast %cst_26 : f32 to vector<2x128xf32>
    %78 = arith.addf %72, %77 : vector<2x128xf32>
    %cst_27 = arith.constant 9.99999993E-9 : f32
    %79 = vector.broadcast %cst_27 : f32 to vector<2x128xf32>
    %80 = arith.addf %74, %79 : vector<2x128xf32>
    %cst_28 = arith.constant 9.99999993E-9 : f32
    %81 = vector.broadcast %cst_28 : f32 to vector<2x128xf32>
    %82 = arith.addf %76, %81 : vector<2x128xf32>
    %83 = arith.mulf %78, %78 : vector<2x128xf32>
    %84 = arith.mulf %80, %80 : vector<2x128xf32>
    %85 = arith.addf %83, %84 : vector<2x128xf32>
    %86 = arith.mulf %82, %82 : vector<2x128xf32>
    %87 = arith.addf %85, %86 : vector<2x128xf32>
    %88 = math.rsqrt %87 : vector<2x128xf32>
    %89 = arith.mulf %72, %88 : vector<2x128xf32>
    %90 = arith.mulf %74, %88 : vector<2x128xf32>
    %91 = arith.mulf %76, %88 : vector<2x128xf32>
    %92 = arith.mulf %87, %88 : vector<2x128xf32>
    %cst_29 = arith.constant 5.000000e-01 : f32
    %93 = vector.broadcast %cst_29 : f32 to vector<2x128xf32>
    %94 = arith.mulf %93, %92 : vector<2x128xf32>
    %95 = math.cos %94 : vector<2x128xf32>
    %96 = math.sin %94 : vector<2x128xf32>
    %97 = arith.mulf %96, %89 : vector<2x128xf32>
    %98 = arith.mulf %96, %90 : vector<2x128xf32>
    %99 = arith.mulf %96, %91 : vector<2x128xf32>
    %100 = arith.mulf %95, %95 : vector<2x128xf32>
    %101 = arith.mulf %97, %97 : vector<2x128xf32>
    %102 = arith.addf %100, %101 : vector<2x128xf32>
    %103 = arith.mulf %98, %98 : vector<2x128xf32>
    %104 = arith.addf %102, %103 : vector<2x128xf32>
    %105 = arith.mulf %99, %99 : vector<2x128xf32>
    %106 = arith.addf %104, %105 : vector<2x128xf32>
    %107 = math.rsqrt %106 : vector<2x128xf32>
    %108 = arith.mulf %95, %107 : vector<2x128xf32>
    %109 = arith.mulf %97, %107 : vector<2x128xf32>
    %110 = arith.mulf %98, %107 : vector<2x128xf32>
    %111 = arith.mulf %99, %107 : vector<2x128xf32>
    %112 = arith.mulf %108, %108 : vector<2x128xf32>
    %113 = arith.mulf %109, %109 : vector<2x128xf32>
    %114 = arith.mulf %110, %110 : vector<2x128xf32>
    %115 = arith.mulf %111, %111 : vector<2x128xf32>
    %116 = arith.mulf %108, %109 : vector<2x128xf32>
    %117 = arith.mulf %108, %110 : vector<2x128xf32>
    %118 = arith.mulf %108, %111 : vector<2x128xf32>
    %119 = arith.mulf %109, %110 : vector<2x128xf32>
    %120 = arith.mulf %109, %111 : vector<2x128xf32>
    %121 = arith.mulf %110, %111 : vector<2x128xf32>
    %122 = vector.extract_strided_slice %70 {offsets = [0, 0, 0], sizes = [1, 2, 128], strides = [1, 1, 1]} : vector<3x2x128xf32> to vector<1x2x128xf32>
    %123 = vector.shape_cast %122 : vector<1x2x128xf32> to vector<2x128xf32>
    %124 = vector.extract_strided_slice %70 {offsets = [1, 0, 0], sizes = [1, 2, 128], strides = [1, 1, 1]} : vector<3x2x128xf32> to vector<1x2x128xf32>
    %125 = vector.shape_cast %124 : vector<1x2x128xf32> to vector<2x128xf32>
    %126 = vector.extract_strided_slice %70 {offsets = [2, 0, 0], sizes = [1, 2, 128], strides = [1, 1, 1]} : vector<3x2x128xf32> to vector<1x2x128xf32>
    %127 = vector.shape_cast %126 : vector<1x2x128xf32> to vector<2x128xf32>
    %cst_30 = arith.constant 9.99999993E-9 : f32
    %128 = vector.broadcast %cst_30 : f32 to vector<2x128xf32>
    %129 = arith.addf %123, %128 : vector<2x128xf32>
    %cst_31 = arith.constant 9.99999993E-9 : f32
    %130 = vector.broadcast %cst_31 : f32 to vector<2x128xf32>
    %131 = arith.addf %125, %130 : vector<2x128xf32>
    %cst_32 = arith.constant 9.99999993E-9 : f32
    %132 = vector.broadcast %cst_32 : f32 to vector<2x128xf32>
    %133 = arith.addf %127, %132 : vector<2x128xf32>
    %134 = arith.mulf %129, %129 : vector<2x128xf32>
    %135 = arith.mulf %131, %131 : vector<2x128xf32>
    %136 = arith.addf %134, %135 : vector<2x128xf32>
    %137 = arith.mulf %133, %133 : vector<2x128xf32>
    %138 = arith.addf %136, %137 : vector<2x128xf32>
    %139 = math.rsqrt %138 : vector<2x128xf32>
    %140 = arith.mulf %123, %139 : vector<2x128xf32>
    %141 = arith.mulf %125, %139 : vector<2x128xf32>
    %142 = arith.mulf %127, %139 : vector<2x128xf32>
    %143 = arith.mulf %138, %139 : vector<2x128xf32>
    %cst_33 = arith.constant 5.000000e-01 : f32
    %144 = vector.broadcast %cst_33 : f32 to vector<2x128xf32>
    %145 = arith.mulf %144, %143 : vector<2x128xf32>
    %146 = math.cos %145 : vector<2x128xf32>
    %147 = math.sin %145 : vector<2x128xf32>
    %148 = arith.mulf %147, %140 : vector<2x128xf32>
    %149 = arith.mulf %147, %141 : vector<2x128xf32>
    %150 = arith.mulf %147, %142 : vector<2x128xf32>
    %151 = arith.mulf %146, %146 : vector<2x128xf32>
    %152 = arith.mulf %148, %148 : vector<2x128xf32>
    %153 = arith.addf %151, %152 : vector<2x128xf32>
    %154 = arith.mulf %149, %149 : vector<2x128xf32>
    %155 = arith.addf %153, %154 : vector<2x128xf32>
    %156 = arith.mulf %150, %150 : vector<2x128xf32>
    %157 = arith.addf %155, %156 : vector<2x128xf32>
    %158 = math.rsqrt %157 : vector<2x128xf32>
    %159 = arith.mulf %146, %158 : vector<2x128xf32>
    %160 = arith.mulf %148, %158 : vector<2x128xf32>
    %161 = arith.mulf %149, %158 : vector<2x128xf32>
    %162 = arith.mulf %150, %158 : vector<2x128xf32>
    %163 = arith.mulf %159, %159 : vector<2x128xf32>
    %164 = arith.mulf %160, %160 : vector<2x128xf32>
    %165 = arith.mulf %161, %161 : vector<2x128xf32>
    %166 = arith.mulf %162, %162 : vector<2x128xf32>
    %167 = arith.mulf %159, %160 : vector<2x128xf32>
    %168 = arith.mulf %159, %161 : vector<2x128xf32>
    %169 = arith.mulf %159, %162 : vector<2x128xf32>
    %170 = arith.mulf %160, %161 : vector<2x128xf32>
    %171 = arith.mulf %160, %162 : vector<2x128xf32>
    %172 = arith.mulf %161, %162 : vector<2x128xf32>
    %173 = arith.addf %112, %113 : vector<2x128xf32>
    %174 = arith.subf %173, %114 : vector<2x128xf32>
    %175 = arith.subf %174, %115 : vector<2x128xf32>
    %176 = arith.addf %163, %164 : vector<2x128xf32>
    %177 = arith.subf %176, %165 : vector<2x128xf32>
    %178 = arith.subf %177, %166 : vector<2x128xf32>
    %179 = arith.subf %175, %178 : vector<2x128xf32>
    %180 = arith.mulf %179, %179 : vector<2x128xf32>
    %cst_34 = arith.constant 2.000000e+00 : f32
    %181 = vector.broadcast %cst_34 : f32 to vector<2x128xf32>
    %182 = arith.mulf %181, %119 : vector<2x128xf32>
    %cst_35 = arith.constant 2.000000e+00 : f32
    %183 = vector.broadcast %cst_35 : f32 to vector<2x128xf32>
    %184 = arith.mulf %183, %118 : vector<2x128xf32>
    %185 = arith.subf %182, %184 : vector<2x128xf32>
    %cst_36 = arith.constant 2.000000e+00 : f32
    %186 = vector.broadcast %cst_36 : f32 to vector<2x128xf32>
    %187 = arith.mulf %186, %170 : vector<2x128xf32>
    %cst_37 = arith.constant 2.000000e+00 : f32
    %188 = vector.broadcast %cst_37 : f32 to vector<2x128xf32>
    %189 = arith.mulf %188, %169 : vector<2x128xf32>
    %190 = arith.subf %187, %189 : vector<2x128xf32>
    %191 = arith.subf %185, %190 : vector<2x128xf32>
    %192 = arith.mulf %191, %191 : vector<2x128xf32>
    %193 = arith.addf %180, %192 : vector<2x128xf32>
    %cst_38 = arith.constant 2.000000e+00 : f32
    %194 = vector.broadcast %cst_38 : f32 to vector<2x128xf32>
    %195 = arith.mulf %194, %117 : vector<2x128xf32>
    %cst_39 = arith.constant 2.000000e+00 : f32
    %196 = vector.broadcast %cst_39 : f32 to vector<2x128xf32>
    %197 = arith.mulf %196, %120 : vector<2x128xf32>
    %198 = arith.addf %195, %197 : vector<2x128xf32>
    %cst_40 = arith.constant 2.000000e+00 : f32
    %199 = vector.broadcast %cst_40 : f32 to vector<2x128xf32>
    %200 = arith.mulf %199, %168 : vector<2x128xf32>
    %cst_41 = arith.constant 2.000000e+00 : f32
    %201 = vector.broadcast %cst_41 : f32 to vector<2x128xf32>
    %202 = arith.mulf %201, %171 : vector<2x128xf32>
    %203 = arith.addf %200, %202 : vector<2x128xf32>
    %204 = arith.subf %198, %203 : vector<2x128xf32>
    %205 = arith.mulf %204, %204 : vector<2x128xf32>
    %206 = arith.addf %193, %205 : vector<2x128xf32>
    %cst_42 = arith.constant 2.000000e+00 : f32
    %207 = vector.broadcast %cst_42 : f32 to vector<2x128xf32>
    %208 = arith.mulf %207, %118 : vector<2x128xf32>
    %cst_43 = arith.constant 2.000000e+00 : f32
    %209 = vector.broadcast %cst_43 : f32 to vector<2x128xf32>
    %210 = arith.mulf %209, %119 : vector<2x128xf32>
    %211 = arith.addf %208, %210 : vector<2x128xf32>
    %cst_44 = arith.constant 2.000000e+00 : f32
    %212 = vector.broadcast %cst_44 : f32 to vector<2x128xf32>
    %213 = arith.mulf %212, %169 : vector<2x128xf32>
    %cst_45 = arith.constant 2.000000e+00 : f32
    %214 = vector.broadcast %cst_45 : f32 to vector<2x128xf32>
    %215 = arith.mulf %214, %170 : vector<2x128xf32>
    %216 = arith.addf %213, %215 : vector<2x128xf32>
    %217 = arith.subf %211, %216 : vector<2x128xf32>
    %218 = arith.mulf %217, %217 : vector<2x128xf32>
    %219 = arith.addf %206, %218 : vector<2x128xf32>
    %220 = arith.subf %112, %113 : vector<2x128xf32>
    %221 = arith.addf %220, %114 : vector<2x128xf32>
    %222 = arith.subf %221, %115 : vector<2x128xf32>
    %223 = arith.subf %163, %164 : vector<2x128xf32>
    %224 = arith.addf %223, %165 : vector<2x128xf32>
    %225 = arith.subf %224, %166 : vector<2x128xf32>
    %226 = arith.subf %222, %225 : vector<2x128xf32>
    %227 = arith.mulf %226, %226 : vector<2x128xf32>
    %228 = arith.addf %219, %227 : vector<2x128xf32>
    %cst_46 = arith.constant 2.000000e+00 : f32
    %229 = vector.broadcast %cst_46 : f32 to vector<2x128xf32>
    %230 = arith.mulf %229, %121 : vector<2x128xf32>
    %cst_47 = arith.constant 2.000000e+00 : f32
    %231 = vector.broadcast %cst_47 : f32 to vector<2x128xf32>
    %232 = arith.mulf %231, %116 : vector<2x128xf32>
    %233 = arith.subf %230, %232 : vector<2x128xf32>
    %cst_48 = arith.constant 2.000000e+00 : f32
    %234 = vector.broadcast %cst_48 : f32 to vector<2x128xf32>
    %235 = arith.mulf %234, %172 : vector<2x128xf32>
    %cst_49 = arith.constant 2.000000e+00 : f32
    %236 = vector.broadcast %cst_49 : f32 to vector<2x128xf32>
    %237 = arith.mulf %236, %167 : vector<2x128xf32>
    %238 = arith.subf %235, %237 : vector<2x128xf32>
    %239 = arith.subf %233, %238 : vector<2x128xf32>
    %240 = arith.mulf %239, %239 : vector<2x128xf32>
    %241 = arith.addf %228, %240 : vector<2x128xf32>
    %cst_50 = arith.constant 2.000000e+00 : f32
    %242 = vector.broadcast %cst_50 : f32 to vector<2x128xf32>
    %243 = arith.mulf %242, %120 : vector<2x128xf32>
    %cst_51 = arith.constant 2.000000e+00 : f32
    %244 = vector.broadcast %cst_51 : f32 to vector<2x128xf32>
    %245 = arith.mulf %244, %117 : vector<2x128xf32>
    %246 = arith.subf %243, %245 : vector<2x128xf32>
    %cst_52 = arith.constant 2.000000e+00 : f32
    %247 = vector.broadcast %cst_52 : f32 to vector<2x128xf32>
    %248 = arith.mulf %247, %171 : vector<2x128xf32>
    %cst_53 = arith.constant 2.000000e+00 : f32
    %249 = vector.broadcast %cst_53 : f32 to vector<2x128xf32>
    %250 = arith.mulf %249, %168 : vector<2x128xf32>
    %251 = arith.subf %248, %250 : vector<2x128xf32>
    %252 = arith.subf %246, %251 : vector<2x128xf32>
    %253 = arith.mulf %252, %252 : vector<2x128xf32>
    %254 = arith.addf %241, %253 : vector<2x128xf32>
    %cst_54 = arith.constant 2.000000e+00 : f32
    %255 = vector.broadcast %cst_54 : f32 to vector<2x128xf32>
    %256 = arith.mulf %255, %116 : vector<2x128xf32>
    %cst_55 = arith.constant 2.000000e+00 : f32
    %257 = vector.broadcast %cst_55 : f32 to vector<2x128xf32>
    %258 = arith.mulf %257, %121 : vector<2x128xf32>
    %259 = arith.addf %256, %258 : vector<2x128xf32>
    %cst_56 = arith.constant 2.000000e+00 : f32
    %260 = vector.broadcast %cst_56 : f32 to vector<2x128xf32>
    %261 = arith.mulf %260, %167 : vector<2x128xf32>
    %cst_57 = arith.constant 2.000000e+00 : f32
    %262 = vector.broadcast %cst_57 : f32 to vector<2x128xf32>
    %263 = arith.mulf %262, %172 : vector<2x128xf32>
    %264 = arith.addf %261, %263 : vector<2x128xf32>
    %265 = arith.subf %259, %264 : vector<2x128xf32>
    %266 = arith.mulf %265, %265 : vector<2x128xf32>
    %267 = arith.addf %254, %266 : vector<2x128xf32>
    %268 = arith.subf %112, %113 : vector<2x128xf32>
    %269 = arith.subf %268, %114 : vector<2x128xf32>
    %270 = arith.addf %269, %115 : vector<2x128xf32>
    %271 = arith.subf %163, %164 : vector<2x128xf32>
    %272 = arith.subf %271, %165 : vector<2x128xf32>
    %273 = arith.addf %272, %166 : vector<2x128xf32>
    %274 = arith.subf %270, %273 : vector<2x128xf32>
    %275 = arith.mulf %274, %274 : vector<2x128xf32>
    %276 = arith.addf %267, %275 : vector<2x128xf32>
    %277 = vector.shape_cast %276 : vector<2x128xf32> to vector<1x2x128xf32>
    %cst_58 = arith.constant dense<0.000000e+00> : vector<1xf32>
    %278 = vector.multi_reduction <add>, %277, %cst_58 [1, 2] : vector<1x2x128xf32> to vector<1xf32>
    %279 = vector.shape_cast %278 : vector<1xf32> to vector<1x1x1xf32>
    %280 = vector.extract %279[0, 0, 0] : f32 from vector<1x1x1xf32>
    %cst_59 = arith.constant 7.71604944E-4 : f32
    %281 = arith.mulf %280, %cst_59 : f32
    %282 = arith.addf %62, %281 : f32
    %c2_i32 = arith.constant 2 : i32
    %283 = vector.broadcast %c2_i32 : i32 to vector<1x128xi32>
    %284 = arith.cmpi eq, %0, %283 : vector<1x128xi32>
    %cst_60 = arith.constant 0.000000e+00 : f32
    %285 = vector.broadcast %281 : f32 to vector<1x128xf32>
    %286 = vector.broadcast %cst_60 : f32 to vector<1x128xf32>
    %287 = arith.select %284, %285, %286 : vector<1x128xi1>, vector<1x128xf32>
    %288 = arith.addf %68, %287 : vector<1x128xf32>
    %c0_61 = arith.constant 0 : index
    %c0_62 = arith.constant 0 : index
    %289 = vector.load %arg6[%c0_61, %c0_62] : memref<6x10xf32, #tpu.memory_space<vmem>>, vector<6x10xf32>
    %c0_63 = arith.constant 0 : index
    %c0_64 = arith.constant 0 : index
    %290 = vector.load %arg7[%c0_63, %c0_64] : memref<6x10xf32, #tpu.memory_space<vmem>>, vector<6x10xf32>
    %291 = arith.subf %289, %290 : vector<6x10xf32>
    %292 = arith.mulf %291, %291 : vector<6x10xf32>
    %293 = vector.shape_cast %292 : vector<6x10xf32> to vector<1x6x10xf32>
    %cst_65 = arith.constant dense<0.000000e+00> : vector<1xf32>
    %294 = vector.multi_reduction <add>, %293, %cst_65 [1, 2] : vector<1x6x10xf32> to vector<1xf32>
    %295 = vector.shape_cast %294 : vector<1xf32> to vector<1x1x1xf32>
    %296 = vector.extract %295[0, 0, 0] : f32 from vector<1x1x1xf32>
    %cst_66 = arith.constant 1.66666669E-5 : f32
    %297 = arith.mulf %296, %cst_66 : f32
    %298 = arith.addf %282, %297 : f32
    %c3_i32 = arith.constant 3 : i32
    %299 = vector.broadcast %c3_i32 : i32 to vector<1x128xi32>
    %300 = arith.cmpi eq, %0, %299 : vector<1x128xi32>
    %cst_67 = arith.constant 0.000000e+00 : f32
    %301 = vector.broadcast %297 : f32 to vector<1x128xf32>
    %302 = vector.broadcast %cst_67 : f32 to vector<1x128xf32>
    %303 = arith.select %300, %301, %302 : vector<1x128xi1>, vector<1x128xf32>
    %304 = arith.addf %288, %303 : vector<1x128xf32>
    %c4_i32 = arith.constant 4 : i32
    %305 = vector.broadcast %c4_i32 : i32 to vector<1x128xi32>
    %306 = arith.cmpi eq, %0, %305 : vector<1x128xi32>
    %cst_68 = arith.constant 0.000000e+00 : f32
    %307 = vector.broadcast %298 : f32 to vector<1x128xf32>
    %308 = vector.broadcast %cst_68 : f32 to vector<1x128xf32>
    %309 = arith.select %306, %307, %308 : vector<1x128xi1>, vector<1x128xf32>
    %310 = arith.addf %304, %309 : vector<1x128xf32>
    %c0_69 = arith.constant 0 : index
    %c0_70 = arith.constant 0 : index
    %311 = vector.load %arg10[%c0_69, %c0_70] : memref<1x128xf32, #tpu.memory_space<vmem>>, vector<1x128xf32>
    tpu.vector_store %arg10[%c0_69, %c0_70], %310 {strides = array<i32>} : memref<1x128xf32, #tpu.memory_space<vmem>>, vector<1x128xf32>,
    %c0_71 = arith.constant 0 : index
    %c0_72 = arith.constant 0 : index
    %312 = vector.load %arg9[%c0_71, %c0_72] : memref<3x3xf32, #tpu.memory_space<vmem>>, vector<3x3xf32>
    %313 = vector.extract_strided_slice %312 {offsets = [0, 0], sizes = [3, 1], strides = [1, 1]} : vector<3x3xf32> to vector<3x1xf32>
    %314 = vector.extract_strided_slice %312 {offsets = [0, 1], sizes = [3, 1], strides = [1, 1]} : vector<3x3xf32> to vector<3x1xf32>
    %315 = vector.extract_strided_slice %312 {offsets = [0, 2], sizes = [3, 1], strides = [1, 1]} : vector<3x3xf32> to vector<3x1xf32>
    %cst_73 = arith.constant 1.120000e+02 : f32
    %316 = vector.broadcast %cst_73 : f32 to vector<3x1xf32>
    %317 = arith.mulf %316, %313 : vector<3x1xf32>
    %318 = arith.mulf %313, %314 : vector<3x1xf32>
    %cst_74 = arith.constant 1.000000e+00 : f32
    %319 = vector.broadcast %cst_74 : f32 to vector<3x1xf32>
    %320 = arith.addf %318, %319 : vector<3x1xf32>
    %cst_75 = arith.constant 1.120000e+02 : f32
    %321 = vector.broadcast %cst_75 : f32 to vector<3x1xf32>
    %322 = arith.mulf %321, %320 : vector<3x1xf32>
    %323 = arith.mulf %313, %315 : vector<3x1xf32>
    %cst_76 = arith.constant 1.000000e+00 : f32
    %324 = vector.broadcast %cst_76 : f32 to vector<3x1xf32>
    %325 = arith.addf %323, %324 : vector<3x1xf32>
    %cst_77 = arith.constant 1.120000e+02 : f32
    %326 = vector.broadcast %cst_77 : f32 to vector<3x1xf32>
    %327 = arith.mulf %326, %325 : vector<3x1xf32>
    %c0_78 = arith.constant 0 : index
    %c0_79 = arith.constant 0 : index
    %c0_80 = arith.constant 0 : index
    %328 = vector.load %arg8[%c0_78, %c0_79, %c0_80] : memref<3x3x6890xf32, #tpu.memory_space<vmem>>, vector<1x3x6890xf32>
    %329 = vector.shape_cast %328 : vector<1x3x6890xf32> to vector<3x6890xf32>
    %330 = vector.broadcast %317 : vector<3x1xf32> to vector<3x6890xf32>
    %331 = arith.mulf %329, %330 : vector<3x6890xf32>
    %332 = vector.broadcast %322 : vector<3x1xf32> to vector<3x6890xf32>
    %333 = arith.addf %331, %332 : vector<3x6890xf32>
    %c1 = arith.constant 1 : index
    %c0_81 = arith.constant 0 : index
    %c0_82 = arith.constant 0 : index
    %334 = vector.load %arg8[%c1, %c0_81, %c0_82] : memref<3x3x6890xf32, #tpu.memory_space<vmem>>, vector<1x3x6890xf32>
    %335 = vector.shape_cast %334 : vector<1x3x6890xf32> to vector<3x6890xf32>
    %336 = vector.broadcast %317 : vector<3x1xf32> to vector<3x6890xf32>
    %337 = arith.mulf %335, %336 : vector<3x6890xf32>
    %338 = vector.broadcast %327 : vector<3x1xf32> to vector<3x6890xf32>
    %339 = arith.addf %337, %338 : vector<3x6890xf32>
    %c2 = arith.constant 2 : index
    %c0_83 = arith.constant 0 : index
    %c0_84 = arith.constant 0 : index
    %340 = vector.load %arg8[%c2, %c0_83, %c0_84] : memref<3x3x6890xf32, #tpu.memory_space<vmem>>, vector<1x3x6890xf32>
    %341 = vector.shape_cast %340 : vector<1x3x6890xf32> to vector<3x6890xf32>
    %c0_85 = arith.constant 0 : index
    %c0_86 = arith.constant 0 : index
    %342 = vector.load %arg11[%c0_85, %c0_86] : memref<3x6890xf32, #tpu.memory_space<vmem>>, vector<3x6890xf32>
    tpu.vector_store %arg11[%c0_85, %c0_86], %333 {strides = array<i32>} : memref<3x6890xf32, #tpu.memory_space<vmem>>, vector<3x6890xf32>,
    %c0_87 = arith.constant 0 : index
    %c0_88 = arith.constant 0 : index
    %343 = vector.load %arg12[%c0_87, %c0_88] : memref<3x6890xf32, #tpu.memory_space<vmem>>, vector<3x6890xf32>
    tpu.vector_store %arg12[%c0_87, %c0_88], %339 {strides = array<i32>} : memref<3x6890xf32, #tpu.memory_space<vmem>>, vector<3x6890xf32>,
    %c0_89 = arith.constant 0 : index
    %c0_90 = arith.constant 0 : index
    %344 = vector.load %arg13[%c0_89, %c0_90] : memref<3x6890xf32, #tpu.memory_space<vmem>>, vector<3x6890xf32>
    tpu.vector_store %arg13[%c0_89, %c0_90], %341 {strides = array<i32>} : memref<3x6890xf32, #tpu.memory_space<vmem>>, vector<3x6890xf32>,
    %345 = arith.fptosi %333 : vector<3x6890xf32> to vector<3x6890xi32>
    %346 = arith.fptosi %339 : vector<3x6890xf32> to vector<3x6890xi32>
    %c0_i32_91 = arith.constant 0 : i32
    %347 = vector.broadcast %c0_i32_91 : i32 to vector<3x6890xi32>
    %348 = arith.cmpi sge, %345, %347 : vector<3x6890xi32>
    %c224_i32 = arith.constant 224 : i32
    %349 = vector.broadcast %c224_i32 : i32 to vector<3x6890xi32>
    %350 = arith.cmpi slt, %345, %349 : vector<3x6890xi32>
    %351 = arith.andi %348, %350 : vector<3x6890xi1>
    %c0_i32_92 = arith.constant 0 : i32
    %352 = vector.broadcast %c0_i32_92 : i32 to vector<3x6890xi32>
    %353 = arith.cmpi sge, %346, %352 : vector<3x6890xi32>
    %354 = arith.andi %351, %353 : vector<3x6890xi1>
    %c224_i32_93 = arith.constant 224 : i32
    %355 = vector.broadcast %c224_i32_93 : i32 to vector<3x6890xi32>
    %356 = arith.cmpi slt, %346, %355 : vector<3x6890xi32>
    %357 = arith.andi %354, %356 : vector<3x6890xi1>
    %c0_i32_94 = arith.constant 0 : i32
    %358 = vector.broadcast %c0_i32_94 : i32 to vector<3x6890xi32>
    %359 = arith.select %357, %345, %358 : vector<3x6890xi1>, vector<3x6890xi32>
    %c0_95 = arith.constant 0 : index
    %c0_96 = arith.constant 0 : index
    %360 = vector.load %arg14[%c0_95, %c0_96] : memref<3x6890xi32, #tpu.memory_space<vmem>>, vector<3x6890xi32>
    tpu.vector_store %arg14[%c0_95, %c0_96], %359 {strides = array<i32>} : memref<3x6890xi32, #tpu.memory_space<vmem>>, vector<3x6890xi32>,
    %c0_i32_97 = arith.constant 0 : i32
    %361 = vector.broadcast %c0_i32_97 : i32 to vector<3x6890xi32>
    %362 = arith.select %357, %346, %361 : vector<3x6890xi1>, vector<3x6890xi32>
    %c0_98 = arith.constant 0 : index
    %c0_99 = arith.constant 0 : index
    %363 = vector.load %arg15[%c0_98, %c0_99] : memref<3x6890xi32, #tpu.memory_space<vmem>>, vector<3x6890xi32>
    tpu.vector_store %arg15[%c0_98, %c0_99], %362 {strides = array<i32>} : memref<3x6890xi32, #tpu.memory_space<vmem>>, vector<3x6890xi32>,
    %cst_100 = arith.constant 1.000000e+00 : f32
    %364 = vector.broadcast %cst_100 : f32 to vector<3x6890xf32>
    %365 = arith.minimumf %364, %341 : vector<3x6890xf32>
    %cst_101 = arith.constant 0x7F800000 : f32
    %366 = vector.broadcast %cst_101 : f32 to vector<3x6890xf32>
    %367 = arith.select %357, %365, %366 : vector<3x6890xi1>, vector<3x6890xf32>
    %c0_102 = arith.constant 0 : index
    %c0_103 = arith.constant 0 : index
    %368 = vector.load %arg16[%c0_102, %c0_103] : memref<3x6890xf32, #tpu.memory_space<vmem>>, vector<3x6890xf32>
    tpu.vector_store %arg16[%c0_102, %c0_103], %367 {strides = array<i32>} : memref<3x6890xf32, #tpu.memory_space<vmem>>, vector<3x6890xf32>,
    %c0_i32_104 = arith.constant 0 : i32
    %369 = vector.broadcast %c0_i32_104 : i32 to vector<3x6890xi32>
    %370 = arith.cmpi sge, %345, %369 : vector<3x6890xi32>
    %c223_i32 = arith.constant 223 : i32
    %371 = vector.broadcast %c223_i32 : i32 to vector<3x6890xi32>
    %372 = arith.cmpi slt, %345, %371 : vector<3x6890xi32>
    %373 = arith.andi %370, %372 : vector<3x6890xi1>
    %c0_i32_105 = arith.constant 0 : i32
    %374 = vector.broadcast %c0_i32_105 : i32 to vector<3x6890xi32>
    %375 = arith.cmpi sge, %346, %374 : vector<3x6890xi32>
    %376 = arith.andi %373, %375 : vector<3x6890xi1>
    %c223_i32_106 = arith.constant 223 : i32
    %377 = vector.broadcast %c223_i32_106 : i32 to vector<3x6890xi32>
    %378 = arith.cmpi slt, %346, %377 : vector<3x6890xi32>
    %379 = arith.andi %376, %378 : vector<3x6890xi1>
    %c0_i32_107 = arith.constant 0 : i32
    %380 = vector.broadcast %c0_i32_107 : i32 to vector<3x6890xi32>
    %381 = arith.select %379, %345, %380 : vector<3x6890xi1>, vector<3x6890xi32>
    %c0_108 = arith.constant 0 : index
    %c0_109 = arith.constant 0 : index
    %382 = vector.load %arg17[%c0_108, %c0_109] : memref<3x6890xi32, #tpu.memory_space<vmem>>, vector<3x6890xi32>
    tpu.vector_store %arg17[%c0_108, %c0_109], %381 {strides = array<i32>} : memref<3x6890xi32, #tpu.memory_space<vmem>>, vector<3x6890xi32>,
    %c0_i32_110 = arith.constant 0 : i32
    %383 = vector.broadcast %c0_i32_110 : i32 to vector<3x6890xi32>
    %384 = arith.select %379, %346, %383 : vector<3x6890xi1>, vector<3x6890xi32>
    %c0_111 = arith.constant 0 : index
    %c0_112 = arith.constant 0 : index
    %385 = vector.load %arg18[%c0_111, %c0_112] : memref<3x6890xi32, #tpu.memory_space<vmem>>, vector<3x6890xi32>
    tpu.vector_store %arg18[%c0_111, %c0_112], %384 {strides = array<i32>} : memref<3x6890xi32, #tpu.memory_space<vmem>>, vector<3x6890xi32>,
    %c1_i32_113 = arith.constant 1 : i32
    %386 = vector.broadcast %c1_i32_113 : i32 to vector<3x6890xi32>
    %387 = arith.addi %345, %386 : vector<3x6890xi32>
    %c0_i32_114 = arith.constant 0 : i32
    %388 = vector.broadcast %c0_i32_114 : i32 to vector<3x6890xi32>
    %389 = arith.select %379, %387, %388 : vector<3x6890xi1>, vector<3x6890xi32>
    %c0_115 = arith.constant 0 : index
    %c0_116 = arith.constant 0 : index
    %390 = vector.load %arg19[%c0_115, %c0_116] : memref<3x6890xi32, #tpu.memory_space<vmem>>, vector<3x6890xi32>
    tpu.vector_store %arg19[%c0_115, %c0_116], %389 {strides = array<i32>} : memref<3x6890xi32, #tpu.memory_space<vmem>>, vector<3x6890xi32>,
    %c1_i32_117 = arith.constant 1 : i32
    %391 = vector.broadcast %c1_i32_117 : i32 to vector<3x6890xi32>
    %392 = arith.addi %346, %391 : vector<3x6890xi32>
    %c0_i32_118 = arith.constant 0 : i32
    %393 = vector.broadcast %c0_i32_118 : i32 to vector<3x6890xi32>
    %394 = arith.select %379, %392, %393 : vector<3x6890xi1>, vector<3x6890xi32>
    %c0_119 = arith.constant 0 : index
    %c0_120 = arith.constant 0 : index
    %395 = vector.load %arg20[%c0_119, %c0_120] : memref<3x6890xi32, #tpu.memory_space<vmem>>, vector<3x6890xi32>
    tpu.vector_store %arg20[%c0_119, %c0_120], %394 {strides = array<i32>} : memref<3x6890xi32, #tpu.memory_space<vmem>>, vector<3x6890xi32>,
    %cst_121 = arith.constant 1.000000e+00 : f32
    %cst_122 = arith.constant 0.000000e+00 : f32
    %396 = vector.broadcast %cst_121 : f32 to vector<3x6890xf32>
    %397 = vector.broadcast %cst_122 : f32 to vector<3x6890xf32>
    %398 = arith.select %379, %396, %397 : vector<3x6890xi1>, vector<3x6890xf32>
    %c0_123 = arith.constant 0 : index
    %c0_124 = arith.constant 0 : index
    %399 = vector.load %arg21[%c0_123, %c0_124] : memref<3x6890xf32, #tpu.memory_space<vmem>>, vector<3x6890xf32>
    tpu.vector_store %arg21[%c0_123, %c0_124], %398 {strides = array<i32>} : memref<3x6890xf32, #tpu.memory_space<vmem>>, vector<3x6890xf32>,
    return
  }
}

</mosaic_0001>

<llo_original>
// kernel: tpu_custom_call.1
$region0: #{tpu_custom_call.1}
  #allocation0 [shape = 'u32[]', space=smem, size = 0x4, offset = 0x4, fixed_abs, tag = 'smem constant byte address 0x4 - core index']
  #allocation1 [shape = 'u32[144,128]{1,0:T(1,128)}', space=vmem, size = 0x12000, scoped, tag = 'internal scratch']
  %s0 = inlined_call_operand.vmem [shape: f32[2,6,49], index: 0, kind: input, shape index: {}]
  %s1 = inlined_call_operand.vmem [shape: f32[3,6,49], index: 1, kind: input, shape index: {}]
  %s2 = inlined_call_operand.hbm [shape: f32[14,18], index: 2, kind: input, shape index: {}]
  %s3 = inlined_call_operand.hbm [shape: f32[14,18], index: 3, kind: input, shape index: {}]
  %s4 = inlined_call_operand.hbm [shape: f32[3,2,128], index: 4, kind: input, shape index: {}]
  %s5 = inlined_call_operand.vmem [shape: f32[3,2,128], index: 5, kind: input, shape index: {}]
  %s6 = inlined_call_operand.vmem [shape: f32[6,10], index: 6, kind: input, shape index: {}]
  %s7 = inlined_call_operand.vmem [shape: f32[6,10], index: 7, kind: input, shape index: {}]
  %s8 = inlined_call_operand.hbm [shape: f32[3,3,6890], index: 8, kind: input, shape index: {}]
  %s9 = inlined_call_operand.vmem [shape: f32[3,3], index: 9, kind: input, shape index: {}]
  %s10 = inlined_call_operand.hbm [shape: f32[1,128], index: 10, kind: output, shape index: {0}]
  %s11 = inlined_call_operand.hbm [shape: f32[3,6890], index: 11, kind: output, shape index: {1}]
  %s12 = inlined_call_operand.hbm [shape: f32[3,6890], index: 12, kind: output, shape index: {2}]
  %s13 = inlined_call_operand.hbm [shape: f32[3,6890], index: 13, kind: output, shape index: {3}]
  %s14 = inlined_call_operand.hbm [shape: s32[3,6890], index: 14, kind: output, shape index: {4}]
  %s15 = inlined_call_operand.hbm [shape: s32[3,6890], index: 15, kind: output, shape index: {5}]
  %s16 = inlined_call_operand.hbm [shape: f32[3,6890], index: 16, kind: output, shape index: {6}]
  %s17 = inlined_call_operand.hbm [shape: s32[3,6890], index: 17, kind: output, shape index: {7}]
  %s18 = inlined_call_operand.hbm [shape: s32[3,6890], index: 18, kind: output, shape index: {8}]
  %s19 = inlined_call_operand.hbm [shape: s32[3,6890], index: 19, kind: output, shape index: {9}]
  %s20 = inlined_call_operand.hbm [shape: s32[3,6890], index: 20, kind: output, shape index: {10}]
  %s21 = inlined_call_operand.hbm [shape: f32[3,6890], index: 21, kind: output, shape index: {11}]
  %22 = xla_tuple %s10, %s11, %s12, %s13, %s14, %s15, %s16, %s17, %s18, %s19, %s20, %s21
  %s23 = sld [smem:[#allocation0]]
  $region154: #{tpu_custom_call.1} parent=0
    _
  %s25 = ssub.s32 1, %s23
  %s26 = scalar_select 0, %s25, %s23
  $region1: #{tpu_custom_call.1} parent=0
    #allocation2 [shape = 'u8[8192]{0}', space=vmem, size = 0x2000, scoped, tag = 'input window, operand 2, single buffered']
    #allocation3 [shape = 's32[1]{0}', space=sflag, size = 0x4, scoped, tag = 'scoped memory for tpu_custom_call.1']
    #allocation4 [shape = 's32[1]{0}', space=sflag, size = 0x4, scoped, tag = 'scoped memory for tpu_custom_call.1']
    #allocation5 [shape = 'u8[8192]{0}', space=vmem, size = 0x2000, scoped, tag = 'input window, operand 3, single buffered']
    #allocation6 [shape = 's32[1]{0}', space=sflag, size = 0x4, scoped, tag = 'scoped memory for tpu_custom_call.1']
    #allocation7 [shape = 'u8[3072]{0}', space=vmem, size = 0xc00, scoped, tag = 'input window, operand 4, single buffered']
    #allocation8 [shape = 'u8[331776]{0}', space=vmem, size = 0x51000, scoped, tag = 'input window, operand 8, single buffered']
    #allocation9 [shape = 's32[1]{0}', space=sflag, size = 0x4, scoped, tag = 'scoped memory for tpu_custom_call.1']
    #allocation10 [shape = 'u8[512]{0}', space=vmem, size = 0x400, scoped, tag = 'output window, operand 0, single buffered']
    #allocation11 [shape = 'u8[110592]{0}', space=vmem, size = 0x1b000, scoped, tag = 'output window, operand 1, single buffered']
    #allocation12 [shape = 's32[1]{0}', space=sflag, size = 0x4, scoped, tag = 'scoped memory for tpu_custom_call.1']
    #allocation13 [shape = 'u8[110592]{0}', space=vmem, size = 0x1b000, scoped, tag = 'output window, operand 2, single buffered']
    #allocation14 [shape = 'u8[110592]{0}', space=vmem, size = 0x1b000, scoped, tag = 'output window, operand 3, single buffered']
    #allocation15 [shape = 's32[1]{0}', space=sflag, size = 0x4, scoped, tag = 'scoped memory for tpu_custom_call.1']
    #allocation16 [shape = 'u8[110592]{0}', space=vmem, size = 0x1b000, scoped, tag = 'output window, operand 4, single buffered']
    #allocation17 [shape = 'u8[110592]{0}', space=vmem, size = 0x1b000, scoped, tag = 'output window, operand 5, single buffered']
    #allocation18 [shape = 's32[1]{0}', space=sflag, size = 0x4, scoped, tag = 'scoped memory for tpu_custom_call.1']
    #allocation19 [shape = 'u8[110592]{0}', space=vmem, size = 0x1b000, scoped, tag = 'output window, operand 6, single buffered']
    #allocation20 [shape = 'u8[110592]{0}', space=vmem, size = 0x1b000, scoped, tag = 'output window, operand 7, single buffered']
    #allocation21 [shape = 's32[1]{0}', space=sflag, size = 0x4, scoped, tag = 'scoped memory for tpu_custom_call.1']
    #allocation22 [shape = 'u8[110592]{0}', space=vmem, size = 0x1b000, scoped, tag = 'output window, operand 8, single buffered']
    #allocation23 [shape = 'u8[110592]{0}', space=vmem, size = 0x1b000, scoped, tag = 'output window, operand 9, single buffered']
    #allocation24 [shape = 's32[1]{0}', space=sflag, size = 0x4, scoped, tag = 'scoped memory for tpu_custom_call.1']
    #allocation25 [shape = 'u8[110592]{0}', space=vmem, size = 0x1b000, scoped, tag = 'output window, operand 10, single buffered']
    #allocation26 [shape = 'u8[110592]{0}', space=vmem, size = 0x1b000, scoped, tag = 'output window, operand 11, single buffered']
    #allocation27 [shape = 's32[1]{0}', space=sflag, size = 0x4, scoped, tag = 'scoped memory for tpu_custom_call.1']
    %27 = vsyncpa [#allocation3], 0
    %28 = vsyncpa [#allocation6], 0
    %29 = vsyncpa [#allocation9], 0
    %30 = vsyncpa [#allocation4], 0
    %31 = vsyncpa [#allocation12], 0
    %32 = vsyncpa [#allocation15], 0
    %33 = vsyncpa [#allocation18], 0
    %34 = vsyncpa [#allocation21], 0
    %35 = vsyncpa [#allocation24], 0
    %36 = vsyncpa [#allocation27], 0
    // Predicated region
    $region2: #{tpu_custom_call.1} parent=1 // pred_check
      _
    $region3: #{tpu_custom_call.1} parent=1 // pred_check_branch
      %38 = sbr.rel (0) target = $region5
    $region4: #{tpu_custom_call.1} parent=1 // pred_region
      _
    $region5: #{tpu_custom_call.1} parent=1 // pred_fallthru
      _
    // Predicated region
    $region6: #{tpu_custom_call.1} parent=1 // pred_check
      _
    $region7: #{tpu_custom_call.1} parent=1 // pred_check_branch
      %40 = sbr.rel (0) target = $region9
    $region8: #{tpu_custom_call.1} parent=1 // pred_region
      _
    $region9: #{tpu_custom_call.1} parent=1 // pred_fallthru
      _
    // Predicated region
    $region10: #{tpu_custom_call.1} parent=1 // pred_check
      _
    $region11: #{tpu_custom_call.1} parent=1 // pred_check_branch
      %42 = sbr.rel (0) target = $region13
    $region12: #{tpu_custom_call.1} parent=1 // pred_region
      %s44 = ssub.s32 256, 256
      %45 = vsyncadd [#allocation3], %s44
      %s46 = sshll.u32 [#allocation2], 4
      %s47 = int_to_ptr.vmem [resolvable:$true] %s46
      %52 = dma.hbm_to_vmem [thread:$0]  %s2, 256, %s47, [#allocation3], 128, 128, 8
    $region13: #{tpu_custom_call.1} parent=1 // pred_fallthru
      _
    // Predicated region
    $region14: #{tpu_custom_call.1} parent=1 // pred_check
      _
    $region15: #{tpu_custom_call.1} parent=1 // pred_check_branch
      %54 = sbr.rel (0) target = $region17
    $region16: #{tpu_custom_call.1} parent=1 // pred_region
      %s56 = ssub.s32 256, 256
      %57 = vsyncadd [#allocation6], %s56
      %s58 = sshll.u32 [#allocation5], 4
      %s59 = int_to_ptr.vmem [resolvable:$true] %s58
      %64 = dma.hbm_to_vmem [thread:$0]  %s3, 256, %s59, [#allocation6], 128, 128, 8
    $region17: #{tpu_custom_call.1} parent=1 // pred_fallthru
      _
    // Predicated region
    $region18: #{tpu_custom_call.1} parent=1 // pred_check
      _
    $region19: #{tpu_custom_call.1} parent=1 // pred_check_branch
      %66 = sbr.rel (0) target = $region21
    $region20: #{tpu_custom_call.1} parent=1 // pred_region
      %s68 = ssub.s32 96, 96
      %69 = vsyncadd [#allocation6], %s68
      %s70 = sshll.u32 [#allocation7], 4
      %s71 = int_to_ptr.vmem [resolvable:$true] %s70
      %76 = dma.hbm_to_vmem [thread:$0]  %s4, 96, %s71, [#allocation6], 32, 32, 2
    $region21: #{tpu_custom_call.1} parent=1 // pred_fallthru
      _
    // Predicated region
    $region22: #{tpu_custom_call.1} parent=1 // pred_check
      _
    $region23: #{tpu_custom_call.1} parent=1 // pred_check_branch
      %78 = sbr.rel (0) target = $region25
    $region24: #{tpu_custom_call.1} parent=1 // pred_region
      _
    $region25: #{tpu_custom_call.1} parent=1 // pred_fallthru
      _
    // Predicated region
    $region26: #{tpu_custom_call.1} parent=1 // pred_check
      _
    $region27: #{tpu_custom_call.1} parent=1 // pred_check_branch
      %80 = sbr.rel (0) target = $region29
    $region28: #{tpu_custom_call.1} parent=1 // pred_region
      _
    $region29: #{tpu_custom_call.1} parent=1 // pred_fallthru
      _
    // Predicated region
    $region30: #{tpu_custom_call.1} parent=1 // pred_check
      _
    $region31: #{tpu_custom_call.1} parent=1 // pred_check_branch
      %82 = sbr.rel (0) target = $region33
    $region32: #{tpu_custom_call.1} parent=1 // pred_region
      _
    $region33: #{tpu_custom_call.1} parent=1 // pred_fallthru
      _
    // Predicated region
    $region34: #{tpu_custom_call.1} parent=1 // pred_check
      _
    $region35: #{tpu_custom_call.1} parent=1 // pred_check_branch
      %84 = sbr.rel (0) target = $region37
    $region36: #{tpu_custom_call.1} parent=1 // pred_region
      %s86 = ssub.s32 10368, 10368
      %87 = vsyncadd [#allocation9], %s86
      %s88 = sshll.u32 [#allocation8], 4
      %s89 = int_to_ptr.vmem [resolvable:$true] %s88
      %94 = dma.hbm_to_vmem [thread:$0]  %s8, 10368, %s89, [#allocation9], 3456, 3456, 216
    $region37: #{tpu_custom_call.1} parent=1 // pred_fallthru
      _
    // Predicated region
    $region38: #{tpu_custom_call.1} parent=1 // pred_check
      _
    $region39: #{tpu_custom_call.1} parent=1 // pred_check_branch
      %96 = sbr.rel (0) target = $region41
    $region40: #{tpu_custom_call.1} parent=1 // pred_region
      _
    $region41: #{tpu_custom_call.1} parent=1 // pred_fallthru
      _
    // Predicated region
    $region42: #{tpu_custom_call.1} parent=1 // pred_check
      _
    $region43: #{tpu_custom_call.1} parent=1 // pred_check_branch
      %98 = sbr.rel (0) target = $region45
    $region44: #{tpu_custom_call.1} parent=1 // pred_region
      %99 = dma.done [#allocation3], 256
    $region45: #{tpu_custom_call.1} parent=1 // pred_fallthru
      _
    // Predicated region
    $region46: #{tpu_custom_call.1} parent=1 // pred_check
      _
    $region47: #{tpu_custom_call.1} parent=1 // pred_check_branch
      %101 = sbr.rel (0) target = $region49
    $region48: #{tpu_custom_call.1} parent=1 // pred_region
      %102 = dma.done [#allocation6], 256
    $region49: #{tpu_custom_call.1} parent=1 // pred_fallthru
      _
    // Predicated region
    $region50: #{tpu_custom_call.1} parent=1 // pred_check
      _
    $region51: #{tpu_custom_call.1} parent=1 // pred_check_branch
      %104 = sbr.rel (0) target = $region53
    $region52: #{tpu_custom_call.1} parent=1 // pred_region
      %105 = dma.done [#allocation6], 96
    $region53: #{tpu_custom_call.1} parent=1 // pred_fallthru
      _
    // Predicated region
    $region54: #{tpu_custom_call.1} parent=1 // pred_check
      _
    $region55: #{tpu_custom_call.1} parent=1 // pred_check_branch
      %107 = sbr.rel (0) target = $region57
    $region56: #{tpu_custom_call.1} parent=1 // pred_region
      %108 = dma.done [#allocation9], 10368
    $region57: #{tpu_custom_call.1} parent=1 // pred_fallthru
      _
    %v109 = vlaneseq
    %v110 = vand.u32 %v109, 127
    %v111 = vld [vmem:[%s0] sm:$0x3f]
    %v112 = vld [vmem:[%s0 + $0x8] sm:$0x3f]
    %v113 = vld [vmem:[%s1] sm:$0x3f]
    %v114 = vld [vmem:[%s1 + $0x8] sm:$0x3f]
    %v115 = vld [vmem:[%s1 + $0x10] sm:$0x3f]
    %v116 = vsub.f32 %v111, %v113
    %v117 = vsub.f32 %v112, %v114
    %v118 = vmul.f32 %v116, %v116
    %v119 = vmul.f32 %v117, %v117
    %v120 = vadd.f32 %v118, %v119
    %v121 = vmul.f32 %v115, %v120
    %vm122 = vcmask 398336
    %v123 = vsel %vm122, %v121, 0.0
    %124 = vadd.xlane.f32.xlu0 %v123
    %v125 = vpop.xlane.xlu0 %124
    %v126 = vrot.slane %v125, 4
    %v127 = vadd.f32 %v125, %v126
    %v128 = vrot.slane %v127, 2
    %v129 = vadd.f32 %v127, %v128
    %v130 = vrot.slane %v129, 1
    %v131 = vadd.f32 %v129, %v130
    %s132 = vtos %v131
    %s133 = smul.f32 %s132, 0.10204082
    %s134 = sadd.f32 %s133, 0.0
    %vm135 = vcmp.eq.s32.totalorder %v110, 0
    %v136 = vstv %s133
    %v137 = vsel %vm135, %v136, 0.0
    %v138 = vadd.f32 %v137, 0.0
    %v139 = vld [vmem:[#allocation2] sm:$0xff]
    %v140 = vld [vmem:[#allocation2 + $0x8] sm:$0x3f]
    %v141 = vld [vmem:[#allocation5] sm:$0xff]
    %v142 = vld [vmem:[#allocation5 + $0x8] sm:$0x3f]
    %v144 = vrot.slane %v139, 1
    %v146 = vadd.f32 %v139, %v144
    %v147 = vmul.f32 %v146, 0.5
    %v149 = vrot.slane %v141, 1
    %v151 = vadd.f32 %v141, %v149
    %v152 = vmul.f32 %v151, 0.5
    %v153 = vlaneseq
    %v154 = vshrl.u32 %v153, 7
    %v155 = vsub.s32 2, %v154
    %v156 = vrot.slane %v147, %v155
    %v157 = vsub.f32 %v139, %v156
    %v158 = vsub.f32 %v140, %v156
    %v159 = vlaneseq
    %v160 = vshrl.u32 %v159, 7
    %v161 = vsub.s32 2, %v160
    %v162 = vrot.slane %v152, %v161
    %v163 = vsub.f32 %v141, %v162
    %v164 = vsub.f32 %v142, %v162
    %v165 = vsub.f32 %v157, %v163
    %v166 = vsub.f32 %v158, %v164
    %v167 = vmul.f32 %v165, %v165
    %v168 = vmul.f32 %v166, %v166
    %vm169 = vcmask 146432
    %v170 = vsel %vm169, %v167, 0.0
    %vm171 = vcmask 144384
    %v172 = vsel %vm171, %v168, 0.0
    %v173 = vadd.f32 %v170, %v172
    %174 = vadd.xlane.f32.xlu0 %v173
    %v175 = vpop.xlane.xlu0 %174
    %v176 = vrot.slane %v175, 4
    %v177 = vadd.f32 %v175, %v176
    %v178 = vrot.slane %v177, 2
    %v179 = vadd.f32 %v177, %v178
    %v180 = vrot.slane %v179, 1
    %v181 = vadd.f32 %v179, %v180
    %s182 = vtos %v181
    %s183 = smul.f32 %s182, 0.11904762
    %s184 = sadd.f32 %s134, %s183
    %vm185 = vcmp.eq.s32.totalorder %v110, 1
    %v186 = vstv %s183
    %v187 = vsel %vm185, %v186, 0.0
    %v188 = vadd.f32 %v138, %v187
    %v189 = vld [vmem:[#allocation7] sm:$0x3]
    %v190 = vld [vmem:[#allocation7 + $0x2] sm:$0x3]
    %v191 = vld [vmem:[#allocation7 + $0x4] sm:$0x3]
    %v192 = vld [vmem:[%s5] sm:$0x3]
    %v193 = vld [vmem:[%s5 + $0x2] sm:$0x3]
    %v194 = vld [vmem:[%s5 + $0x4] sm:$0x3]
    %v195 = vadd.f32 %v189, 1e-08
    %v196 = vadd.f32 %v190, 1e-08
    %v197 = vadd.f32 %v191, 1e-08
    %v198 = vmul.f32 %v195, %v195
    %v199 = vmul.f32 %v196, %v196
    %v200 = vadd.f32 %v198, %v199
    %v201 = vmul.f32 %v197, %v197
    %v202 = vadd.f32 %v200, %v201
    %v203 = vrsqrt.pop %v202
    %v204 = vmul.f32 %v189, %v203
    %v205 = vmul.f32 %v190, %v203
    %v206 = vmul.f32 %v191, %v203
    %v207 = vmul.f32 %v202, %v203
    %v208 = vmul.f32 %v207, 0.5
    %v209 = vand.u32 2147483647, %v208
    %vm210 = vcmp.le.f32.partialorder %v209, 0.7853982
    %vm211 = vcmp.lt.s32.totalorder %v208, 0
    %v212 = vand.u32 %v208, 2139095040
    %v213 = vshrl.u32 %v212, 23
    %v214 = vsub.s32 %v213, 127
    %v215 = vand.u32 2147483647, %v208
    %v216 = vand.u32 %v215, 8388607
    %v217 = vor.u32 %v216, 8388608
    %v218 = vsub.s32 0, %v217
    %v219 = vadd.s32 %v214, 1
    %vm220 = vcmp.gt.s32.totalorder %v219, 0
    %v221 = vsel %vm220, %v219, 0
    %v222 = vshrl.u32 %v221, 5
    %v223 = vand.u32 %v221, 31
    %v224 = vsub.s32 32, %v223
    %v225 = vshrl.u32 683565275, %v224
    %v226 = vshll.u32 683565275, %v223
    %v227 = vshrl.u32 2475754826, %v224
    %v228 = vor.u32 %v226, %v227
    %v229 = vshll.u32 2475754826, %v223
    %v230 = vshrl.u32 2131351028, %v224
    %v231 = vor.u32 %v229, %v230
    %v232 = vshll.u32 2131351028, %v223
    %v233 = vshrl.u32 2102212464, %v224
    %v234 = vor.u32 %v232, %v233
    %v235 = vshll.u32 2102212464, %v223
    %v236 = vshrl.u32 920167782, %v224
    %v237 = vor.u32 %v235, %v236
    %v238 = vshll.u32 920167782, %v223
    %v239 = vshrl.u32 1326507024, %v224
    %v240 = vor.u32 %v238, %v239
    %vm241 = vcmp.lt.s32.totalorder %v222, 1
    %vm242 = vcmp.lt.s32.totalorder %v222, 2
    %vm243 = vcmp.lt.s32.totalorder %v222, 3
    %vm244 = vcmp.lt.s32.totalorder %v222, 4
    %v245 = vsel %vm241, %v225, %v228
    %v246 = vsel %vm244, %v234, 2102212464
    %v247 = vsel %vm243, %v231, %v246
    %v248 = vsel %vm242, %v245, %v247
    %v249 = vsel %vm241, %v228, %v231
    %v250 = vsel %vm244, %v237, 920167782
    %v251 = vsel %vm243, %v234, %v250
    %v252 = vsel %vm242, %v249, %v251
    %v253 = vsel %vm241, %v231, %v234
    %v254 = vsel %vm244, %v240, 1326507024
    %v255 = vsel %vm243, %v237, %v254
    %v256 = vsel %vm242, %v253, %v255
    %v257 = vshll.u32 %v217, 8
    %v258 = vmul.u32.u64.compose %v257, %v256
    %v259 = vextract.low.u32 %v258
    %v260 = vextract.high.u32 %v258
    %v261 = vmul.u32.u64.compose %v257, %v252
    %v262 = vextract.low.u32 %v261
    %v263 = vextract.high.u32 %v261
    %v264 = vmul.u32 %v257, %v248
    %v265 = vadd.s32 %v260, %v262
    %vm266 = vc.u32 %v260, %v262
    %v267 = vadd.s32 %v263, 1
    %v268 = vsel %vm266, %v267, %v263
    %v269 = vadd.s32 %v264, %v268
    %v270 = vadd.s32 %v269, 536870912
    %v271 = vshrl.u32 %v270, 30
    %v272 = vshll.u32 %v271, 30
    %v273 = vsub.s32 %v269, %v272
    %vm274 = vcmp.lt.s32.totalorder %v273, 0
    %v275 = vsub.s32 0, %v273
    %v276 = vsel %vm274, %v275, %v273
    %v277 = vclz %v276
    %v278 = vsub.s32 %v277, 2
    %vm279 = vcmp.gt.s32.totalorder 0, %v278
    %v280 = vsel %vm279, 0, %v278
    %v281 = vsub.s32 32, %v280
    %v282 = vshll.u32 %v273, %v280
    %v283 = vshrl.u32 %v265, %v281
    %v284 = vor.u32 %v282, %v283
    %v285 = vsub.s32 4294967266, %v280
    %v286 = vadd.s32 %v285, 127
    %v287 = vshll.u32 %v286, 23
    %v288 = vor.u32 4788187, %v287
    %v289 = vand.u32 2147483647, %v288
    %v291 = vcvt.s32.f32 %v284
    %v292 = vmul.f32 %v291, %v289
    %v293 = vxor.u32 %v292, 2147483648
    %v294 = vsel %vm211, %v293, %v292
    %v295 = vsub.s32 4, %v271
    %v296 = vsel %vm211, %v295, %v271
    %v297 = vsel %vm210, %v208, %v294
    %v298 = vsel %vm210, 0, %v296
    %v299 = vcosq.f32.pop %v297
    %v300 = vsinq.f32.pop %v297
    %vm301 = vweird.f32 %v208
    %v302 = vand.u32 %v298, 3
    %vm303 = vcmp.lt.s32.totalorder %v302, 2
    %vm304 = vcmp.eq.s32.totalorder %v302, 0
    %v305 = vxor.u32 %v300, 2147483648
    %v306 = vsel %vm304, %v299, %v305
    %vm307 = vcmp.eq.s32.totalorder %v302, 2
    %v308 = vxor.u32 %v299, 2147483648
    %v309 = vsel %vm307, %v308, %v300
    %v310 = vsel %vm303, %v306, %v309
    %v311 = vsel %vm301, nan, %v310
    %v312 = vand.u32 2147483647, %v208
    %vm313 = vcmp.le.f32.partialorder %v312, 0.7853982
    %vm314 = vcmp.lt.s32.totalorder %v208, 0
    %v315 = vand.u32 %v208, 2139095040
    %v316 = vshrl.u32 %v315, 23
    %v317 = vsub.s32 %v316, 127
    %v318 = vand.u32 2147483647, %v208
    %v319 = vand.u32 %v318, 8388607
    %v320 = vor.u32 %v319, 8388608
    %v321 = vsub.s32 0, %v320
    %v322 = vadd.s32 %v317, 1
    %vm323 = vcmp.gt.s32.totalorder %v322, 0
    %v324 = vsel %vm323, %v322, 0
    %v325 = vshrl.u32 %v324, 5
    %v326 = vand.u32 %v324, 31
    %v327 = vsub.s32 32, %v326
    %v328 = vshrl.u32 683565275, %v327
    %v329 = vshll.u32 683565275, %v326
    %v330 = vshrl.u32 2475754826, %v327
    %v331 = vor.u32 %v329, %v330
    %v332 = vshll.u32 2475754826, %v326
    %v333 = vshrl.u32 2131351028, %v327
    %v334 = vor.u32 %v332, %v333
    %v335 = vshll.u32 2131351028, %v326
    %v336 = vshrl.u32 2102212464, %v327
    %v337 = vor.u32 %v335, %v336
    %v338 = vshll.u32 2102212464, %v326
    %v339 = vshrl.u32 920167782, %v327
    %v340 = vor.u32 %v338, %v339
    %v341 = vshll.u32 920167782, %v326
    %v342 = vshrl.u32 1326507024, %v327
    %v343 = vor.u32 %v341, %v342
    %vm344 = vcmp.lt.s32.totalorder %v325, 1
    %vm345 = vcmp.lt.s32.totalorder %v325, 2
    %vm346 = vcmp.lt.s32.totalorder %v325, 3
    %vm347 = vcmp.lt.s32.totalorder %v325, 4
    %v348 = vsel %vm344, %v328, %v331
    %v349 = vsel %vm347, %v337, 2102212464
    %v350 = vsel %vm346, %v334, %v349
    %v351 = vsel %vm345, %v348, %v350
    %v352 = vsel %vm344, %v331, %v334
    %v353 = vsel %vm347, %v340, 920167782
    %v354 = vsel %vm346, %v337, %v353
    %v355 = vsel %vm345, %v352, %v354
    %v356 = vsel %vm344, %v334, %v337
    %v357 = vsel %vm347, %v343, 1326507024
    %v358 = vsel %vm346, %v340, %v357
    %v359 = vsel %vm345, %v356, %v358
    %v360 = vshll.u32 %v320, 8
    %v361 = vmul.u32.u64.compose %v360, %v359
    %v362 = vextract.low.u32 %v361
    %v363 = vextract.high.u32 %v361
    %v364 = vmul.u32.u64.compose %v360, %v355
    %v365 = vextract.low.u32 %v364
    %v366 = vextract.high.u32 %v364
    %v367 = vmul.u32 %v360, %v351
    %v368 = vadd.s32 %v363, %v365
    %vm369 = vc.u32 %v363, %v365
    %v370 = vadd.s32 %v366, 1
    %v371 = vsel %vm369, %v370, %v366
    %v372 = vadd.s32 %v367, %v371
    %v373 = vadd.s32 %v372, 536870912
    %v374 = vshrl.u32 %v373, 30
    %v375 = vshll.u32 %v374, 30
    %v376 = vsub.s32 %v372, %v375
    %vm377 = vcmp.lt.s32.totalorder %v376, 0
    %v378 = vsub.s32 0, %v376
    %v379 = vsel %vm377, %v378, %v376
    %v380 = vclz %v379
    %v381 = vsub.s32 %v380, 2
    %vm382 = vcmp.gt.s32.totalorder 0, %v381
    %v383 = vsel %vm382, 0, %v381
    %v384 = vsub.s32 32, %v383
    %v385 = vshll.u32 %v376, %v383
    %v386 = vshrl.u32 %v368, %v384
    %v387 = vor.u32 %v385, %v386
    %v388 = vsub.s32 4294967266, %v383
    %v389 = vadd.s32 %v388, 127
    %v390 = vshll.u32 %v389, 23
    %v391 = vor.u32 4788187, %v390
    %v392 = vand.u32 2147483647, %v391
    %v394 = vcvt.s32.f32 %v387
    %v395 = vmul.f32 %v394, %v392
    %v396 = vxor.u32 %v395, 2147483648
    %v397 = vsel %vm314, %v396, %v395
    %v398 = vsub.s32 4, %v374
    %v399 = vsel %vm314, %v398, %v374
    %v400 = vsel %vm313, %v208, %v397
    %v401 = vsel %vm313, 0, %v399
    %v402 = vcosq.f32.pop %v400
    %v403 = vsinq.f32.pop %v400
    %vm404 = vweird.f32 %v208
    %v405 = vadd.s32 %v401, 3
    %v406 = vand.u32 %v405, 3
    %vm407 = vcmp.lt.s32.totalorder %v406, 2
    %vm408 = vcmp.eq.s32.totalorder %v406, 0
    %v409 = vxor.u32 %v403, 2147483648
    %v410 = vsel %vm408, %v402, %v409
    %vm411 = vcmp.eq.s32.totalorder %v406, 2
    %v412 = vxor.u32 %v402, 2147483648
    %v413 = vsel %vm411, %v412, %v403
    %v414 = vsel %vm407, %v410, %v413
    %v415 = vsel %vm404, nan, %v414
    %v416 = vmul.f32 %v415, %v204
    %v417 = vmul.f32 %v415, %v205
    %v418 = vmul.f32 %v415, %v206
    %v419 = vmul.f32 %v311, %v311
    %v420 = vmul.f32 %v416, %v416
    %v421 = vadd.f32 %v419, %v420
    %v422 = vmul.f32 %v417, %v417
    %v423 = vadd.f32 %v421, %v422
    %v424 = vmul.f32 %v418, %v418
    %v425 = vadd.f32 %v423, %v424
    %v426 = vrsqrt.pop %v425
    %v427 = vmul.f32 %v311, %v426
    %v428 = vmul.f32 %v416, %v426
    %v429 = vmul.f32 %v417, %v426
    %v430 = vmul.f32 %v418, %v426
    %v431 = vmul.f32 %v427, %v427
    %v432 = vmul.f32 %v428, %v428
    %v433 = vmul.f32 %v429, %v429
    %v434 = vmul.f32 %v430, %v430
    %v435 = vmul.f32 %v427, %v428
    %v436 = vmul.f32 %v427, %v429
    %v437 = vmul.f32 %v427, %v430
    %v438 = vmul.f32 %v428, %v429
    %v439 = vmul.f32 %v428, %v430
    %v440 = vmul.f32 %v429, %v430
    %v441 = vadd.f32 %v192, 1e-08
    %v442 = vadd.f32 %v193, 1e-08
    %v443 = vadd.f32 %v194, 1e-08
    %v444 = vmul.f32 %v441, %v441
    %v445 = vmul.f32 %v442, %v442
    %v446 = vadd.f32 %v444, %v445
    %v447 = vmul.f32 %v443, %v443
    %v448 = vadd.f32 %v446, %v447
    %v449 = vrsqrt.pop %v448
    %v450 = vmul.f32 %v192, %v449
    %v451 = vmul.f32 %v193, %v449
    %v452 = vmul.f32 %v194, %v449
    %v453 = vmul.f32 %v448, %v449
    %v454 = vmul.f32 %v453, 0.5
    %v455 = vand.u32 2147483647, %v454
    %vm456 = vcmp.le.f32.partialorder %v455, 0.7853982
    %vm457 = vcmp.lt.s32.totalorder %v454, 0
    %v458 = vand.u32 %v454, 2139095040
    %v459 = vshrl.u32 %v458, 23
    %v460 = vsub.s32 %v459, 127
    %v461 = vand.u32 2147483647, %v454
    %v462 = vand.u32 %v461, 8388607
    %v463 = vor.u32 %v462, 8388608
    %v464 = vsub.s32 0, %v463
    %v465 = vadd.s32 %v460, 1
    %vm466 = vcmp.gt.s32.totalorder %v465, 0
    %v467 = vsel %vm466, %v465, 0
    %v468 = vshrl.u32 %v467, 5
    %v469 = vand.u32 %v467, 31
    %v470 = vsub.s32 32, %v469
    %v471 = vshrl.u32 683565275, %v470
    %v472 = vshll.u32 683565275, %v469
    %v473 = vshrl.u32 2475754826, %v470
    %v474 = vor.u32 %v472, %v473
    %v475 = vshll.u32 2475754826, %v469
    %v476 = vshrl.u32 2131351028, %v470
    %v477 = vor.u32 %v475, %v476
    %v478 = vshll.u32 2131351028, %v469
    %v479 = vshrl.u32 2102212464, %v470
    %v480 = vor.u32 %v478, %v479
    %v481 = vshll.u32 2102212464, %v469
    %v482 = vshrl.u32 920167782, %v470
    %v483 = vor.u32 %v481, %v482
    %v484 = vshll.u32 920167782, %v469
    %v485 = vshrl.u32 1326507024, %v470
    %v486 = vor.u32 %v484, %v485
    %vm487 = vcmp.lt.s32.totalorder %v468, 1
    %vm488 = vcmp.lt.s32.totalorder %v468, 2
    %vm489 = vcmp.lt.s32.totalorder %v468, 3
    %vm490 = vcmp.lt.s32.totalorder %v468, 4
    %v491 = vsel %vm487, %v471, %v474
    %v492 = vsel %vm490, %v480, 2102212464
    %v493 = vsel %vm489, %v477, %v492
    %v494 = vsel %vm488, %v491, %v493
    %v495 = vsel %vm487, %v474, %v477
    %v496 = vsel %vm490, %v483, 920167782
    %v497 = vsel %vm489, %v480, %v496
    %v498 = vsel %vm488, %v495, %v497
    %v499 = vsel %vm487, %v477, %v480
    %v500 = vsel %vm490, %v486, 1326507024
    %v501 = vsel %vm489, %v483, %v500
    %v502 = vsel %vm488, %v499, %v501
    %v503 = vshll.u32 %v463, 8
    %v504 = vmul.u32.u64.compose %v503, %v502
    %v505 = vextract.low.u32 %v504
    %v506 = vextract.high.u32 %v504
    %v507 = vmul.u32.u64.compose %v503, %v498
    %v508 = vextract.low.u32 %v507
    %v509 = vextract.high.u32 %v507
    %v510 = vmul.u32 %v503, %v494
    %v511 = vadd.s32 %v506, %v508
    %vm512 = vc.u32 %v506, %v508
    %v513 = vadd.s32 %v509, 1
    %v514 = vsel %vm512, %v513, %v509
    %v515 = vadd.s32 %v510, %v514
    %v516 = vadd.s32 %v515, 536870912
    %v517 = vshrl.u32 %v516, 30
    %v518 = vshll.u32 %v517, 30
    %v519 = vsub.s32 %v515, %v518
    %vm520 = vcmp.lt.s32.totalorder %v519, 0
    %v521 = vsub.s32 0, %v519
    %v522 = vsel %vm520, %v521, %v519
    %v523 = vclz %v522
    %v524 = vsub.s32 %v523, 2
    %vm525 = vcmp.gt.s32.totalorder 0, %v524
    %v526 = vsel %vm525, 0, %v524
    %v527 = vsub.s32 32, %v526
    %v528 = vshll.u32 %v519, %v526
    %v529 = vshrl.u32 %v511, %v527
    %v530 = vor.u32 %v528, %v529
    %v531 = vsub.s32 4294967266, %v526
    %v532 = vadd.s32 %v531, 127
    %v533 = vshll.u32 %v532, 23
    %v534 = vor.u32 4788187, %v533
    %v535 = vand.u32 2147483647, %v534
    %v537 = vcvt.s32.f32 %v530
    %v538 = vmul.f32 %v537, %v535
    %v539 = vxor.u32 %v538, 2147483648
    %v540 = vsel %vm457, %v539, %v538
    %v541 = vsub.s32 4, %v517
    %v542 = vsel %vm457, %v541, %v517
    %v543 = vsel %vm456, %v454, %v540
    %v544 = vsel %vm456, 0, %v542
    %v545 = vcosq.f32.pop %v543
    %v546 = vsinq.f32.pop %v543
    %vm547 = vweird.f32 %v454
    %v548 = vand.u32 %v544, 3
    %vm549 = vcmp.lt.s32.totalorder %v548, 2
    %vm550 = vcmp.eq.s32.totalorder %v548, 0
    %v551 = vxor.u32 %v546, 2147483648
    %v552 = vsel %vm550, %v545, %v551
    %vm553 = vcmp.eq.s32.totalorder %v548, 2
    %v554 = vxor.u32 %v545, 2147483648
    %v555 = vsel %vm553, %v554, %v546
    %v556 = vsel %vm549, %v552, %v555
    %v557 = vsel %vm547, nan, %v556
    %v558 = vand.u32 2147483647, %v454
    %vm559 = vcmp.le.f32.partialorder %v558, 0.7853982
    %vm560 = vcmp.lt.s32.totalorder %v454, 0
    %v561 = vand.u32 %v454, 2139095040
    %v562 = vshrl.u32 %v561, 23
    %v563 = vsub.s32 %v562, 127
    %v564 = vand.u32 2147483647, %v454
    %v565 = vand.u32 %v564, 8388607
    %v566 = vor.u32 %v565, 8388608
    %v567 = vsub.s32 0, %v566
    %v568 = vadd.s32 %v563, 1
    %vm569 = vcmp.gt.s32.totalorder %v568, 0
    %v570 = vsel %vm569, %v568, 0
    %v571 = vshrl.u32 %v570, 5
    %v572 = vand.u32 %v570, 31
    %v573 = vsub.s32 32, %v572
    %v574 = vshrl.u32 683565275, %v573
    %v575 = vshll.u32 683565275, %v572
    %v576 = vshrl.u32 2475754826, %v573
    %v577 = vor.u32 %v575, %v576
    %v578 = vshll.u32 2475754826, %v572
    %v579 = vshrl.u32 2131351028, %v573
    %v580 = vor.u32 %v578, %v579
    %v581 = vshll.u32 2131351028, %v572
    %v582 = vshrl.u32 2102212464, %v573
    %v583 = vor.u32 %v581, %v582
    %v584 = vshll.u32 2102212464, %v572
    %v585 = vshrl.u32 920167782, %v573
    %v586 = vor.u32 %v584, %v585
    %v587 = vshll.u32 920167782, %v572
    %v588 = vshrl.u32 1326507024, %v573
    %v589 = vor.u32 %v587, %v588
    %vm590 = vcmp.lt.s32.totalorder %v571, 1
    %vm591 = vcmp.lt.s32.totalorder %v571, 2
    %vm592 = vcmp.lt.s32.totalorder %v571, 3
    %vm593 = vcmp.lt.s32.totalorder %v571, 4
    %v594 = vsel %vm590, %v574, %v577
    %v595 = vsel %vm593, %v583, 2102212464
    %v596 = vsel %vm592, %v580, %v595
    %v597 = vsel %vm591, %v594, %v596
    %v598 = vsel %vm590, %v577, %v580
    %v599 = vsel %vm593, %v586, 920167782
    %v600 = vsel %vm592, %v583, %v599
    %v601 = vsel %vm591, %v598, %v600
    %v602 = vsel %vm590, %v580, %v583
    %v603 = vsel %vm593, %v589, 1326507024
    %v604 = vsel %vm592, %v586, %v603
    %v605 = vsel %vm591, %v602, %v604
    %v606 = vshll.u32 %v566, 8
    %v607 = vmul.u32.u64.compose %v606, %v605
    %v608 = vextract.low.u32 %v607
    %v609 = vextract.high.u32 %v607
    %v610 = vmul.u32.u64.compose %v606, %v601
    %v611 = vextract.low.u32 %v610
    %v612 = vextract.high.u32 %v610
    %v613 = vmul.u32 %v606, %v597
    %v614 = vadd.s32 %v609, %v611
    %vm615 = vc.u32 %v609, %v611
    %v616 = vadd.s32 %v612, 1
    %v617 = vsel %vm615, %v616, %v612
    %v618 = vadd.s32 %v613, %v617
    %v619 = vadd.s32 %v618, 536870912
    %v620 = vshrl.u32 %v619, 30
    %v621 = vshll.u32 %v620, 30
    %v622 = vsub.s32 %v618, %v621
    %vm623 = vcmp.lt.s32.totalorder %v622, 0
    %v624 = vsub.s32 0, %v622
    %v625 = vsel %vm623, %v624, %v622
    %v626 = vclz %v625
    %v627 = vsub.s32 %v626, 2
    %vm628 = vcmp.gt.s32.totalorder 0, %v627
    %v629 = vsel %vm628, 0, %v627
    %v630 = vsub.s32 32, %v629
    %v631 = vshll.u32 %v622, %v629
    %v632 = vshrl.u32 %v614, %v630
    %v633 = vor.u32 %v631, %v632
    %v634 = vsub.s32 4294967266, %v629
    %v635 = vadd.s32 %v634, 127
    %v636 = vshll.u32 %v635, 23
    %v637 = vor.u32 4788187, %v636
    %v638 = vand.u32 2147483647, %v637
    %v640 = vcvt.s32.f32 %v633
    %v641 = vmul.f32 %v640, %v638
    %v642 = vxor.u32 %v641, 2147483648
    %v643 = vsel %vm560, %v642, %v641
    %v644 = vsub.s32 4, %v620
    %v645 = vsel %vm560, %v644, %v620
    %v646 = vsel %vm559, %v454, %v643
    %v647 = vsel %vm559, 0, %v645
    %v648 = vcosq.f32.pop %v646
    %v649 = vsinq.f32.pop %v646
    %vm650 = vweird.f32 %v454
    %v651 = vadd.s32 %v647, 3
    %v652 = vand.u32 %v651, 3
    %vm653 = vcmp.lt.s32.totalorder %v652, 2
    %vm654 = vcmp.eq.s32.totalorder %v652, 0
    %v655 = vxor.u32 %v649, 2147483648
    %v656 = vsel %vm654, %v648, %v655
    %vm657 = vcmp.eq.s32.totalorder %v652, 2
    %v658 = vxor.u32 %v648, 2147483648
    %v659 = vsel %vm657, %v658, %v649
    %v660 = vsel %vm653, %v656, %v659
    %v661 = vsel %vm650, nan, %v660
    %v662 = vmul.f32 %v661, %v450
    %v663 = vmul.f32 %v661, %v451
    %v664 = vmul.f32 %v661, %v452
    %v665 = vmul.f32 %v557, %v557
    %v666 = vmul.f32 %v662, %v662
    %v667 = vadd.f32 %v665, %v666
    %v668 = vmul.f32 %v663, %v663
    %v669 = vadd.f32 %v667, %v668
    %v670 = vmul.f32 %v664, %v664
    %v671 = vadd.f32 %v669, %v670
    %v672 = vrsqrt.pop %v671
    %v673 = vmul.f32 %v557, %v672
    %v674 = vmul.f32 %v662, %v672
    %v675 = vmul.f32 %v663, %v672
    %v676 = vmul.f32 %v664, %v672
    %v677 = vmul.f32 %v673, %v673
    %v678 = vmul.f32 %v674, %v674
    %v679 = vmul.f32 %v675, %v675
    %v680 = vmul.f32 %v676, %v676
    %v681 = vmul.f32 %v673, %v674
    %v682 = vmul.f32 %v673, %v675
    %v683 = vmul.f32 %v673, %v676
    %v684 = vmul.f32 %v674, %v675
    %v685 = vmul.f32 %v674, %v676
    %v686 = vmul.f32 %v675, %v676
    %v687 = vadd.f32 %v431, %v432
    %v688 = vsub.f32 %v687, %v433
    %v689 = vsub.f32 %v688, %v434
    %v690 = vadd.f32 %v677, %v678
    %v691 = vsub.f32 %v690, %v679
    %v692 = vsub.f32 %v691, %v680
    %v693 = vsub.f32 %v689, %v692
    %v694 = vmul.f32 %v693, %v693
    %v695 = vmul.f32 %v438, 2.0
    %v696 = vmul.f32 %v437, 2.0
    %v697 = vsub.f32 %v695, %v696
    %v698 = vmul.f32 %v684, 2.0
    %v699 = vmul.f32 %v683, 2.0
    %v700 = vsub.f32 %v698, %v699
    %v701 = vsub.f32 %v697, %v700
    %v702 = vmul.f32 %v701, %v701
    %v703 = vadd.f32 %v694, %v702
    %v704 = vmul.f32 %v436, 2.0
    %v705 = vmul.f32 %v439, 2.0
    %v706 = vadd.f32 %v704, %v705
    %v707 = vmul.f32 %v682, 2.0
    %v708 = vmul.f32 %v685, 2.0
    %v709 = vadd.f32 %v707, %v708
    %v710 = vsub.f32 %v706, %v709
    %v711 = vmul.f32 %v710, %v710
    %v712 = vadd.f32 %v703, %v711
    %v713 = vadd.f32 %v696, %v695
    %v714 = vadd.f32 %v699, %v698
    %v715 = vsub.f32 %v713, %v714
    %v716 = vmul.f32 %v715, %v715
    %v717 = vadd.f32 %v712, %v716
    %v718 = vsub.f32 %v431, %v432
    %v719 = vadd.f32 %v718, %v433
    %v720 = vsub.f32 %v719, %v434
    %v721 = vsub.f32 %v677, %v678
    %v722 = vadd.f32 %v721, %v679
    %v723 = vsub.f32 %v722, %v680
    %v724 = vsub.f32 %v720, %v723
    %v725 = vmul.f32 %v724, %v724
    %v726 = vadd.f32 %v717, %v725
    %v727 = vmul.f32 %v440, 2.0
    %v728 = vmul.f32 %v435, 2.0
    %v729 = vsub.f32 %v727, %v728
    %v730 = vmul.f32 %v686, 2.0
    %v731 = vmul.f32 %v681, 2.0
    %v732 = vsub.f32 %v730, %v731
    %v733 = vsub.f32 %v729, %v732
    %v734 = vmul.f32 %v733, %v733
    %v735 = vadd.f32 %v726, %v734
    %v736 = vsub.f32 %v705, %v704
    %v737 = vsub.f32 %v708, %v707
    %v738 = vsub.f32 %v736, %v737
    %v739 = vmul.f32 %v738, %v738
    %v740 = vadd.f32 %v735, %v739
    %v741 = vadd.f32 %v728, %v727
    %v742 = vadd.f32 %v731, %v730
    %v743 = vsub.f32 %v741, %v742
    %v744 = vmul.f32 %v743, %v743
    %v745 = vadd.f32 %v740, %v744
    %v746 = vsub.f32 %v718, %v433
    %v747 = vadd.f32 %v746, %v434
    %v748 = vsub.f32 %v721, %v679
    %v749 = vadd.f32 %v748, %v680
    %v750 = vsub.f32 %v747, %v749
    %v751 = vmul.f32 %v750, %v750
    %v752 = vadd.f32 %v745, %v751
    %vm753 = vcmask 1041408
    %v754 = vsel %vm753, %v752, 0.0
    %755 = vadd.xlane.f32.xlu0 %v754
    %v756 = vpop.xlane.xlu0 %755
    %v757 = vrot.slane %v756, 4
    %v758 = vadd.f32 %v756, %v757
    %v759 = vrot.slane %v758, 2
    %v760 = vadd.f32 %v758, %v759
    %v761 = vrot.slane %v760, 1
    %v762 = vadd.f32 %v760, %v761
    %s763 = vtos %v762
    %s764 = smul.f32 %s763, 0.00077160494
    %s765 = sadd.f32 %s184, %s764
    %vm766 = vcmp.eq.s32.totalorder %v110, 2
    %v767 = vstv %s764
    %v768 = vsel %vm766, %v767, 0.0
    %v769 = vadd.f32 %v188, %v768
    %v770 = vld [vmem:[%s6] sm:$0x3f]
    %v771 = vld [vmem:[%s7] sm:$0x3f]
    %v772 = vsub.f32 %v770, %v771
    %v773 = vmul.f32 %v772, %v772
    %vm774 = vcmask 78848
    %v775 = vsel %vm774, %v773, 0.0
    %776 = vadd.xlane.f32.xlu0 %v775
    %v777 = vpop.xlane.xlu0 %776
    %v778 = vrot.slane %v777, 4
    %v779 = vadd.f32 %v777, %v778
    %v780 = vrot.slane %v779, 2
    %v781 = vadd.f32 %v779, %v780
    %v782 = vrot.slane %v781, 1
    %v783 = vadd.f32 %v781, %v782
    %s784 = vtos %v783
    %s785 = smul.f32 %s784, 1.6666667e-05
    %s786 = sadd.f32 %s765, %s785
    %vm787 = vcmp.eq.s32.totalorder %v110, 3
    %v788 = vstv %s785
    %v789 = vsel %vm787, %v788, 0.0
    %v790 = vadd.f32 %v769, %v789
    %vm791 = vcmp.eq.s32.totalorder %v110, 4
    %v792 = vstv %s786
    %v793 = vsel %vm791, %v792, 0.0
    %v794 = vadd.f32 %v790, %v793
    %795 = vst [vmem:[#allocation10] sm:$0x1] %v794
    %v796 = vld [vmem:[%s9] sm:$0x7]
    %v797 = vmul.f32 %v796, 112.0
    %799 = vrot.lane.b32.xlu0 %v796, 127
    %v800 = vpop.permute.xlu0 %799
    %v802 = vmul.f32 %v796, %v800
    %v803 = vadd.f32 %v802, 1.0
    %v804 = vmul.f32 %v803, 112.0
    %805 = vrot.lane.b32.xlu0 %v796, 126
    %v806 = vpop.permute.xlu0 %805
    %v808 = vmul.f32 %v796, %v806
    %v809 = vadd.f32 %v808, 1.0
    %v810 = vmul.f32 %v809, 112.0
    %v811 = vld [vmem:[#allocation8] sm:$0x77]
    %v812 = vld [vmem:[#allocation8 + $0x8] sm:$0x77]
    %v813 = vld [vmem:[#allocation8 + $0x10] sm:$0x77]
    %v814 = vld [vmem:[#allocation8 + $0x18] sm:$0x77]
    %v815 = vld [vmem:[#allocation8 + $0x20] sm:$0x77]
    %v816 = vld [vmem:[#allocation8 + $0x28] sm:$0x77]
    %v817 = vld [vmem:[#allocation8 + $0x30] sm:$0x77]
    %v818 = vld [vmem:[#allocation8 + $0x38] sm:$0x77]
    %v819 = vld [vmem:[#allocation8 + $0x40] sm:$0x77]
    %v820 = vld [vmem:[#allocation8 + $0x48] sm:$0x77]
    %v821 = vld [vmem:[#allocation8 + $0x50] sm:$0x77]
    %v822 = vld [vmem:[#allocation8 + $0x58] sm:$0x77]
    %v823 = vld [vmem:[#allocation8 + $0x60] sm:$0x77]
    %v824 = vld [vmem:[#allocation8 + $0x68] sm:$0x77]
    %v825 = vld [vmem:[#allocation8 + $0x70] sm:$0x77]
    %v826 = vld [vmem:[#allocation8 + $0x78] sm:$0x77]
    %v827 = vld [vmem:[#allocation8 + $0x80] sm:$0x77]
    %v828 = vld [vmem:[#allocation8 + $0x88] sm:$0x77]
    %v829 = vld [vmem:[#allocation8 + $0x90] sm:$0x77]
    %v830 = vld [vmem:[#allocation8 + $0x98] sm:$0x77]
    %v831 = vld [vmem:[#allocation8 + $0xa0] sm:$0x77]
    %v832 = vld [vmem:[#allocation8 + $0xa8] sm:$0x77]
    %v833 = vld [vmem:[#allocation8 + $0xb0] sm:$0x77]
    %v834 = vld [vmem:[#allocation8 + $0xb8] sm:$0x77]
    %v835 = vld [vmem:[#allocation8 + $0xc0] sm:$0x77]
    %v836 = vld [vmem:[#allocation8 + $0xc8] sm:$0x77]
    %v837 = vld [vmem:[#allocation8 + $0xd0] sm:$0x77]
    %839 = vset.pattern.permute.xlu0 0
    %840 = vperm.xlu0 %839, %v797
    %v841 = vpop.permute.xlu0 %840
    %v843 = vunpack.c.l.s4 839922192
    %v844 = vunpack.c.0.s8 %v843
    %v845 = vlaneseq
    %v846 = vshrl.u32 %v845, 7
    %v847 = vsub.s32 %v844, %v846
    %v848 = vrot.slane %v841, %v847
    %v850 = vmul.f32 %v811, %v848
    %v851 = vmul.f32 %v812, %v848
    %v852 = vmul.f32 %v813, %v848
    %v853 = vmul.f32 %v814, %v848
    %v854 = vmul.f32 %v815, %v848
    %v855 = vmul.f32 %v816, %v848
    %v856 = vmul.f32 %v817, %v848
    %v857 = vmul.f32 %v818, %v848
    %v858 = vmul.f32 %v819, %v848
    %v859 = vmul.f32 %v820, %v848
    %v860 = vmul.f32 %v821, %v848
    %v861 = vmul.f32 %v822, %v848
    %v862 = vmul.f32 %v823, %v848
    %v863 = vmul.f32 %v824, %v848
    %v864 = vmul.f32 %v825, %v848
    %v865 = vmul.f32 %v826, %v848
    %v866 = vmul.f32 %v827, %v848
    %v867 = vmul.f32 %v828, %v848
    %v868 = vmul.f32 %v829, %v848
    %v869 = vmul.f32 %v830, %v848
    %v870 = vmul.f32 %v831, %v848
    %v871 = vmul.f32 %v832, %v848
    %v872 = vmul.f32 %v833, %v848
    %v873 = vmul.f32 %v834, %v848
    %v874 = vmul.f32 %v835, %v848
    %v875 = vmul.f32 %v836, %v848
    %v876 = vmul.f32 %v837, %v848
    %878 = vset.pattern.permute.xlu0 0
    %879 = vperm.xlu0 %878, %v804
    %v880 = vpop.permute.xlu0 %879
    %v882 = vunpack.c.l.s4 839922192
    %v883 = vunpack.c.0.s8 %v882
    %v884 = vlaneseq
    %v885 = vshrl.u32 %v884, 7
    %v886 = vsub.s32 %v883, %v885
    %v887 = vrot.slane %v880, %v886
    %v889 = vadd.f32 %v850, %v887
    %v890 = vadd.f32 %v851, %v887
    %v891 = vadd.f32 %v852, %v887
    %v892 = vadd.f32 %v853, %v887
    %v893 = vadd.f32 %v854, %v887
    %v894 = vadd.f32 %v855, %v887
    %v895 = vadd.f32 %v856, %v887
    %v896 = vadd.f32 %v857, %v887
    %v897 = vadd.f32 %v858, %v887
    %v898 = vadd.f32 %v859, %v887
    %v899 = vadd.f32 %v860, %v887
    %v900 = vadd.f32 %v861, %v887
    %v901 = vadd.f32 %v862, %v887
    %v902 = vadd.f32 %v863, %v887
    %v903 = vadd.f32 %v864, %v887
    %v904 = vadd.f32 %v865, %v887
    %v905 = vadd.f32 %v866, %v887
    %v906 = vadd.f32 %v867, %v887
    %v907 = vadd.f32 %v868, %v887
    %v908 = vadd.f32 %v869, %v887
    %v909 = vadd.f32 %v870, %v887
    %v910 = vadd.f32 %v871, %v887
    %v911 = vadd.f32 %v872, %v887
    %v912 = vadd.f32 %v873, %v887
    %v913 = vadd.f32 %v874, %v887
    %v914 = vadd.f32 %v875, %v887
    %v915 = vadd.f32 %v876, %v887
    %s916 = scalar_lea.vmem [#allocation8], 216
    %v917 = vld [vmem:[%s916] sm:$0x77]
    %v918 = vld [vmem:[%s916 + $0x8] sm:$0x77]
    %v919 = vld [vmem:[%s916 + $0x10] sm:$0x77]
    %v920 = vld [vmem:[%s916 + $0x18] sm:$0x77]
    %v921 = vld [vmem:[%s916 + $0x20] sm:$0x77]
    %v922 = vld [vmem:[%s916 + $0x28] sm:$0x77]
    %v923 = vld [vmem:[%s916 + $0x30] sm:$0x77]
    %v924 = vld [vmem:[%s916 + $0x38] sm:$0x77]
    %v925 = vld [vmem:[%s916 + $0x40] sm:$0x77]
    %v926 = vld [vmem:[%s916 + $0x48] sm:$0x77]
    %v927 = vld [vmem:[%s916 + $0x50] sm:$0x77]
    %v928 = vld [vmem:[%s916 + $0x58] sm:$0x77]
    %v929 = vld [vmem:[%s916 + $0x60] sm:$0x77]
    %v930 = vld [vmem:[%s916 + $0x68] sm:$0x77]
    %v931 = vld [vmem:[%s916 + $0x70] sm:$0x77]
    %v932 = vld [vmem:[%s916 + $0x78] sm:$0x77]
    %v933 = vld [vmem:[%s916 + $0x80] sm:$0x77]
    %v934 = vld [vmem:[%s916 + $0x88] sm:$0x77]
    %v935 = vld [vmem:[%s916 + $0x90] sm:$0x77]
    %v936 = vld [vmem:[%s916 + $0x98] sm:$0x77]
    %v937 = vld [vmem:[%s916 + $0xa0] sm:$0x77]
    %v938 = vld [vmem:[%s916 + $0xa8] sm:$0x77]
    %v939 = vld [vmem:[%s916 + $0xb0] sm:$0x77]
    %v940 = vld [vmem:[%s916 + $0xb8] sm:$0x77]
    %v941 = vld [vmem:[%s916 + $0xc0] sm:$0x77]
    %v942 = vld [vmem:[%s916 + $0xc8] sm:$0x77]
    %v943 = vld [vmem:[%s916 + $0xd0] sm:$0x77]
    %v944 = vmul.f32 %v917, %v848
    %v945 = vmul.f32 %v918, %v848
    %v946 = vmul.f32 %v919, %v848
    %v947 = vmul.f32 %v920, %v848
    %v948 = vmul.f32 %v921, %v848
    %v949 = vmul.f32 %v922, %v848
    %v950 = vmul.f32 %v923, %v848
    %v951 = vmul.f32 %v924, %v848
    %v952 = vmul.f32 %v925, %v848
    %v953 = vmul.f32 %v926, %v848
    %v954 = vmul.f32 %v927, %v848
    %v955 = vmul.f32 %v928, %v848
    %v956 = vmul.f32 %v929, %v848
    %v957 = vmul.f32 %v930, %v848
    %v958 = vmul.f32 %v931, %v848
    %v959 = vmul.f32 %v932, %v848
    %v960 = vmul.f32 %v933, %v848
    %v961 = vmul.f32 %v934, %v848
    %v962 = vmul.f32 %v935, %v848
    %v963 = vmul.f32 %v936, %v848
    %v964 = vmul.f32 %v937, %v848
    %v965 = vmul.f32 %v938, %v848
    %v966 = vmul.f32 %v939, %v848
    %v967 = vmul.f32 %v940, %v848
    %v968 = vmul.f32 %v941, %v848
    %v969 = vmul.f32 %v942, %v848
    %v970 = vmul.f32 %v943, %v848
    %972 = vset.pattern.permute.xlu0 0
    %973 = vperm.xlu0 %972, %v810
    %v974 = vpop.permute.xlu0 %973
    %v976 = vunpack.c.l.s4 839922192
    %v977 = vunpack.c.0.s8 %v976
    %v978 = vlaneseq
    %v979 = vshrl.u32 %v978, 7
    %v980 = vsub.s32 %v977, %v979
    %v981 = vrot.slane %v974, %v980
    %v983 = vadd.f32 %v944, %v981
    %v984 = vadd.f32 %v945, %v981
    %v985 = vadd.f32 %v946, %v981
    %v986 = vadd.f32 %v947, %v981
    %v987 = vadd.f32 %v948, %v981
    %v988 = vadd.f32 %v949, %v981
    %v989 = vadd.f32 %v950, %v981
    %v990 = vadd.f32 %v951, %v981
    %v991 = vadd.f32 %v952, %v981
    %v992 = vadd.f32 %v953, %v981
    %v993 = vadd.f32 %v954, %v981
    %v994 = vadd.f32 %v955, %v981
    %v995 = vadd.f32 %v956, %v981
    %v996 = vadd.f32 %v957, %v981
    %v997 = vadd.f32 %v958, %v981
    %v998 = vadd.f32 %v959, %v981
    %v999 = vadd.f32 %v960, %v981
    %v1000 = vadd.f32 %v961, %v981
    %v1001 = vadd.f32 %v962, %v981
    %v1002 = vadd.f32 %v963, %v981
    %v1003 = vadd.f32 %v964, %v981
    %v1004 = vadd.f32 %v965, %v981
    %v1005 = vadd.f32 %v966, %v981
    %v1006 = vadd.f32 %v967, %v981
    %v1007 = vadd.f32 %v968, %v981
    %v1008 = vadd.f32 %v969, %v981
    %v1009 = vadd.f32 %v970, %v981
    %s1010 = scalar_lea.vmem [#allocation8], 432
    %v1011 = vld [vmem:[%s1010] sm:$0x77]
    %v1012 = vld [vmem:[%s1010 + $0x8] sm:$0x77]
    %v1013 = vld [vmem:[%s1010 + $0x10] sm:$0x77]
    %v1014 = vld [vmem:[%s1010 + $0x18] sm:$0x77]
    %v1015 = vld [vmem:[%s1010 + $0x20] sm:$0x77]
    %v1016 = vld [vmem:[%s1010 + $0x28] sm:$0x77]
    %v1017 = vld [vmem:[%s1010 + $0x30] sm:$0x77]
    %v1018 = vld [vmem:[%s1010 + $0x38] sm:$0x77]
    %v1019 = vld [vmem:[%s1010 + $0x40] sm:$0x77]
    %v1020 = vld [vmem:[%s1010 + $0x48] sm:$0x77]
    %v1021 = vld [vmem:[%s1010 + $0x50] sm:$0x77]
    %v1022 = vld [vmem:[%s1010 + $0x58] sm:$0x77]
    %v1023 = vld [vmem:[%s1010 + $0x60] sm:$0x77]
    %v1024 = vld [vmem:[%s1010 + $0x68] sm:$0x77]
    %v1025 = vld [vmem:[%s1010 + $0x70] sm:$0x77]
    %v1026 = vld [vmem:[%s1010 + $0x78] sm:$0x77]
    %v1027 = vld [vmem:[%s1010 + $0x80] sm:$0x77]
    %v1028 = vld [vmem:[%s1010 + $0x88] sm:$0x77]
    %v1029 = vld [vmem:[%s1010 + $0x90] sm:$0x77]
    %v1030 = vld [vmem:[%s1010 + $0x98] sm:$0x77]
    %v1031 = vld [vmem:[%s1010 + $0xa0] sm:$0x77]
    %v1032 = vld [vmem:[%s1010 + $0xa8] sm:$0x77]
    %v1033 = vld [vmem:[%s1010 + $0xb0] sm:$0x77]
    %v1034 = vld [vmem:[%s1010 + $0xb8] sm:$0x77]
    %v1035 = vld [vmem:[%s1010 + $0xc0] sm:$0x77]
    %v1036 = vld [vmem:[%s1010 + $0xc8] sm:$0x77]
    %v1037 = vld [vmem:[%s1010 + $0xd0] sm:$0x77]
    %1038 = vst [vmem:[#allocation11] sm:$0x77] %v889
    %1039 = vst [vmem:[#allocation11 + $0x8] sm:$0x77] %v890
    %1040 = vst [vmem:[#allocation11 + $0x10] sm:$0x77] %v891
    %1041 = vst [vmem:[#allocation11 + $0x18] sm:$0x77] %v892
    %1042 = vst [vmem:[#allocation11 + $0x20] sm:$0x77] %v893
    %1043 = vst [vmem:[#allocation11 + $0x28] sm:$0x77] %v894
    %1044 = vst [vmem:[#allocation11 + $0x30] sm:$0x77] %v895
    %1045 = vst [vmem:[#allocation11 + $0x38] sm:$0x77] %v896
    %1046 = vst [vmem:[#allocation11 + $0x40] sm:$0x77] %v897
    %1047 = vst [vmem:[#allocation11 + $0x48] sm:$0x77] %v898
    %1048 = vst [vmem:[#allocation11 + $0x50] sm:$0x77] %v899
    %1049 = vst [vmem:[#allocation11 + $0x58] sm:$0x77] %v900
    %1050 = vst [vmem:[#allocation11 + $0x60] sm:$0x77] %v901
    %1051 = vst [vmem:[#allocation11 + $0x68] sm:$0x77] %v902
    %1052 = vst [vmem:[#allocation11 + $0x70] sm:$0x77] %v903
    %1053 = vst [vmem:[#allocation11 + $0x78] sm:$0x77] %v904
    %1054 = vst [vmem:[#allocation11 + $0x80] sm:$0x77] %v905
    %1055 = vst [vmem:[#allocation11 + $0x88] sm:$0x77] %v906
    %1056 = vst [vmem:[#allocation11 + $0x90] sm:$0x77] %v907
    %1057 = vst [vmem:[#allocation11 + $0x98] sm:$0x77] %v908
    %1058 = vst [vmem:[#allocation11 + $0xa0] sm:$0x77] %v909
    %1059 = vst [vmem:[#allocation11 + $0xa8] sm:$0x77] %v910
    %1060 = vst [vmem:[#allocation11 + $0xb0] sm:$0x77] %v911
    %1061 = vst [vmem:[#allocation11 + $0xb8] sm:$0x77] %v912
    %1062 = vst [vmem:[#allocation11 + $0xc0] sm:$0x77] %v913
    %1063 = vst [vmem:[#allocation11 + $0xc8] sm:$0x77] %v914
    %vm1064 = vcmask 1042432
    %vm1065 = vcmask 866308
    %vm1066 = vmor %vm1065, %vm1064
    %1067 = vst.msk [vmem:[#allocation11 + $0xd0] sm:$0x77] %vm1066, %v915
    %1068 = vst [vmem:[#allocation13] sm:$0x77] %v983
    %1069 = vst [vmem:[#allocation13 + $0x8] sm:$0x77] %v984
    %1070 = vst [vmem:[#allocation13 + $0x10] sm:$0x77] %v985
    %1071 = vst [vmem:[#allocation13 + $0x18] sm:$0x77] %v986
    %1072 = vst [vmem:[#allocation13 + $0x20] sm:$0x77] %v987
    %1073 = vst [vmem:[#allocation13 + $0x28] sm:$0x77] %v988
    %1074 = vst [vmem:[#allocation13 + $0x30] sm:$0x77] %v989
    %1075 = vst [vmem:[#allocation13 + $0x38] sm:$0x77] %v990
    %1076 = vst [vmem:[#allocation13 + $0x40] sm:$0x77] %v991
    %1077 = vst [vmem:[#allocation13 + $0x48] sm:$0x77] %v992
    %1078 = vst [vmem:[#allocation13 + $0x50] sm:$0x77] %v993
    %1079 = vst [vmem:[#allocation13 + $0x58] sm:$0x77] %v994
    %1080 = vst [vmem:[#allocation13 + $0x60] sm:$0x77] %v995
    %1081 = vst [vmem:[#allocation13 + $0x68] sm:$0x77] %v996
    %1082 = vst [vmem:[#allocation13 + $0x70] sm:$0x77] %v997
    %1083 = vst [vmem:[#allocation13 + $0x78] sm:$0x77] %v998
    %1084 = vst [vmem:[#allocation13 + $0x80] sm:$0x77] %v999
    %1085 = vst [vmem:[#allocation13 + $0x88] sm:$0x77] %v1000
    %1086 = vst [vmem:[#allocation13 + $0x90] sm:$0x77] %v1001
    %1087 = vst [vmem:[#allocation13 + $0x98] sm:$0x77] %v1002
    %1088 = vst [vmem:[#allocation13 + $0xa0] sm:$0x77] %v1003
    %1089 = vst [vmem:[#allocation13 + $0xa8] sm:$0x77] %v1004
    %1090 = vst [vmem:[#allocation13 + $0xb0] sm:$0x77] %v1005
    %1091 = vst [vmem:[#allocation13 + $0xb8] sm:$0x77] %v1006
    %1092 = vst [vmem:[#allocation13 + $0xc0] sm:$0x77] %v1007
    %1093 = vst [vmem:[#allocation13 + $0xc8] sm:$0x77] %v1008
    %1094 = vst.msk [vmem:[#allocation13 + $0xd0] sm:$0x77] %vm1066, %v1009
    %1095 = vst [vmem:[#allocation14] sm:$0x77] %v1011
    %1096 = vst [vmem:[#allocation14 + $0x8] sm:$0x77] %v1012
    %1097 = vst [vmem:[#allocation14 + $0x10] sm:$0x77] %v1013
    %1098 = vst [vmem:[#allocation14 + $0x18] sm:$0x77] %v1014
    %1099 = vst [vmem:[#allocation14 + $0x20] sm:$0x77] %v1015
    %1100 = vst [vmem:[#allocation14 + $0x28] sm:$0x77] %v1016
    %1101 = vst [vmem:[#allocation14 + $0x30] sm:$0x77] %v1017
    %1102 = vst [vmem:[#allocation14 + $0x38] sm:$0x77] %v1018
    %1103 = vst [vmem:[#allocation14 + $0x40] sm:$0x77] %v1019
    %1104 = vst [vmem:[#allocation14 + $0x48] sm:$0x77] %v1020
    %1105 = vst [vmem:[#allocation14 + $0x50] sm:$0x77] %v1021
    %1106 = vst [vmem:[#allocation14 + $0x58] sm:$0x77] %v1022
    %1107 = vst [vmem:[#allocation14 + $0x60] sm:$0x77] %v1023
    %1108 = vst [vmem:[#allocation14 + $0x68] sm:$0x77] %v1024
    %1109 = vst [vmem:[#allocation14 + $0x70] sm:$0x77] %v1025
    %1110 = vst [vmem:[#allocation14 + $0x78] sm:$0x77] %v1026
    %1111 = vst [vmem:[#allocation14 + $0x80] sm:$0x77] %v1027
    %1112 = vst [vmem:[#allocation14 + $0x88] sm:$0x77] %v1028
    %1113 = vst [vmem:[#allocation14 + $0x90] sm:$0x77] %v1029
    %1114 = vst [vmem:[#allocation14 + $0x98] sm:$0x77] %v1030
    %1115 = vst [vmem:[#allocation14 + $0xa0] sm:$0x77] %v1031
    %1116 = vst [vmem:[#allocation14 + $0xa8] sm:$0x77] %v1032
    %1117 = vst [vmem:[#allocation14 + $0xb0] sm:$0x77] %v1033
    %1118 = vst [vmem:[#allocation14 + $0xb8] sm:$0x77] %v1034
    %1119 = vst [vmem:[#allocation14 + $0xc0] sm:$0x77] %v1035
    %1120 = vst [vmem:[#allocation14 + $0xc8] sm:$0x77] %v1036
    %1121 = vst.msk [vmem:[#allocation14 + $0xd0] sm:$0x77] %vm1066, %v1037
    %v1122 = vcvt.f32.s32.to.zero.pseudo %v889
    %v1123 = vcvt.f32.s32.to.zero.pseudo %v890
    %v1124 = vcvt.f32.s32.to.zero.pseudo %v891
    %v1125 = vcvt.f32.s32.to.zero.pseudo %v892
    %v1126 = vcvt.f32.s32.to.zero.pseudo %v893
    %v1127 = vcvt.f32.s32.to.zero.pseudo %v894
    %v1128 = vcvt.f32.s32.to.zero.pseudo %v895
    %v1129 = vcvt.f32.s32.to.zero.pseudo %v896
    %v1130 = vcvt.f32.s32.to.zero.pseudo %v897
    %v1131 = vcvt.f32.s32.to.zero.pseudo %v898
    %v1132 = vcvt.f32.s32.to.zero.pseudo %v899
    %v1133 = vcvt.f32.s32.to.zero.pseudo %v900
    %v1134 = vcvt.f32.s32.to.zero.pseudo %v901
    %v1135 = vcvt.f32.s32.to.zero.pseudo %v902
    %v1136 = vcvt.f32.s32.to.zero.pseudo %v903
    %v1137 = vcvt.f32.s32.to.zero.pseudo %v904
    %v1138 = vcvt.f32.s32.to.zero.pseudo %v905
    %v1139 = vcvt.f32.s32.to.zero.pseudo %v906
    %v1140 = vcvt.f32.s32.to.zero.pseudo %v907
    %v1141 = vcvt.f32.s32.to.zero.pseudo %v908
    %v1142 = vcvt.f32.s32.to.zero.pseudo %v909
    %v1143 = vcvt.f32.s32.to.zero.pseudo %v910
    %v1144 = vcvt.f32.s32.to.zero.pseudo %v911
    %v1145 = vcvt.f32.s32.to.zero.pseudo %v912
    %v1146 = vcvt.f32.s32.to.zero.pseudo %v913
    %v1147 = vcvt.f32.s32.to.zero.pseudo %v914
    %v1148 = vcvt.f32.s32.to.zero.pseudo %v915
    %v1149 = vcvt.f32.s32.to.zero.pseudo %v983
    %v1150 = vcvt.f32.s32.to.zero.pseudo %v984
    %v1151 = vcvt.f32.s32.to.zero.pseudo %v985
    %v1152 = vcvt.f32.s32.to.zero.pseudo %v986
    %v1153 = vcvt.f32.s32.to.zero.pseudo %v987
    %v1154 = vcvt.f32.s32.to.zero.pseudo %v988
    %v1155 = vcvt.f32.s32.to.zero.pseudo %v989
    %v1156 = vcvt.f32.s32.to.zero.pseudo %v990
    %v1157 = vcvt.f32.s32.to.zero.pseudo %v991
    %v1158 = vcvt.f32.s32.to.zero.pseudo %v992
    %v1159 = vcvt.f32.s32.to.zero.pseudo %v993
    %v1160 = vcvt.f32.s32.to.zero.pseudo %v994
    %v1161 = vcvt.f32.s32.to.zero.pseudo %v995
    %v1162 = vcvt.f32.s32.to.zero.pseudo %v996
    %v1163 = vcvt.f32.s32.to.zero.pseudo %v997
    %v1164 = vcvt.f32.s32.to.zero.pseudo %v998
    %v1165 = vcvt.f32.s32.to.zero.pseudo %v999
    %v1166 = vcvt.f32.s32.to.zero.pseudo %v1000
    %v1167 = vcvt.f32.s32.to.zero.pseudo %v1001
    %v1168 = vcvt.f32.s32.to.zero.pseudo %v1002
    %v1169 = vcvt.f32.s32.to.zero.pseudo %v1003
    %v1170 = vcvt.f32.s32.to.zero.pseudo %v1004
    %v1171 = vcvt.f32.s32.to.zero.pseudo %v1005
    %v1172 = vcvt.f32.s32.to.zero.pseudo %v1006
    %v1173 = vcvt.f32.s32.to.zero.pseudo %v1007
    %v1174 = vcvt.f32.s32.to.zero.pseudo %v1008
    %v1175 = vcvt.f32.s32.to.zero.pseudo %v1009
    %vm1176 = vcmp.ge.s32.totalorder %v1122, 0
    %vm1177 = vcmp.ge.s32.totalorder %v1123, 0
    %vm1178 = vcmp.ge.s32.totalorder %v1124, 0
    %vm1179 = vcmp.ge.s32.totalorder %v1125, 0
    %vm1180 = vcmp.ge.s32.totalorder %v1126, 0
    %vm1181 = vcmp.ge.s32.totalorder %v1127, 0
    %vm1182 = vcmp.ge.s32.totalorder %v1128, 0
    %vm1183 = vcmp.ge.s32.totalorder %v1129, 0
    %vm1184 = vcmp.ge.s32.totalorder %v1130, 0
    %vm1185 = vcmp.ge.s32.totalorder %v1131, 0
    %vm1186 = vcmp.ge.s32.totalorder %v1132, 0
    %vm1187 = vcmp.ge.s32.totalorder %v1133, 0
    %vm1188 = vcmp.ge.s32.totalorder %v1134, 0
    %vm1189 = vcmp.ge.s32.totalorder %v1135, 0
    %vm1190 = vcmp.ge.s32.totalorder %v1136, 0
    %vm1191 = vcmp.ge.s32.totalorder %v1137, 0
    %vm1192 = vcmp.ge.s32.totalorder %v1138, 0
    %vm1193 = vcmp.ge.s32.totalorder %v1139, 0
    %vm1194 = vcmp.ge.s32.totalorder %v1140, 0
    %vm1195 = vcmp.ge.s32.totalorder %v1141, 0
    %vm1196 = vcmp.ge.s32.totalorder %v1142, 0
    %vm1197 = vcmp.ge.s32.totalorder %v1143, 0
    %vm1198 = vcmp.ge.s32.totalorder %v1144, 0
    %vm1199 = vcmp.ge.s32.totalorder %v1145, 0
    %vm1200 = vcmp.ge.s32.totalorder %v1146, 0
    %vm1201 = vcmp.ge.s32.totalorder %v1147, 0
    %vm1202 = vcmp.ge.s32.totalorder %v1148, 0
    %vm1203 = vcmp.lt.s32.totalorder %v1122, 224
    %vm1204 = vcmp.lt.s32.totalorder %v1123, 224
    %vm1205 = vcmp.lt.s32.totalorder %v1124, 224
    %vm1206 = vcmp.lt.s32.totalorder %v1125, 224
    %vm1207 = vcmp.lt.s32.totalorder %v1126, 224
    %vm1208 = vcmp.lt.s32.totalorder %v1127, 224
    %vm1209 = vcmp.lt.s32.totalorder %v1128, 224
    %vm1210 = vcmp.lt.s32.totalorder %v1129, 224
    %vm1211 = vcmp.lt.s32.totalorder %v1130, 224
    %vm1212 = vcmp.lt.s32.totalorder %v1131, 224
    %vm1213 = vcmp.lt.s32.totalorder %v1132, 224
    %vm1214 = vcmp.lt.s32.totalorder %v1133, 224
    %vm1215 = vcmp.lt.s32.totalorder %v1134, 224
    %vm1216 = vcmp.lt.s32.totalorder %v1135, 224
    %vm1217 = vcmp.lt.s32.totalorder %v1136, 224
    %vm1218 = vcmp.lt.s32.totalorder %v1137, 224
    %vm1219 = vcmp.lt.s32.totalorder %v1138, 224
    %vm1220 = vcmp.lt.s32.totalorder %v1139, 224
    %vm1221 = vcmp.lt.s32.totalorder %v1140, 224
    %vm1222 = vcmp.lt.s32.totalorder %v1141, 224
    %vm1223 = vcmp.lt.s32.totalorder %v1142, 224
    %vm1224 = vcmp.lt.s32.totalorder %v1143, 224
    %vm1225 = vcmp.lt.s32.totalorder %v1144, 224
    %vm1226 = vcmp.lt.s32.totalorder %v1145, 224
    %vm1227 = vcmp.lt.s32.totalorder %v1146, 224
    %vm1228 = vcmp.lt.s32.totalorder %v1147, 224
    %vm1229 = vcmp.lt.s32.totalorder %v1148, 224
    %vm1230 = vmand %vm1176, %vm1203
    %vm1231 = vmand %vm1177, %vm1204
    %vm1232 = vmand %vm1178, %vm1205
    %vm1233 = vmand %vm1179, %vm1206
    %vm1234 = vmand %vm1180, %vm1207
    %vm1235 = vmand %vm1181, %vm1208
    %vm1236 = vmand %vm1182, %vm1209
    %vm1237 = vmand %vm1183, %vm1210
    %vm1238 = vmand %vm1184, %vm1211
    %vm1239 = vmand %vm1185, %vm1212
    %vm1240 = vmand %vm1186, %vm1213
    %vm1241 = vmand %vm1187, %vm1214
    %vm1242 = vmand %vm1188, %vm1215
    %vm1243 = vmand %vm1189, %vm1216
    %vm1244 = vmand %vm1190, %vm1217
    %vm1245 = vmand %vm1191, %vm1218
    %vm1246 = vmand %vm1192, %vm1219
    %vm1247 = vmand %vm1193, %vm1220
    %vm1248 = vmand %vm1194, %vm1221
    %vm1249 = vmand %vm1195, %vm1222
    %vm1250 = vmand %vm1196, %vm1223
    %vm1251 = vmand %vm1197, %vm1224
    %vm1252 = vmand %vm1198, %vm1225
    %vm1253 = vmand %vm1199, %vm1226
    %vm1254 = vmand %vm1200, %vm1227
    %vm1255 = vmand %vm1201, %vm1228
    %vm1256 = vmand %vm1202, %vm1229
    %vm1257 = vcmp.ge.s32.totalorder %v1149, 0
    %vm1258 = vcmp.ge.s32.totalorder %v1150, 0
    %vm1259 = vcmp.ge.s32.totalorder %v1151, 0
    %vm1260 = vcmp.ge.s32.totalorder %v1152, 0
    %vm1261 = vcmp.ge.s32.totalorder %v1153, 0
    %vm1262 = vcmp.ge.s32.totalorder %v1154, 0
    %vm1263 = vcmp.ge.s32.totalorder %v1155, 0
    %vm1264 = vcmp.ge.s32.totalorder %v1156, 0
    %vm1265 = vcmp.ge.s32.totalorder %v1157, 0
    %vm1266 = vcmp.ge.s32.totalorder %v1158, 0
    %vm1267 = vcmp.ge.s32.totalorder %v1159, 0
    %vm1268 = vcmp.ge.s32.totalorder %v1160, 0
    %vm1269 = vcmp.ge.s32.totalorder %v1161, 0
    %vm1270 = vcmp.ge.s32.totalorder %v1162, 0
    %vm1271 = vcmp.ge.s32.totalorder %v1163, 0
    %vm1272 = vcmp.ge.s32.totalorder %v1164, 0
    %vm1273 = vcmp.ge.s32.totalorder %v1165, 0
    %vm1274 = vcmp.ge.s32.totalorder %v1166, 0
    %vm1275 = vcmp.ge.s32.totalorder %v1167, 0
    %vm1276 = vcmp.ge.s32.totalorder %v1168, 0
    %vm1277 = vcmp.ge.s32.totalorder %v1169, 0
    %vm1278 = vcmp.ge.s32.totalorder %v1170, 0
    %vm1279 = vcmp.ge.s32.totalorder %v1171, 0
    %vm1280 = vcmp.ge.s32.totalorder %v1172, 0
    %vm1281 = vcmp.ge.s32.totalorder %v1173, 0
    %vm1282 = vcmp.ge.s32.totalorder %v1174, 0
    %vm1283 = vcmp.ge.s32.totalorder %v1175, 0
    %vm1284 = vmand %vm1230, %vm1257
    %vm1285 = vmand %vm1231, %vm1258
    %vm1286 = vmand %vm1232, %vm1259
    %vm1287 = vmand %vm1233, %vm1260
    %vm1288 = vmand %vm1234, %vm1261
    %vm1289 = vmand %vm1235, %vm1262
    %vm1290 = vmand %vm1236, %vm1263
    %vm1291 = vmand %vm1237, %vm1264
    %vm1292 = vmand %vm1238, %vm1265
    %vm1293 = vmand %vm1239, %vm1266
    %vm1294 = vmand %vm1240, %vm1267
    %vm1295 = vmand %vm1241, %vm1268
    %vm1296 = vmand %vm1242, %vm1269
    %vm1297 = vmand %vm1243, %vm1270
    %vm1298 = vmand %vm1244, %vm1271
    %vm1299 = vmand %vm1245, %vm1272
    %vm1300 = vmand %vm1246, %vm1273
    %vm1301 = vmand %vm1247, %vm1274
    %vm1302 = vmand %vm1248, %vm1275
    %vm1303 = vmand %vm1249, %vm1276
    %vm1304 = vmand %vm1250, %vm1277
    %vm1305 = vmand %vm1251, %vm1278
    %vm1306 = vmand %vm1252, %vm1279
    %vm1307 = vmand %vm1253, %vm1280
    %vm1308 = vmand %vm1254, %vm1281
    %vm1309 = vmand %vm1255, %vm1282
    %vm1310 = vmand %vm1256, %vm1283
    %vm1311 = vcmp.lt.s32.totalorder %v1149, 224
    %vm1312 = vcmp.lt.s32.totalorder %v1150, 224
    %vm1313 = vcmp.lt.s32.totalorder %v1151, 224
    %vm1314 = vcmp.lt.s32.totalorder %v1152, 224
    %vm1315 = vcmp.lt.s32.totalorder %v1153, 224
    %vm1316 = vcmp.lt.s32.totalorder %v1154, 224
    %vm1317 = vcmp.lt.s32.totalorder %v1155, 224
    %vm1318 = vcmp.lt.s32.totalorder %v1156, 224
    %vm1319 = vcmp.lt.s32.totalorder %v1157, 224
    %vm1320 = vcmp.lt.s32.totalorder %v1158, 224
    %vm1321 = vcmp.lt.s32.totalorder %v1159, 224
    %vm1322 = vcmp.lt.s32.totalorder %v1160, 224
    %vm1323 = vcmp.lt.s32.totalorder %v1161, 224
    %vm1324 = vcmp.lt.s32.totalorder %v1162, 224
    %vm1325 = vcmp.lt.s32.totalorder %v1163, 224
    %vm1326 = vcmp.lt.s32.totalorder %v1164, 224
    %vm1327 = vcmp.lt.s32.totalorder %v1165, 224
    %vm1328 = vcmp.lt.s32.totalorder %v1166, 224
    %vm1329 = vcmp.lt.s32.totalorder %v1167, 224
    %vm1330 = vcmp.lt.s32.totalorder %v1168, 224
    %vm1331 = vcmp.lt.s32.totalorder %v1169, 224
    %vm1332 = vcmp.lt.s32.totalorder %v1170, 224
    %vm1333 = vcmp.lt.s32.totalorder %v1171, 224
    %vm1334 = vcmp.lt.s32.totalorder %v1172, 224
    %vm1335 = vcmp.lt.s32.totalorder %v1173, 224
    %vm1336 = vcmp.lt.s32.totalorder %v1174, 224
    %vm1337 = vcmp.lt.s32.totalorder %v1175, 224
    %vm1338 = vmand %vm1284, %vm1311
    %vm1339 = vmand %vm1285, %vm1312
    %vm1340 = vmand %vm1286, %vm1313
    %vm1341 = vmand %vm1287, %vm1314
    %vm1342 = vmand %vm1288, %vm1315
    %vm1343 = vmand %vm1289, %vm1316
    %vm1344 = vmand %vm1290, %vm1317
    %vm1345 = vmand %vm1291, %vm1318
    %vm1346 = vmand %vm1292, %vm1319
    %vm1347 = vmand %vm1293, %vm1320
    %vm1348 = vmand %vm1294, %vm1321
    %vm1349 = vmand %vm1295, %vm1322
    %vm1350 = vmand %vm1296, %vm1323
    %vm1351 = vmand %vm1297, %vm1324
    %vm1352 = vmand %vm1298, %vm1325
    %vm1353 = vmand %vm1299, %vm1326
    %vm1354 = vmand %vm1300, %vm1327
    %vm1355 = vmand %vm1301, %vm1328
    %vm1356 = vmand %vm1302, %vm1329
    %vm1357 = vmand %vm1303, %vm1330
    %vm1358 = vmand %vm1304, %vm1331
    %vm1359 = vmand %vm1305, %vm1332
    %vm1360 = vmand %vm1306, %vm1333
    %vm1361 = vmand %vm1307, %vm1334
    %vm1362 = vmand %vm1308, %vm1335
    %vm1363 = vmand %vm1309, %vm1336
    %vm1364 = vmand %vm1310, %vm1337
    %v1365 = vsel %vm1338, %v1122, 0
    %v1366 = vsel %vm1339, %v1123, 0
    %v1367 = vsel %vm1340, %v1124, 0
    %v1368 = vsel %vm1341, %v1125, 0
    %v1369 = vsel %vm1342, %v1126, 0
    %v1370 = vsel %vm1343, %v1127, 0
    %v1371 = vsel %vm1344, %v1128, 0
    %v1372 = vsel %vm1345, %v1129, 0
    %v1373 = vsel %vm1346, %v1130, 0
    %v1374 = vsel %vm1347, %v1131, 0
    %v1375 = vsel %vm1348, %v1132, 0
    %v1376 = vsel %vm1349, %v1133, 0
    %v1377 = vsel %vm1350, %v1134, 0
    %v1378 = vsel %vm1351, %v1135, 0
    %v1379 = vsel %vm1352, %v1136, 0
    %v1380 = vsel %vm1353, %v1137, 0
    %v1381 = vsel %vm1354, %v1138, 0
    %v1382 = vsel %vm1355, %v1139, 0
    %v1383 = vsel %vm1356, %v1140, 0
    %v1384 = vsel %vm1357, %v1141, 0
    %v1385 = vsel %vm1358, %v1142, 0
    %v1386 = vsel %vm1359, %v1143, 0
    %v1387 = vsel %vm1360, %v1144, 0
    %v1388 = vsel %vm1361, %v1145, 0
    %v1389 = vsel %vm1362, %v1146, 0
    %v1390 = vsel %vm1363, %v1147, 0
    %v1391 = vsel %vm1364, %v1148, 0
    %1392 = vst [vmem:[#allocation16] sm:$0x77] %v1365
    %1393 = vst [vmem:[#allocation16 + $0x8] sm:$0x77] %v1366
    %1394 = vst [vmem:[#allocation16 + $0x10] sm:$0x77] %v1367
    %1395 = vst [vmem:[#allocation16 + $0x18] sm:$0x77] %v1368
    %1396 = vst [vmem:[#allocation16 + $0x20] sm:$0x77] %v1369
    %1397 = vst [vmem:[#allocation16 + $0x28] sm:$0x77] %v1370
    %1398 = vst [vmem:[#allocation16 + $0x30] sm:$0x77] %v1371
    %1399 = vst [vmem:[#allocation16 + $0x38] sm:$0x77] %v1372
    %1400 = vst [vmem:[#allocation16 + $0x40] sm:$0x77] %v1373
    %1401 = vst [vmem:[#allocation16 + $0x48] sm:$0x77] %v1374
    %1402 = vst [vmem:[#allocation16 + $0x50] sm:$0x77] %v1375
    %1403 = vst [vmem:[#allocation16 + $0x58] sm:$0x77] %v1376
    %1404 = vst [vmem:[#allocation16 + $0x60] sm:$0x77] %v1377
    %1405 = vst [vmem:[#allocation16 + $0x68] sm:$0x77] %v1378
    %1406 = vst [vmem:[#allocation16 + $0x70] sm:$0x77] %v1379
    %1407 = vst [vmem:[#allocation16 + $0x78] sm:$0x77] %v1380
    %1408 = vst [vmem:[#allocation16 + $0x80] sm:$0x77] %v1381
    %1409 = vst [vmem:[#allocation16 + $0x88] sm:$0x77] %v1382
    %1410 = vst [vmem:[#allocation16 + $0x90] sm:$0x77] %v1383
    %1411 = vst [vmem:[#allocation16 + $0x98] sm:$0x77] %v1384
    %1412 = vst [vmem:[#allocation16 + $0xa0] sm:$0x77] %v1385
    %1413 = vst [vmem:[#allocation16 + $0xa8] sm:$0x77] %v1386
    %1414 = vst [vmem:[#allocation16 + $0xb0] sm:$0x77] %v1387
    %1415 = vst [vmem:[#allocation16 + $0xb8] sm:$0x77] %v1388
    %1416 = vst [vmem:[#allocation16 + $0xc0] sm:$0x77] %v1389
    %1417 = vst [vmem:[#allocation16 + $0xc8] sm:$0x77] %v1390
    %1418 = vst.msk [vmem:[#allocation16 + $0xd0] sm:$0x77] %vm1066, %v1391
    %v1419 = vsel %vm1338, %v1149, 0
    %v1420 = vsel %vm1339, %v1150, 0
    %v1421 = vsel %vm1340, %v1151, 0
    %v1422 = vsel %vm1341, %v1152, 0
    %v1423 = vsel %vm1342, %v1153, 0
    %v1424 = vsel %vm1343, %v1154, 0
    %v1425 = vsel %vm1344, %v1155, 0
    %v1426 = vsel %vm1345, %v1156, 0
    %v1427 = vsel %vm1346, %v1157, 0
    %v1428 = vsel %vm1347, %v1158, 0
    %v1429 = vsel %vm1348, %v1159, 0
    %v1430 = vsel %vm1349, %v1160, 0
    %v1431 = vsel %vm1350, %v1161, 0
    %v1432 = vsel %vm1351, %v1162, 0
    %v1433 = vsel %vm1352, %v1163, 0
    %v1434 = vsel %vm1353, %v1164, 0
    %v1435 = vsel %vm1354, %v1165, 0
    %v1436 = vsel %vm1355, %v1166, 0
    %v1437 = vsel %vm1356, %v1167, 0
    %v1438 = vsel %vm1357, %v1168, 0
    %v1439 = vsel %vm1358, %v1169, 0
    %v1440 = vsel %vm1359, %v1170, 0
    %v1441 = vsel %vm1360, %v1171, 0
    %v1442 = vsel %vm1361, %v1172, 0
    %v1443 = vsel %vm1362, %v1173, 0
    %v1444 = vsel %vm1363, %v1174, 0
    %v1445 = vsel %vm1364, %v1175, 0
    %1446 = vst [vmem:[#allocation17] sm:$0x77] %v1419
    %1447 = vst [vmem:[#allocation17 + $0x8] sm:$0x77] %v1420
    %1448 = vst [vmem:[#allocation17 + $0x10] sm:$0x77] %v1421
    %1449 = vst [vmem:[#allocation17 + $0x18] sm:$0x77] %v1422
    %1450 = vst [vmem:[#allocation17 + $0x20] sm:$0x77] %v1423
    %1451 = vst [vmem:[#allocation17 + $0x28] sm:$0x77] %v1424
    %1452 = vst [vmem:[#allocation17 + $0x30] sm:$0x77] %v1425
    %1453 = vst [vmem:[#allocation17 + $0x38] sm:$0x77] %v1426
    %1454 = vst [vmem:[#allocation17 + $0x40] sm:$0x77] %v1427
    %1455 = vst [vmem:[#allocation17 + $0x48] sm:$0x77] %v1428
    %1456 = vst [vmem:[#allocation17 + $0x50] sm:$0x77] %v1429
    %1457 = vst [vmem:[#allocation17 + $0x58] sm:$0x77] %v1430
    %1458 = vst [vmem:[#allocation17 + $0x60] sm:$0x77] %v1431
    %1459 = vst [vmem:[#allocation17 + $0x68] sm:$0x77] %v1432
    %1460 = vst [vmem:[#allocation17 + $0x70] sm:$0x77] %v1433
    %1461 = vst [vmem:[#allocation17 + $0x78] sm:$0x77] %v1434
    %1462 = vst [vmem:[#allocation17 + $0x80] sm:$0x77] %v1435
    %1463 = vst [vmem:[#allocation17 + $0x88] sm:$0x77] %v1436
    %1464 = vst [vmem:[#allocation17 + $0x90] sm:$0x77] %v1437
    %1465 = vst [vmem:[#allocation17 + $0x98] sm:$0x77] %v1438
    %1466 = vst [vmem:[#allocation17 + $0xa0] sm:$0x77] %v1439
    %1467 = vst [vmem:[#allocation17 + $0xa8] sm:$0x77] %v1440
    %1468 = vst [vmem:[#allocation17 + $0xb0] sm:$0x77] %v1441
    %1469 = vst [vmem:[#allocation17 + $0xb8] sm:$0x77] %v1442
    %1470 = vst [vmem:[#allocation17 + $0xc0] sm:$0x77] %v1443
    %1471 = vst [vmem:[#allocation17 + $0xc8] sm:$0x77] %v1444
    %1472 = vst.msk [vmem:[#allocation17 + $0xd0] sm:$0x77] %vm1066, %v1445
    %v1473 = vmin.f32 %v1011, 1.0
    %v1474 = vmin.f32 %v1012, 1.0
    %v1475 = vmin.f32 %v1013, 1.0
    %v1476 = vmin.f32 %v1014, 1.0
    %v1477 = vmin.f32 %v1015, 1.0
    %v1478 = vmin.f32 %v1016, 1.0
    %v1479 = vmin.f32 %v1017, 1.0
    %v1480 = vmin.f32 %v1018, 1.0
    %v1481 = vmin.f32 %v1019, 1.0
    %v1482 = vmin.f32 %v1020, 1.0
    %v1483 = vmin.f32 %v1021, 1.0
    %v1484 = vmin.f32 %v1022, 1.0
    %v1485 = vmin.f32 %v1023, 1.0
    %v1486 = vmin.f32 %v1024, 1.0
    %v1487 = vmin.f32 %v1025, 1.0
    %v1488 = vmin.f32 %v1026, 1.0
    %v1489 = vmin.f32 %v1027, 1.0
    %v1490 = vmin.f32 %v1028, 1.0
    %v1491 = vmin.f32 %v1029, 1.0
    %v1492 = vmin.f32 %v1030, 1.0
    %v1493 = vmin.f32 %v1031, 1.0
    %v1494 = vmin.f32 %v1032, 1.0
    %v1495 = vmin.f32 %v1033, 1.0
    %v1496 = vmin.f32 %v1034, 1.0
    %v1497 = vmin.f32 %v1035, 1.0
    %v1498 = vmin.f32 %v1036, 1.0
    %v1499 = vmin.f32 %v1037, 1.0
    %v1500 = vsel %vm1338, %v1473, inf
    %v1501 = vsel %vm1339, %v1474, inf
    %v1502 = vsel %vm1340, %v1475, inf
    %v1503 = vsel %vm1341, %v1476, inf
    %v1504 = vsel %vm1342, %v1477, inf
    %v1505 = vsel %vm1343, %v1478, inf
    %v1506 = vsel %vm1344, %v1479, inf
    %v1507 = vsel %vm1345, %v1480, inf
    %v1508 = vsel %vm1346, %v1481, inf
    %v1509 = vsel %vm1347, %v1482, inf
    %v1510 = vsel %vm1348, %v1483, inf
    %v1511 = vsel %vm1349, %v1484, inf
    %v1512 = vsel %vm1350, %v1485, inf
    %v1513 = vsel %vm1351, %v1486, inf
    %v1514 = vsel %vm1352, %v1487, inf
    %v1515 = vsel %vm1353, %v1488, inf
    %v1516 = vsel %vm1354, %v1489, inf
    %v1517 = vsel %vm1355, %v1490, inf
    %v1518 = vsel %vm1356, %v1491, inf
    %v1519 = vsel %vm1357, %v1492, inf
    %v1520 = vsel %vm1358, %v1493, inf
    %v1521 = vsel %vm1359, %v1494, inf
    %v1522 = vsel %vm1360, %v1495, inf
    %v1523 = vsel %vm1361, %v1496, inf
    %v1524 = vsel %vm1362, %v1497, inf
    %v1525 = vsel %vm1363, %v1498, inf
    %v1526 = vsel %vm1364, %v1499, inf
    %1527 = vst [vmem:[#allocation19] sm:$0x77] %v1500
    %1528 = vst [vmem:[#allocation19 + $0x8] sm:$0x77] %v1501
    %1529 = vst [vmem:[#allocation19 + $0x10] sm:$0x77] %v1502
    %1530 = vst [vmem:[#allocation19 + $0x18] sm:$0x77] %v1503
    %1531 = vst [vmem:[#allocation19 + $0x20] sm:$0x77] %v1504
    %1532 = vst [vmem:[#allocation19 + $0x28] sm:$0x77] %v1505
    %1533 = vst [vmem:[#allocation19 + $0x30] sm:$0x77] %v1506
    %1534 = vst [vmem:[#allocation19 + $0x38] sm:$0x77] %v1507
    %1535 = vst [vmem:[#allocation19 + $0x40] sm:$0x77] %v1508
    %1536 = vst [vmem:[#allocation19 + $0x48] sm:$0x77] %v1509
    %1537 = vst [vmem:[#allocation19 + $0x50] sm:$0x77] %v1510
    %1538 = vst [vmem:[#allocation19 + $0x58] sm:$0x77] %v1511
    %1539 = vst [vmem:[#allocation19 + $0x60] sm:$0x77] %v1512
    %1540 = vst [vmem:[#allocation19 + $0x68] sm:$0x77] %v1513
    %1541 = vst [vmem:[#allocation19 + $0x70] sm:$0x77] %v1514
    %1542 = vst [vmem:[#allocation19 + $0x78] sm:$0x77] %v1515
    %1543 = vst [vmem:[#allocation19 + $0x80] sm:$0x77] %v1516
    %1544 = vst [vmem:[#allocation19 + $0x88] sm:$0x77] %v1517
    %1545 = vst [vmem:[#allocation19 + $0x90] sm:$0x77] %v1518
    %1546 = vst [vmem:[#allocation19 + $0x98] sm:$0x77] %v1519
    %1547 = vst [vmem:[#allocation19 + $0xa0] sm:$0x77] %v1520
    %1548 = vst [vmem:[#allocation19 + $0xa8] sm:$0x77] %v1521
    %1549 = vst [vmem:[#allocation19 + $0xb0] sm:$0x77] %v1522
    %1550 = vst [vmem:[#allocation19 + $0xb8] sm:$0x77] %v1523
    %1551 = vst [vmem:[#allocation19 + $0xc0] sm:$0x77] %v1524
    %1552 = vst [vmem:[#allocation19 + $0xc8] sm:$0x77] %v1525
    %1553 = vst.msk [vmem:[#allocation19 + $0xd0] sm:$0x77] %vm1066, %v1526
    %vm1554 = vcmp.lt.s32.totalorder %v1122, 223
    %vm1555 = vcmp.lt.s32.totalorder %v1123, 223
    %vm1556 = vcmp.lt.s32.totalorder %v1124, 223
    %vm1557 = vcmp.lt.s32.totalorder %v1125, 223
    %vm1558 = vcmp.lt.s32.totalorder %v1126, 223
    %vm1559 = vcmp.lt.s32.totalorder %v1127, 223
    %vm1560 = vcmp.lt.s32.totalorder %v1128, 223
    %vm1561 = vcmp.lt.s32.totalorder %v1129, 223
    %vm1562 = vcmp.lt.s32.totalorder %v1130, 223
    %vm1563 = vcmp.lt.s32.totalorder %v1131, 223
    %vm1564 = vcmp.lt.s32.totalorder %v1132, 223
    %vm1565 = vcmp.lt.s32.totalorder %v1133, 223
    %vm1566 = vcmp.lt.s32.totalorder %v1134, 223
    %vm1567 = vcmp.lt.s32.totalorder %v1135, 223
    %vm1568 = vcmp.lt.s32.totalorder %v1136, 223
    %vm1569 = vcmp.lt.s32.totalorder %v1137, 223
    %vm1570 = vcmp.lt.s32.totalorder %v1138, 223
    %vm1571 = vcmp.lt.s32.totalorder %v1139, 223
    %vm1572 = vcmp.lt.s32.totalorder %v1140, 223
    %vm1573 = vcmp.lt.s32.totalorder %v1141, 223
    %vm1574 = vcmp.lt.s32.totalorder %v1142, 223
    %vm1575 = vcmp.lt.s32.totalorder %v1143, 223
    %vm1576 = vcmp.lt.s32.totalorder %v1144, 223
    %vm1577 = vcmp.lt.s32.totalorder %v1145, 223
    %vm1578 = vcmp.lt.s32.totalorder %v1146, 223
    %vm1579 = vcmp.lt.s32.totalorder %v1147, 223
    %vm1580 = vcmp.lt.s32.totalorder %v1148, 223
    %vm1581 = vmand %vm1176, %vm1554
    %vm1582 = vmand %vm1177, %vm1555
    %vm1583 = vmand %vm1178, %vm1556
    %vm1584 = vmand %vm1179, %vm1557
    %vm1585 = vmand %vm1180, %vm1558
    %vm1586 = vmand %vm1181, %vm1559
    %vm1587 = vmand %vm1182, %vm1560
    %vm1588 = vmand %vm1183, %vm1561
    %vm1589 = vmand %vm1184, %vm1562
    %vm1590 = vmand %vm1185, %vm1563
    %vm1591 = vmand %vm1186, %vm1564
    %vm1592 = vmand %vm1187, %vm1565
    %vm1593 = vmand %vm1188, %vm1566
    %vm1594 = vmand %vm1189, %vm1567
    %vm1595 = vmand %vm1190, %vm1568
    %vm1596 = vmand %vm1191, %vm1569
    %vm1597 = vmand %vm1192, %vm1570
    %vm1598 = vmand %vm1193, %vm1571
    %vm1599 = vmand %vm1194, %vm1572
    %vm1600 = vmand %vm1195, %vm1573
    %vm1601 = vmand %vm1196, %vm1574
    %vm1602 = vmand %vm1197, %vm1575
    %vm1603 = vmand %vm1198, %vm1576
    %vm1604 = vmand %vm1199, %vm1577
    %vm1605 = vmand %vm1200, %vm1578
    %vm1606 = vmand %vm1201, %vm1579
    %vm1607 = vmand %vm1202, %vm1580
    %vm1608 = vmand %vm1581, %vm1257
    %vm1609 = vmand %vm1582, %vm1258
    %vm1610 = vmand %vm1583, %vm1259
    %vm1611 = vmand %vm1584, %vm1260
    %vm1612 = vmand %vm1585, %vm1261
    %vm1613 = vmand %vm1586, %vm1262
    %vm1614 = vmand %vm1587, %vm1263
    %vm1615 = vmand %vm1588, %vm1264
    %vm1616 = vmand %vm1589, %vm1265
    %vm1617 = vmand %vm1590, %vm1266
    %vm1618 = vmand %vm1591, %vm1267
    %vm1619 = vmand %vm1592, %vm1268
    %vm1620 = vmand %vm1593, %vm1269
    %vm1621 = vmand %vm1594, %vm1270
    %vm1622 = vmand %vm1595, %vm1271
    %vm1623 = vmand %vm1596, %vm1272
    %vm1624 = vmand %vm1597, %vm1273
    %vm1625 = vmand %vm1598, %vm1274
    %vm1626 = vmand %vm1599, %vm1275
    %vm1627 = vmand %vm1600, %vm1276
    %vm1628 = vmand %vm1601, %vm1277
    %vm1629 = vmand %vm1602, %vm1278
    %vm1630 = vmand %vm1603, %vm1279
    %vm1631 = vmand %vm1604, %vm1280
    %vm1632 = vmand %vm1605, %vm1281
    %vm1633 = vmand %vm1606, %vm1282
    %vm1634 = vmand %vm1607, %vm1283
    %vm1635 = vcmp.lt.s32.totalorder %v1149, 223
    %vm1636 = vcmp.lt.s32.totalorder %v1150, 223
    %vm1637 = vcmp.lt.s32.totalorder %v1151, 223
    %vm1638 = vcmp.lt.s32.totalorder %v1152, 223
    %vm1639 = vcmp.lt.s32.totalorder %v1153, 223
    %vm1640 = vcmp.lt.s32.totalorder %v1154, 223
    %vm1641 = vcmp.lt.s32.totalorder %v1155, 223
    %vm1642 = vcmp.lt.s32.totalorder %v1156, 223
    %vm1643 = vcmp.lt.s32.totalorder %v1157, 223
    %vm1644 = vcmp.lt.s32.totalorder %v1158, 223
    %vm1645 = vcmp.lt.s32.totalorder %v1159, 223
    %vm1646 = vcmp.lt.s32.totalorder %v1160, 223
    %vm1647 = vcmp.lt.s32.totalorder %v1161, 223
    %vm1648 = vcmp.lt.s32.totalorder %v1162, 223
    %vm1649 = vcmp.lt.s32.totalorder %v1163, 223
    %vm1650 = vcmp.lt.s32.totalorder %v1164, 223
    %vm1651 = vcmp.lt.s32.totalorder %v1165, 223
    %vm1652 = vcmp.lt.s32.totalorder %v1166, 223
    %vm1653 = vcmp.lt.s32.totalorder %v1167, 223
    %vm1654 = vcmp.lt.s32.totalorder %v1168, 223
    %vm1655 = vcmp.lt.s32.totalorder %v1169, 223
    %vm1656 = vcmp.lt.s32.totalorder %v1170, 223
    %vm1657 = vcmp.lt.s32.totalorder %v1171, 223
    %vm1658 = vcmp.lt.s32.totalorder %v1172, 223
    %vm1659 = vcmp.lt.s32.totalorder %v1173, 223
    %vm1660 = vcmp.lt.s32.totalorder %v1174, 223
    %vm1661 = vcmp.lt.s32.totalorder %v1175, 223
    %vm1662 = vmand %vm1608, %vm1635
    %vm1663 = vmand %vm1609, %vm1636
    %vm1664 = vmand %vm1610, %vm1637
    %vm1665 = vmand %vm1611, %vm1638
    %vm1666 = vmand %vm1612, %vm1639
    %vm1667 = vmand %vm1613, %vm1640
    %vm1668 = vmand %vm1614, %vm1641
    %vm1669 = vmand %vm1615, %vm1642
    %vm1670 = vmand %vm1616, %vm1643
    %vm1671 = vmand %vm1617, %vm1644
    %vm1672 = vmand %vm1618, %vm1645
    %vm1673 = vmand %vm1619, %vm1646
    %vm1674 = vmand %vm1620, %vm1647
    %vm1675 = vmand %vm1621, %vm1648
    %vm1676 = vmand %vm1622, %vm1649
    %vm1677 = vmand %vm1623, %vm1650
    %vm1678 = vmand %vm1624, %vm1651
    %vm1679 = vmand %vm1625, %vm1652
    %vm1680 = vmand %vm1626, %vm1653
    %vm1681 = vmand %vm1627, %vm1654
    %vm1682 = vmand %vm1628, %vm1655
    %vm1683 = vmand %vm1629, %vm1656
    %vm1684 = vmand %vm1630, %vm1657
    %vm1685 = vmand %vm1631, %vm1658
    %vm1686 = vmand %vm1632, %vm1659
    %vm1687 = vmand %vm1633, %vm1660
    %vm1688 = vmand %vm1634, %vm1661
    %v1689 = vsel %vm1662, %v1122, 0
    %v1690 = vsel %vm1663, %v1123, 0
    %v1691 = vsel %vm1664, %v1124, 0
    %v1692 = vsel %vm1665, %v1125, 0
    %v1693 = vsel %vm1666, %v1126, 0
    %v1694 = vsel %vm1667, %v1127, 0
    %v1695 = vsel %vm1668, %v1128, 0
    %v1696 = vsel %vm1669, %v1129, 0
    %v1697 = vsel %vm1670, %v1130, 0
    %v1698 = vsel %vm1671, %v1131, 0
    %v1699 = vsel %vm1672, %v1132, 0
    %v1700 = vsel %vm1673, %v1133, 0
    %v1701 = vsel %vm1674, %v1134, 0
    %v1702 = vsel %vm1675, %v1135, 0
    %v1703 = vsel %vm1676, %v1136, 0
    %v1704 = vsel %vm1677, %v1137, 0
    %v1705 = vsel %vm1678, %v1138, 0
    %v1706 = vsel %vm1679, %v1139, 0
    %v1707 = vsel %vm1680, %v1140, 0
    %v1708 = vsel %vm1681, %v1141, 0
    %v1709 = vsel %vm1682, %v1142, 0
    %v1710 = vsel %vm1683, %v1143, 0
    %v1711 = vsel %vm1684, %v1144, 0
    %v1712 = vsel %vm1685, %v1145, 0
    %v1713 = vsel %vm1686, %v1146, 0
    %v1714 = vsel %vm1687, %v1147, 0
    %v1715 = vsel %vm1688, %v1148, 0
    %1716 = vst [vmem:[#allocation20] sm:$0x77] %v1689
    %1717 = vst [vmem:[#allocation20 + $0x8] sm:$0x77] %v1690
    %1718 = vst [vmem:[#allocation20 + $0x10] sm:$0x77] %v1691
    %1719 = vst [vmem:[#allocation20 + $0x18] sm:$0x77] %v1692
    %1720 = vst [vmem:[#allocation20 + $0x20] sm:$0x77] %v1693
    %1721 = vst [vmem:[#allocation20 + $0x28] sm:$0x77] %v1694
    %1722 = vst [vmem:[#allocation20 + $0x30] sm:$0x77] %v1695
    %1723 = vst [vmem:[#allocation20 + $0x38] sm:$0x77] %v1696
    %1724 = vst [vmem:[#allocation20 + $0x40] sm:$0x77] %v1697
    %1725 = vst [vmem:[#allocation20 + $0x48] sm:$0x77] %v1698
    %1726 = vst [vmem:[#allocation20 + $0x50] sm:$0x77] %v1699
    %1727 = vst [vmem:[#allocation20 + $0x58] sm:$0x77] %v1700
    %1728 = vst [vmem:[#allocation20 + $0x60] sm:$0x77] %v1701
    %1729 = vst [vmem:[#allocation20 + $0x68] sm:$0x77] %v1702
    %1730 = vst [vmem:[#allocation20 + $0x70] sm:$0x77] %v1703
    %1731 = vst [vmem:[#allocation20 + $0x78] sm:$0x77] %v1704
    %1732 = vst [vmem:[#allocation20 + $0x80] sm:$0x77] %v1705
    %1733 = vst [vmem:[#allocation20 + $0x88] sm:$0x77] %v1706
    %1734 = vst [vmem:[#allocation20 + $0x90] sm:$0x77] %v1707
    %1735 = vst [vmem:[#allocation20 + $0x98] sm:$0x77] %v1708
    %1736 = vst [vmem:[#allocation20 + $0xa0] sm:$0x77] %v1709
    %1737 = vst [vmem:[#allocation20 + $0xa8] sm:$0x77] %v1710
    %1738 = vst [vmem:[#allocation20 + $0xb0] sm:$0x77] %v1711
    %1739 = vst [vmem:[#allocation20 + $0xb8] sm:$0x77] %v1712
    %1740 = vst [vmem:[#allocation20 + $0xc0] sm:$0x77] %v1713
    %1741 = vst [vmem:[#allocation20 + $0xc8] sm:$0x77] %v1714
    %1742 = vst.msk [vmem:[#allocation20 + $0xd0] sm:$0x77] %vm1066, %v1715
    %v1743 = vsel %vm1662, %v1149, 0
    %v1744 = vsel %vm1663, %v1150, 0
    %v1745 = vsel %vm1664, %v1151, 0
    %v1746 = vsel %vm1665, %v1152, 0
    %v1747 = vsel %vm1666, %v1153, 0
    %v1748 = vsel %vm1667, %v1154, 0
    %v1749 = vsel %vm1668, %v1155, 0
    %v1750 = vsel %vm1669, %v1156, 0
    %v1751 = vsel %vm1670, %v1157, 0
    %v1752 = vsel %vm1671, %v1158, 0
    %v1753 = vsel %vm1672, %v1159, 0
    %v1754 = vsel %vm1673, %v1160, 0
    %v1755 = vsel %vm1674, %v1161, 0
    %v1756 = vsel %vm1675, %v1162, 0
    %v1757 = vsel %vm1676, %v1163, 0
    %v1758 = vsel %vm1677, %v1164, 0
    %v1759 = vsel %vm1678, %v1165, 0
    %v1760 = vsel %vm1679, %v1166, 0
    %v1761 = vsel %vm1680, %v1167, 0
    %v1762 = vsel %vm1681, %v1168, 0
    %v1763 = vsel %vm1682, %v1169, 0
    %v1764 = vsel %vm1683, %v1170, 0
    %v1765 = vsel %vm1684, %v1171, 0
    %v1766 = vsel %vm1685, %v1172, 0
    %v1767 = vsel %vm1686, %v1173, 0
    %v1768 = vsel %vm1687, %v1174, 0
    %v1769 = vsel %vm1688, %v1175, 0
    %1770 = vst [vmem:[#allocation22] sm:$0x77] %v1743
    %1771 = vst [vmem:[#allocation22 + $0x8] sm:$0x77] %v1744
    %1772 = vst [vmem:[#allocation22 + $0x10] sm:$0x77] %v1745
    %1773 = vst [vmem:[#allocation22 + $0x18] sm:$0x77] %v1746
    %1774 = vst [vmem:[#allocation22 + $0x20] sm:$0x77] %v1747
    %1775 = vst [vmem:[#allocation22 + $0x28] sm:$0x77] %v1748
    %1776 = vst [vmem:[#allocation22 + $0x30] sm:$0x77] %v1749
    %1777 = vst [vmem:[#allocation22 + $0x38] sm:$0x77] %v1750
    %1778 = vst [vmem:[#allocation22 + $0x40] sm:$0x77] %v1751
    %1779 = vst [vmem:[#allocation22 + $0x48] sm:$0x77] %v1752
    %1780 = vst [vmem:[#allocation22 + $0x50] sm:$0x77] %v1753
    %1781 = vst [vmem:[#allocation22 + $0x58] sm:$0x77] %v1754
    %1782 = vst [vmem:[#allocation22 + $0x60] sm:$0x77] %v1755
    %1783 = vst [vmem:[#allocation22 + $0x68] sm:$0x77] %v1756
    %1784 = vst [vmem:[#allocation22 + $0x70] sm:$0x77] %v1757
    %1785 = vst [vmem:[#allocation22 + $0x78] sm:$0x77] %v1758
    %1786 = vst [vmem:[#allocation22 + $0x80] sm:$0x77] %v1759
    %1787 = vst [vmem:[#allocation22 + $0x88] sm:$0x77] %v1760
    %1788 = vst [vmem:[#allocation22 + $0x90] sm:$0x77] %v1761
    %1789 = vst [vmem:[#allocation22 + $0x98] sm:$0x77] %v1762
    %1790 = vst [vmem:[#allocation22 + $0xa0] sm:$0x77] %v1763
    %1791 = vst [vmem:[#allocation22 + $0xa8] sm:$0x77] %v1764
    %1792 = vst [vmem:[#allocation22 + $0xb0] sm:$0x77] %v1765
    %1793 = vst [vmem:[#allocation22 + $0xb8] sm:$0x77] %v1766
    %1794 = vst [vmem:[#allocation22 + $0xc0] sm:$0x77] %v1767
    %1795 = vst [vmem:[#allocation22 + $0xc8] sm:$0x77] %v1768
    %1796 = vst.msk [vmem:[#allocation22 + $0xd0] sm:$0x77] %vm1066, %v1769
    %v1797 = vadd.s32 %v1122, 1
    %v1798 = vadd.s32 %v1123, 1
    %v1799 = vadd.s32 %v1124, 1
    %v1800 = vadd.s32 %v1125, 1
    %v1801 = vadd.s32 %v1126, 1
    %v1802 = vadd.s32 %v1127, 1
    %v1803 = vadd.s32 %v1128, 1
    %v1804 = vadd.s32 %v1129, 1
    %v1805 = vadd.s32 %v1130, 1
    %v1806 = vadd.s32 %v1131, 1
    %v1807 = vadd.s32 %v1132, 1
    %v1808 = vadd.s32 %v1133, 1
    %v1809 = vadd.s32 %v1134, 1
    %v1810 = vadd.s32 %v1135, 1
    %v1811 = vadd.s32 %v1136, 1
    %v1812 = vadd.s32 %v1137, 1
    %v1813 = vadd.s32 %v1138, 1
    %v1814 = vadd.s32 %v1139, 1
    %v1815 = vadd.s32 %v1140, 1
    %v1816 = vadd.s32 %v1141, 1
    %v1817 = vadd.s32 %v1142, 1
    %v1818 = vadd.s32 %v1143, 1
    %v1819 = vadd.s32 %v1144, 1
    %v1820 = vadd.s32 %v1145, 1
    %v1821 = vadd.s32 %v1146, 1
    %v1822 = vadd.s32 %v1147, 1
    %v1823 = vadd.s32 %v1148, 1
    %v1824 = vsel %vm1662, %v1797, 0
    %v1825 = vsel %vm1663, %v1798, 0
    %v1826 = vsel %vm1664, %v1799, 0
    %v1827 = vsel %vm1665, %v1800, 0
    %v1828 = vsel %vm1666, %v1801, 0
    %v1829 = vsel %vm1667, %v1802, 0
    %v1830 = vsel %vm1668, %v1803, 0
    %v1831 = vsel %vm1669, %v1804, 0
    %v1832 = vsel %vm1670, %v1805, 0
    %v1833 = vsel %vm1671, %v1806, 0
    %v1834 = vsel %vm1672, %v1807, 0
    %v1835 = vsel %vm1673, %v1808, 0
    %v1836 = vsel %vm1674, %v1809, 0
    %v1837 = vsel %vm1675, %v1810, 0
    %v1838 = vsel %vm1676, %v1811, 0
    %v1839 = vsel %vm1677, %v1812, 0
    %v1840 = vsel %vm1678, %v1813, 0
    %v1841 = vsel %vm1679, %v1814, 0
    %v1842 = vsel %vm1680, %v1815, 0
    %v1843 = vsel %vm1681, %v1816, 0
    %v1844 = vsel %vm1682, %v1817, 0
    %v1845 = vsel %vm1683, %v1818, 0
    %v1846 = vsel %vm1684, %v1819, 0
    %v1847 = vsel %vm1685, %v1820, 0
    %v1848 = vsel %vm1686, %v1821, 0
    %v1849 = vsel %vm1687, %v1822, 0
    %v1850 = vsel %vm1688, %v1823, 0
    %1851 = vst [vmem:[#allocation23] sm:$0x77] %v1824
    %1852 = vst [vmem:[#allocation23 + $0x8] sm:$0x77] %v1825
    %1853 = vst [vmem:[#allocation23 + $0x10] sm:$0x77] %v1826
    %1854 = vst [vmem:[#allocation23 + $0x18] sm:$0x77] %v1827
    %1855 = vst [vmem:[#allocation23 + $0x20] sm:$0x77] %v1828
    %1856 = vst [vmem:[#allocation23 + $0x28] sm:$0x77] %v1829
    %1857 = vst [vmem:[#allocation23 + $0x30] sm:$0x77] %v1830
    %1858 = vst [vmem:[#allocation23 + $0x38] sm:$0x77] %v1831
    %1859 = vst [vmem:[#allocation23 + $0x40] sm:$0x77] %v1832
    %1860 = vst [vmem:[#allocation23 + $0x48] sm:$0x77] %v1833
    %1861 = vst [vmem:[#allocation23 + $0x50] sm:$0x77] %v1834
    %1862 = vst [vmem:[#allocation23 + $0x58] sm:$0x77] %v1835
    %1863 = vst [vmem:[#allocation23 + $0x60] sm:$0x77] %v1836
    %1864 = vst [vmem:[#allocation23 + $0x68] sm:$0x77] %v1837
    %1865 = vst [vmem:[#allocation23 + $0x70] sm:$0x77] %v1838
    %1866 = vst [vmem:[#allocation23 + $0x78] sm:$0x77] %v1839
    %1867 = vst [vmem:[#allocation23 + $0x80] sm:$0x77] %v1840
    %1868 = vst [vmem:[#allocation23 + $0x88] sm:$0x77] %v1841
    %1869 = vst [vmem:[#allocation23 + $0x90] sm:$0x77] %v1842
    %1870 = vst [vmem:[#allocation23 + $0x98] sm:$0x77] %v1843
    %1871 = vst [vmem:[#allocation23 + $0xa0] sm:$0x77] %v1844
    %1872 = vst [vmem:[#allocation23 + $0xa8] sm:$0x77] %v1845
    %1873 = vst [vmem:[#allocation23 + $0xb0] sm:$0x77] %v1846
    %1874 = vst [vmem:[#allocation23 + $0xb8] sm:$0x77] %v1847
    %1875 = vst [vmem:[#allocation23 + $0xc0] sm:$0x77] %v1848
    %1876 = vst [vmem:[#allocation23 + $0xc8] sm:$0x77] %v1849
    %1877 = vst.msk [vmem:[#allocation23 + $0xd0] sm:$0x77] %vm1066, %v1850
    %v1878 = vadd.s32 %v1149, 1
    %v1879 = vadd.s32 %v1150, 1
    %v1880 = vadd.s32 %v1151, 1
    %v1881 = vadd.s32 %v1152, 1
    %v1882 = vadd.s32 %v1153, 1
    %v1883 = vadd.s32 %v1154, 1
    %v1884 = vadd.s32 %v1155, 1
    %v1885 = vadd.s32 %v1156, 1
    %v1886 = vadd.s32 %v1157, 1
    %v1887 = vadd.s32 %v1158, 1
    %v1888 = vadd.s32 %v1159, 1
    %v1889 = vadd.s32 %v1160, 1
    %v1890 = vadd.s32 %v1161, 1
    %v1891 = vadd.s32 %v1162, 1
    %v1892 = vadd.s32 %v1163, 1
    %v1893 = vadd.s32 %v1164, 1
    %v1894 = vadd.s32 %v1165, 1
    %v1895 = vadd.s32 %v1166, 1
    %v1896 = vadd.s32 %v1167, 1
    %v1897 = vadd.s32 %v1168, 1
    %v1898 = vadd.s32 %v1169, 1
    %v1899 = vadd.s32 %v1170, 1
    %v1900 = vadd.s32 %v1171, 1
    %v1901 = vadd.s32 %v1172, 1
    %v1902 = vadd.s32 %v1173, 1
    %v1903 = vadd.s32 %v1174, 1
    %v1904 = vadd.s32 %v1175, 1
    %v1905 = vsel %vm1662, %v1878, 0
    %v1906 = vsel %vm1663, %v1879, 0
    %v1907 = vsel %vm1664, %v1880, 0
    %v1908 = vsel %vm1665, %v1881, 0
    %v1909 = vsel %vm1666, %v1882, 0
    %v1910 = vsel %vm1667, %v1883, 0
    %v1911 = vsel %vm1668, %v1884, 0
    %v1912 = vsel %vm1669, %v1885, 0
    %v1913 = vsel %vm1670, %v1886, 0
    %v1914 = vsel %vm1671, %v1887, 0
    %v1915 = vsel %vm1672, %v1888, 0
    %v1916 = vsel %vm1673, %v1889, 0
    %v1917 = vsel %vm1674, %v1890, 0
    %v1918 = vsel %vm1675, %v1891, 0
    %v1919 = vsel %vm1676, %v1892, 0
    %v1920 = vsel %vm1677, %v1893, 0
    %v1921 = vsel %vm1678, %v1894, 0
    %v1922 = vsel %vm1679, %v1895, 0
    %v1923 = vsel %vm1680, %v1896, 0
    %v1924 = vsel %vm1681, %v1897, 0
    %v1925 = vsel %vm1682, %v1898, 0
    %v1926 = vsel %vm1683, %v1899, 0
    %v1927 = vsel %vm1684, %v1900, 0
    %v1928 = vsel %vm1685, %v1901, 0
    %v1929 = vsel %vm1686, %v1902, 0
    %v1930 = vsel %vm1687, %v1903, 0
    %v1931 = vsel %vm1688, %v1904, 0
    %1932 = vst [vmem:[#allocation25] sm:$0x77] %v1905
    %1933 = vst [vmem:[#allocation25 + $0x8] sm:$0x77] %v1906
    %1934 = vst [vmem:[#allocation25 + $0x10] sm:$0x77] %v1907
    %1935 = vst [vmem:[#allocation25 + $0x18] sm:$0x77] %v1908
    %1936 = vst [vmem:[#allocation25 + $0x20] sm:$0x77] %v1909
    %1937 = vst [vmem:[#allocation25 + $0x28] sm:$0x77] %v1910
    %1938 = vst [vmem:[#allocation25 + $0x30] sm:$0x77] %v1911
    %1939 = vst [vmem:[#allocation25 + $0x38] sm:$0x77] %v1912
    %1940 = vst [vmem:[#allocation25 + $0x40] sm:$0x77] %v1913
    %1941 = vst [vmem:[#allocation25 + $0x48] sm:$0x77] %v1914
    %1942 = vst [vmem:[#allocation25 + $0x50] sm:$0x77] %v1915
    %1943 = vst [vmem:[#allocation25 + $0x58] sm:$0x77] %v1916
    %1944 = vst [vmem:[#allocation25 + $0x60] sm:$0x77] %v1917
    %1945 = vst [vmem:[#allocation25 + $0x68] sm:$0x77] %v1918
    %1946 = vst [vmem:[#allocation25 + $0x70] sm:$0x77] %v1919
    %1947 = vst [vmem:[#allocation25 + $0x78] sm:$0x77] %v1920
    %1948 = vst [vmem:[#allocation25 + $0x80] sm:$0x77] %v1921
    %1949 = vst [vmem:[#allocation25 + $0x88] sm:$0x77] %v1922
    %1950 = vst [vmem:[#allocation25 + $0x90] sm:$0x77] %v1923
    %1951 = vst [vmem:[#allocation25 + $0x98] sm:$0x77] %v1924
    %1952 = vst [vmem:[#allocation25 + $0xa0] sm:$0x77] %v1925
    %1953 = vst [vmem:[#allocation25 + $0xa8] sm:$0x77] %v1926
    %1954 = vst [vmem:[#allocation25 + $0xb0] sm:$0x77] %v1927
    %1955 = vst [vmem:[#allocation25 + $0xb8] sm:$0x77] %v1928
    %1956 = vst [vmem:[#allocation25 + $0xc0] sm:$0x77] %v1929
    %1957 = vst [vmem:[#allocation25 + $0xc8] sm:$0x77] %v1930
    %1958 = vst.msk [vmem:[#allocation25 + $0xd0] sm:$0x77] %vm1066, %v1931
    %v1959 = vsel %vm1662, 1.0, 0.0
    %v1960 = vsel %vm1663, 1.0, 0.0
    %v1961 = vsel %vm1664, 1.0, 0.0
    %v1962 = vsel %vm1665, 1.0, 0.0
    %v1963 = vsel %vm1666, 1.0, 0.0
    %v1964 = vsel %vm1667, 1.0, 0.0
    %v1965 = vsel %vm1668, 1.0, 0.0
    %v1966 = vsel %vm1669, 1.0, 0.0
    %v1967 = vsel %vm1670, 1.0, 0.0
    %v1968 = vsel %vm1671, 1.0, 0.0
    %v1969 = vsel %vm1672, 1.0, 0.0
    %v1970 = vsel %vm1673, 1.0, 0.0
    %v1971 = vsel %vm1674, 1.0, 0.0
    %v1972 = vsel %vm1675, 1.0, 0.0
    %v1973 = vsel %vm1676, 1.0, 0.0
    %v1974 = vsel %vm1677, 1.0, 0.0
    %v1975 = vsel %vm1678, 1.0, 0.0
    %v1976 = vsel %vm1679, 1.0, 0.0
    %v1977 = vsel %vm1680, 1.0, 0.0
    %v1978 = vsel %vm1681, 1.0, 0.0
    %v1979 = vsel %vm1682, 1.0, 0.0
    %v1980 = vsel %vm1683, 1.0, 0.0
    %v1981 = vsel %vm1684, 1.0, 0.0
    %v1982 = vsel %vm1685, 1.0, 0.0
    %v1983 = vsel %vm1686, 1.0, 0.0
    %v1984 = vsel %vm1687, 1.0, 0.0
    %v1985 = vsel %vm1688, 1.0, 0.0
    %1986 = vst [vmem:[#allocation26] sm:$0x77] %v1959
    %1987 = vst [vmem:[#allocation26 + $0x8] sm:$0x77] %v1960
    %1988 = vst [vmem:[#allocation26 + $0x10] sm:$0x77] %v1961
    %1989 = vst [vmem:[#allocation26 + $0x18] sm:$0x77] %v1962
    %1990 = vst [vmem:[#allocation26 + $0x20] sm:$0x77] %v1963
    %1991 = vst [vmem:[#allocation26 + $0x28] sm:$0x77] %v1964
    %1992 = vst [vmem:[#allocation26 + $0x30] sm:$0x77] %v1965
    %1993 = vst [vmem:[#allocation26 + $0x38] sm:$0x77] %v1966
    %1994 = vst [vmem:[#allocation26 + $0x40] sm:$0x77] %v1967
    %1995 = vst [vmem:[#allocation26 + $0x48] sm:$0x77] %v1968
    %1996 = vst [vmem:[#allocation26 + $0x50] sm:$0x77] %v1969
    %1997 = vst [vmem:[#allocation26 + $0x58] sm:$0x77] %v1970
    %1998 = vst [vmem:[#allocation26 + $0x60] sm:$0x77] %v1971
    %1999 = vst [vmem:[#allocation26 + $0x68] sm:$0x77] %v1972
    %2000 = vst [vmem:[#allocation26 + $0x70] sm:$0x77] %v1973
    %2001 = vst [vmem:[#allocation26 + $0x78] sm:$0x77] %v1974
    %2002 = vst [vmem:[#allocation26 + $0x80] sm:$0x77] %v1975
    %2003 = vst [vmem:[#allocation26 + $0x88] sm:$0x77] %v1976
    %2004 = vst [vmem:[#allocation26 + $0x90] sm:$0x77] %v1977
    %2005 = vst [vmem:[#allocation26 + $0x98] sm:$0x77] %v1978
    %2006 = vst [vmem:[#allocation26 + $0xa0] sm:$0x77] %v1979
    %2007 = vst [vmem:[#allocation26 + $0xa8] sm:$0x77] %v1980
    %2008 = vst [vmem:[#allocation26 + $0xb0] sm:$0x77] %v1981
    %2009 = vst [vmem:[#allocation26 + $0xb8] sm:$0x77] %v1982
    %2010 = vst [vmem:[#allocation26 + $0xc0] sm:$0x77] %v1983
    %2011 = vst [vmem:[#allocation26 + $0xc8] sm:$0x77] %v1984
    %2012 = vst.msk [vmem:[#allocation26 + $0xd0] sm:$0x77] %vm1066, %v1985
    // Predicated region
    $region58: #{tpu_custom_call.1} parent=1 // pred_check
      _
    $region59: #{tpu_custom_call.1} parent=1 // pred_check_branch
      %2014 = sbr.rel (0) target = $region61
    $region60: #{tpu_custom_call.1} parent=1 // pred_region
      %s2016 = ssub.s32 16, 16
      %2017 = vsyncadd [#allocation4], %s2016
      %s2019 = sshll.u32 [#allocation10], 4
      %s2020 = int_to_ptr.vmem [resolvable:$true] %s2019
      %2022 = dma.vmem_to_hbm [thread:$0]  %s2020, 16, %s10, [#allocation4]
    $region61: #{tpu_custom_call.1} parent=1 // pred_fallthru
      _
    // Predicated region
    $region62: #{tpu_custom_call.1} parent=1 // pred_check
      _
    $region63: #{tpu_custom_call.1} parent=1 // pred_check_branch
      %2024 = sbr.rel (0) target = $region65
    $region64: #{tpu_custom_call.1} parent=1 // pred_region
      %s2026 = ssub.s32 3456, 3456
      %2027 = vsyncadd [#allocation12], %s2026
      %s2029 = sshll.u32 [#allocation11], 4
      %s2030 = int_to_ptr.vmem [resolvable:$true] %s2029
      %2032 = dma.vmem_to_hbm [thread:$0]  %s2030, 3456, %s11, [#allocation12]
    $region65: #{tpu_custom_call.1} parent=1 // pred_fallthru
      _
    // Predicated region
    $region66: #{tpu_custom_call.1} parent=1 // pred_check
      _
    $region67: #{tpu_custom_call.1} parent=1 // pred_check_branch
      %2034 = sbr.rel (0) target = $region69
    $region68: #{tpu_custom_call.1} parent=1 // pred_region
      %s2036 = ssub.s32 3456, 3456
      %2037 = vsyncadd [#allocation12], %s2036
      %s2039 = sshll.u32 [#allocation13], 4
      %s2040 = int_to_ptr.vmem [resolvable:$true] %s2039
      %2042 = dma.vmem_to_hbm [thread:$0]  %s2040, 3456, %s12, [#allocation12]
    $region69: #{tpu_custom_call.1} parent=1 // pred_fallthru
      _
    // Predicated region
    $region70: #{tpu_custom_call.1} parent=1 // pred_check
      _
    $region71: #{tpu_custom_call.1} parent=1 // pred_check_branch
      %2044 = sbr.rel (0) target = $region73
    $region72: #{tpu_custom_call.1} parent=1 // pred_region
      %s2046 = ssub.s32 3456, 3456
      %2047 = vsyncadd [#allocation15], %s2046
      %s2049 = sshll.u32 [#allocation14], 4
      %s2050 = int_to_ptr.vmem [resolvable:$true] %s2049
      %2052 = dma.vmem_to_hbm [thread:$0]  %s2050, 3456, %s13, [#allocation15]
    $region73: #{tpu_custom_call.1} parent=1 // pred_fallthru
      _
    // Predicated region
    $region74: #{tpu_custom_call.1} parent=1 // pred_check
      _
    $region75: #{tpu_custom_call.1} parent=1 // pred_check_branch
      %2054 = sbr.rel (0) target = $region77
    $region76: #{tpu_custom_call.1} parent=1 // pred_region
      %s2056 = ssub.s32 3456, 3456
      %2057 = vsyncadd [#allocation15], %s2056
      %s2059 = sshll.u32 [#allocation16], 4
      %s2060 = int_to_ptr.vmem [resolvable:$true] %s2059
      %2062 = dma.vmem_to_hbm [thread:$0]  %s2060, 3456, %s14, [#allocation15]
    $region77: #{tpu_custom_call.1} parent=1 // pred_fallthru
      _
    // Predicated region
    $region78: #{tpu_custom_call.1} parent=1 // pred_check
      _
    $region79: #{tpu_custom_call.1} parent=1 // pred_check_branch
      %2064 = sbr.rel (0) target = $region81
    $region80: #{tpu_custom_call.1} parent=1 // pred_region
      %s2066 = ssub.s32 3456, 3456
      %2067 = vsyncadd [#allocation18], %s2066
      %s2069 = sshll.u32 [#allocation17], 4
      %s2070 = int_to_ptr.vmem [resolvable:$true] %s2069
      %2072 = dma.vmem_to_hbm [thread:$0]  %s2070, 3456, %s15, [#allocation18]
    $region81: #{tpu_custom_call.1} parent=1 // pred_fallthru
      _
    // Predicated region
    $region82: #{tpu_custom_call.1} parent=1 // pred_check
      _
    $region83: #{tpu_custom_call.1} parent=1 // pred_check_branch
      %2074 = sbr.rel (0) target = $region85
    $region84: #{tpu_custom_call.1} parent=1 // pred_region
      %s2076 = ssub.s32 3456, 3456
      %2077 = vsyncadd [#allocation18], %s2076
      %s2079 = sshll.u32 [#allocation19], 4
      %s2080 = int_to_ptr.vmem [resolvable:$true] %s2079
      %2082 = dma.vmem_to_hbm [thread:$0]  %s2080, 3456, %s16, [#allocation18]
    $region85: #{tpu_custom_call.1} parent=1 // pred_fallthru
      _
    // Predicated region
    $region86: #{tpu_custom_call.1} parent=1 // pred_check
      _
    $region87: #{tpu_custom_call.1} parent=1 // pred_check_branch
      %2084 = sbr.rel (0) target = $region89
    $region88: #{tpu_custom_call.1} parent=1 // pred_region
      %s2086 = ssub.s32 3456, 3456
      %2087 = vsyncadd [#allocation21], %s2086
      %s2089 = sshll.u32 [#allocation20], 4
      %s2090 = int_to_ptr.vmem [resolvable:$true] %s2089
      %2092 = dma.vmem_to_hbm [thread:$0]  %s2090, 3456, %s17, [#allocation21]
    $region89: #{tpu_custom_call.1} parent=1 // pred_fallthru
      _
    // Predicated region
    $region90: #{tpu_custom_call.1} parent=1 // pred_check
      _
    $region91: #{tpu_custom_call.1} parent=1 // pred_check_branch
      %2094 = sbr.rel (0) target = $region93
    $region92: #{tpu_custom_call.1} parent=1 // pred_region
      %s2096 = ssub.s32 3456, 3456
      %2097 = vsyncadd [#allocation21], %s2096
      %s2099 = sshll.u32 [#allocation22], 4
      %s2100 = int_to_ptr.vmem [resolvable:$true] %s2099
      %2102 = dma.vmem_to_hbm [thread:$0]  %s2100, 3456, %s18, [#allocation21]
    $region93: #{tpu_custom_call.1} parent=1 // pred_fallthru
      _
    // Predicated region
    $region94: #{tpu_custom_call.1} parent=1 // pred_check
      _
    $region95: #{tpu_custom_call.1} parent=1 // pred_check_branch
      %2104 = sbr.rel (0) target = $region97
    $region96: #{tpu_custom_call.1} parent=1 // pred_region
      %s2106 = ssub.s32 3456, 3456
      %2107 = vsyncadd [#allocation24], %s2106
      %s2109 = sshll.u32 [#allocation23], 4
      %s2110 = int_to_ptr.vmem [resolvable:$true] %s2109
      %2112 = dma.vmem_to_hbm [thread:$0]  %s2110, 3456, %s19, [#allocation24]
    $region97: #{tpu_custom_call.1} parent=1 // pred_fallthru
      _
    // Predicated region
    $region98: #{tpu_custom_call.1} parent=1 // pred_check
      _
    $region99: #{tpu_custom_call.1} parent=1 // pred_check_branch
      %2114 = sbr.rel (0) target = $region101
    $region100: #{tpu_custom_call.1} parent=1 // pred_region
      %s2116 = ssub.s32 3456, 3456
      %2117 = vsyncadd [#allocation24], %s2116
      %s2119 = sshll.u32 [#allocation25], 4
      %s2120 = int_to_ptr.vmem [resolvable:$true] %s2119
      %2122 = dma.vmem_to_hbm [thread:$0]  %s2120, 3456, %s20, [#allocation24]
    $region101: #{tpu_custom_call.1} parent=1 // pred_fallthru
      _
    // Predicated region
    $region102: #{tpu_custom_call.1} parent=1 // pred_check
      _
    $region103: #{tpu_custom_call.1} parent=1 // pred_check_branch
      %2124 = sbr.rel (0) target = $region105
    $region104: #{tpu_custom_call.1} parent=1 // pred_region
      %s2126 = ssub.s32 3456, 3456
      %2127 = vsyncadd [#allocation27], %s2126
      %s2129 = sshll.u32 [#allocation26], 4
      %s2130 = int_to_ptr.vmem [resolvable:$true] %s2129
      %2132 = dma.vmem_to_hbm [thread:$0]  %s2130, 3456, %s21, [#allocation27]
    $region105: #{tpu_custom_call.1} parent=1 // pred_fallthru
      _
    // Predicated region
    $region106: #{tpu_custom_call.1} parent=1 // pred_check
      _
    $region107: #{tpu_custom_call.1} parent=1 // pred_check_branch
      %2134 = sbr.rel (0) target = $region109
    $region108: #{tpu_custom_call.1} parent=1 // pred_region
      %2135 = dma.done [#allocation4], 16
    $region109: #{tpu_custom_call.1} parent=1 // pred_fallthru
      _
    // Predicated region
    $region110: #{tpu_custom_call.1} parent=1 // pred_check
      _
    $region111: #{tpu_custom_call.1} parent=1 // pred_check_branch
      %2137 = sbr.rel (0) target = $region113
    $region112: #{tpu_custom_call.1} parent=1 // pred_region
      %2138 = dma.done [#allocation12], 3456
    $region113: #{tpu_custom_call.1} parent=1 // pred_fallthru
      _
    // Predicated region
    $region114: #{tpu_custom_call.1} parent=1 // pred_check
      _
    $region115: #{tpu_custom_call.1} parent=1 // pred_check_branch
      %2140 = sbr.rel (0) target = $region117
    $region116: #{tpu_custom_call.1} parent=1 // pred_region
      %2141 = dma.done [#allocation12], 3456
    $region117: #{tpu_custom_call.1} parent=1 // pred_fallthru
      _
    // Predicated region
    $region118: #{tpu_custom_call.1} parent=1 // pred_check
      _
    $region119: #{tpu_custom_call.1} parent=1 // pred_check_branch
      %2143 = sbr.rel (0) target = $region121
    $region120: #{tpu_custom_call.1} parent=1 // pred_region
      %2144 = dma.done [#allocation15], 3456
    $region121: #{tpu_custom_call.1} parent=1 // pred_fallthru
      _
    // Predicated region
    $region122: #{tpu_custom_call.1} parent=1 // pred_check
      _
    $region123: #{tpu_custom_call.1} parent=1 // pred_check_branch
      %2146 = sbr.rel (0) target = $region125
    $region124: #{tpu_custom_call.1} parent=1 // pred_region
      %2147 = dma.done [#allocation15], 3456
    $region125: #{tpu_custom_call.1} parent=1 // pred_fallthru
      _
    // Predicated region
    $region126: #{tpu_custom_call.1} parent=1 // pred_check
      _
    $region127: #{tpu_custom_call.1} parent=1 // pred_check_branch
      %2149 = sbr.rel (0) target = $region129
    $region128: #{tpu_custom_call.1} parent=1 // pred_region
      %2150 = dma.done [#allocation18], 3456
    $region129: #{tpu_custom_call.1} parent=1 // pred_fallthru
      _
    // Predicated region
    $region130: #{tpu_custom_call.1} parent=1 // pred_check
      _
    $region131: #{tpu_custom_call.1} parent=1 // pred_check_branch
      %2152 = sbr.rel (0) target = $region133
    $region132: #{tpu_custom_call.1} parent=1 // pred_region
      %2153 = dma.done [#allocation18], 3456
    $region133: #{tpu_custom_call.1} parent=1 // pred_fallthru
      _
    // Predicated region
    $region134: #{tpu_custom_call.1} parent=1 // pred_check
      _
    $region135: #{tpu_custom_call.1} parent=1 // pred_check_branch
      %2155 = sbr.rel (0) target = $region137
    $region136: #{tpu_custom_call.1} parent=1 // pred_region
      %2156 = dma.done [#allocation21], 3456
    $region137: #{tpu_custom_call.1} parent=1 // pred_fallthru
      _
    // Predicated region
    $region138: #{tpu_custom_call.1} parent=1 // pred_check
      _
    $region139: #{tpu_custom_call.1} parent=1 // pred_check_branch
      %2158 = sbr.rel (0) target = $region141
    $region140: #{tpu_custom_call.1} parent=1 // pred_region
      %2159 = dma.done [#allocation21], 3456
    $region141: #{tpu_custom_call.1} parent=1 // pred_fallthru
      _
    // Predicated region
    $region142: #{tpu_custom_call.1} parent=1 // pred_check
      _
    $region143: #{tpu_custom_call.1} parent=1 // pred_check_branch
      %2161 = sbr.rel (0) target = $region145
    $region144: #{tpu_custom_call.1} parent=1 // pred_region
      %2162 = dma.done [#allocation24], 3456
    $region145: #{tpu_custom_call.1} parent=1 // pred_fallthru
      _
    // Predicated region
    $region146: #{tpu_custom_call.1} parent=1 // pred_check
      _
    $region147: #{tpu_custom_call.1} parent=1 // pred_check_branch
      %2164 = sbr.rel (0) target = $region149
    $region148: #{tpu_custom_call.1} parent=1 // pred_region
      %2165 = dma.done [#allocation24], 3456
    $region149: #{tpu_custom_call.1} parent=1 // pred_fallthru
      _
    // Predicated region
    $region150: #{tpu_custom_call.1} parent=1 // pred_check
      _
    $region151: #{tpu_custom_call.1} parent=1 // pred_check_branch
      %2167 = sbr.rel (0) target = $region153
    $region152: #{tpu_custom_call.1} parent=1 // pred_region
      %2168 = dma.done [#allocation27], 3456
    $region153: #{tpu_custom_call.1} parent=1 // pred_fallthru
      _
    %2169 = vsyncpa [#allocation3], 1
    %2170 = vsyncpa [#allocation6], 1
    %2171 = vsyncpa [#allocation9], 1
    %2172 = vsyncpa [#allocation4], 1
    %2173 = vsyncpa [#allocation12], 1
    %2174 = vsyncpa [#allocation15], 1
    %2175 = vsyncpa [#allocation18], 1
    %2176 = vsyncpa [#allocation21], 1
    %2177 = vsyncpa [#allocation24], 1
    %2178 = vsyncpa [#allocation27], 1

</llo_original>
